<compile_context>
chip_gen: v5e
topology: v5e:2x2
jax: 0.10.0
libtpu: 0.0.40
codegen_flags: <defaults>
</compile_context>

<pallas_src>
import functools

import numpy as np
import jax
import jax.numpy as jnp
from jax.experimental import pallas as pl
from jax.experimental.pallas import tpu as pltpu


NCOL = 10  # packed per-channel column vectors per block (see pack_block)


# ----------------------------------------------------------------------------
# Trace-time helpers (static)
# ----------------------------------------------------------------------------

def _taps(H, W, KH, KW, dil):
    """Roll amounts + 0/1 border masks implementing a zero-padded 'same'
    (dilated) KHxKW conv in a flattened (C, H*W) layout:
      tap(kh, kw) == roll(x, shift, axis=-1) * mask[t]
    with shift = (-(di*W + dj)) % (H*W)."""
    HW = H * W
    ii, jj = np.meshgrid(np.arange(H), np.arange(W), indexing="ij")
    shifts, masks = [], []
    for kh in range(KH):
        for kw in range(KW):
            di = (kh - KH // 2) * dil
            dj = (kw - KW // 2) * dil
            shifts.append(int((-(di * W + dj)) % HW))
            ok = (ii + di >= 0) & (ii + di < H) & (jj + dj >= 0) & (jj + dj < W)
            masks.append(ok.reshape(HW))
    return tuple(shifts), np.stack(masks).astype(np.float32)


def _w_flat(w, bn_scale=None):
    """(KH, KW, Cin, Cout) HWIO weight -> (Cout, KH*KW*Cin) bf16, with the
    eval-mode BatchNorm scale folded in per output channel."""
    KH, KW, Cin, Cout = w.shape
    wr = jnp.transpose(w, (3, 0, 1, 2)).reshape(Cout, KH * KW * Cin)
    if bn_scale is not None:
        wr = wr * bn_scale[:, None]
    return wr.astype(jnp.bfloat16)


def _col(v):
    return v.reshape(-1, 1).astype(jnp.float32)


# ----------------------------------------------------------------------------
# Kernel 1: one whole Block (conv1 + conv2 + ChannelAttention + MSSpatialAttn)
# ----------------------------------------------------------------------------

def _block_kernel(x_ref, masks_ref, w9_ref, ca_gate_ref, ca_w3_ref,
                  ms_w5a_ref, cols_ref, o_ref, lhs_ref,
                  *, C, t1, t3, t5, t7):
    x = x_ref[0].astype(jnp.float32)                    # (C, HW) block input
    m1 = masks_ref[0]                                   # (9, HW) f32, dil 1
    m3 = masks_ref[1]                                   # dil 3
    m5 = masks_ref[2]                                   # dil 5
    m7 = masks_ref[3]                                   # dil 7

    def col(k):                                         # packed (C,1) vectors
        return cols_ref[k]

    def conv(xs, w, m, shifts):
        """'same' (dilated) conv: roll+mask taps written into the shared VMEM
        LHS scratch (no concatenate copy) -> one MXU matmul.
        xs: list of (Ci, HW) f32 parts (channel-concatenated input);
        w: (Cout, T*sum(Ci)) bf16; m: (T, HW) f32 0/1 border mask."""
        cin = sum(p.shape[0] for p in xs)
        for t, s in enumerate(shifts):
            mrow = m[t:t + 1, :]
            off = t * cin
            for p in xs:
                tap = pltpu.roll(p, s, 1) if s else p
                lhs_ref[off:off + p.shape[0], :] = tap * mrow
                off += p.shape[0]
        rows = len(shifts) * cin
        lhs = lhs_ref[0:rows, :].astype(jnp.bfloat16)
        return jnp.dot(w, lhs, preferred_element_type=jnp.float32)

    # ---- Block: conv1 -> ReLU -> +x -> conv2 -------------------------------
    r = jnp.maximum(conv([x], w9_ref[0], m1, t1) + col(0), 0.0) + x
    xc = conv([r], w9_ref[1], m1, t1) + col(1)          # input of CA

    # ---- ChannelAttention ---------------------------------------------------
    a = conv([xc], w9_ref[2], m1, t1) + col(2)          # conv1a + BN shift
    a = jnp.where(a >= 0.0, a, col(3) * a)              # PReLU (per-channel)
    c1 = conv([a], w9_ref[3], m1, t1) + col(4)          # conv1b + BN shift
    avg = jnp.mean(c1, axis=1, keepdims=True)           # global avg pool (C,1)
    mx = jnp.max(c1, axis=1, keepdims=True)             # global max pool (C,1)
    sel = jax.lax.broadcasted_iota(jnp.int32, (C, 2), 1)
    pooled = jnp.where(sel == 0, avg, mx)               # (C,2): [avg | max]
    w2a = ca_gate_ref[0:C, :]                           # (number, C) f32
    w2b = ca_gate_ref[C:2 * C, :]                       # (C, number) f32
    h = jnp.maximum(jnp.dot(w2a, pooled,
                            preferred_element_type=jnp.float32), 0.0)
    g = jax.nn.sigmoid(jnp.dot(w2b, h,
                               preferred_element_type=jnp.float32))  # (C, 2)
    ga = jnp.sum(jnp.where(sel == 0, g, 0.0), axis=1, keepdims=True)  # (C,1)
    gm = jnp.sum(jnp.where(sel == 1, g, 0.0), axis=1, keepdims=True)  # (C,1)
    # conv3 (1x1 over concat[ga*xc, gm*xc]) as ONE stacked matmul, LHS built
    # directly in the scratch (no bf16 temporaries, no concatenate).
    lhs_ref[0:C, :] = ga * xc
    lhs_ref[C:2 * C, :] = gm * xc
    y = jnp.dot(ca_w3_ref[...], lhs_ref[0:2 * C, :].astype(jnp.bfloat16),
                preferred_element_type=jnp.float32) + col(5)

    # ---- MSSpatialAttention (+ Block residual) ------------------------------
    x0 = y
    a = conv([x0], w9_ref[4], m1, t1) + col(6)          # conv1a + BN shift
    a = jnp.where(a >= 0.0, a, col(7) * a)              # PReLU
    x1 = conv([a], w9_ref[5], m1, t1) + col(8)          # conv1b + BN shift
    x2 = conv([x1], w9_ref[6], m3, t3)                  # dilated 3
    x3 = conv([x1], w9_ref[7], m5, t5)                  # dilated 5
    x4 = conv([x1], w9_ref[8], m7, t7)                  # dilated 7
    # conv5a: 3x3 (4C -> 1); taps of [x1|x2|x3|x4] written straight into the
    # scratch (no (4C,HW) `se` concatenation materialized).
    s = jnp.maximum(conv([x1, x2, x3, x4], ms_w5a_ref[...], m1, t1), 0.0)
    w5b = col(9)[0:1, 0:1]                              # (1,1) scalar weight
    gate_map = jax.nn.sigmoid(s * w5b)                  # (1, HW)
    out = gate_map * x0 + x                             # spatial gate + block res
    o_ref[...] = out.reshape(o_ref.shape).astype(o_ref.dtype)


def _block_call(pb, x, masks, t1, t3, t5, t7, C, HW):
    N = x.shape[0]
    kern = functools.partial(_block_kernel, C=C, t1=t1, t3=t3, t5=t5, t7=t7)
    zero3 = lambda n: (0, 0, 0)
    zero2 = lambda n: (0, 0)
    return pl.pallas_call(
        kern,
        out_shape=jax.ShapeDtypeStruct((N, C, HW), jnp.bfloat16),
        grid=(N,),
        in_specs=[
            pl.BlockSpec((1, C, HW), lambda n: (n, 0, 0)),   # x (block input)
            pl.BlockSpec((4, 9, HW), zero3),                 # border masks
            pl.BlockSpec((9, C, 9 * C), zero3),              # 9 conv matrices
            pl.BlockSpec((2 * C, C), zero2),                 # CA gate MLP (f32)
            pl.BlockSpec((C, 2 * C), zero2),                 # CA conv3 stacked
            pl.BlockSpec((1, 36 * C), zero2),                # MSPA conv5a
            pl.BlockSpec((NCOL, C, 1), zero3),               # packed columns
        ],
        out_specs=pl.BlockSpec((1, C, HW), lambda n: (n, 0, 0)),
        scratch_shapes=[pltpu.VMEM((36 * C, HW), jnp.float32)],  # shared LHS
        compiler_params=pltpu.CompilerParams(
            dimension_semantics=("parallel",)),
    )(x, masks, pb["w9"], pb["ca_gate"], pb["ca_w3"], pb["ms_w5a"], pb["cols"])


# ----------------------------------------------------------------------------
# Kernel 2: Group tail conv (conv + bias + group residual)
# ----------------------------------------------------------------------------

def _tail_kernel(x_ref, res_ref, w_ref, b_ref, m_ref, o_ref, lhs_ref,
                 *, shifts):
    x = x_ref[0].astype(jnp.float32)                    # (C, HW)
    m = m_ref[...]
    cin = x.shape[0]
    for t, s in enumerate(shifts):
        tap = pltpu.roll(x, s, 1) if s else x
        lhs_ref[t * cin:(t + 1) * cin, :] = tap * m[t:t + 1, :]
    rows = len(shifts) * cin
    y = jnp.dot(w_ref[...], lhs_ref[0:rows, :].astype(jnp.bfloat16),
                preferred_element_type=jnp.float32) + b_ref[...]
    y = y + res_ref[0].astype(jnp.float32)              # group residual
    o_ref[...] = y.reshape(o_ref.shape).astype(o_ref.dtype)


def _tail_call(x, res, w_flat, b_col, mask, shifts, C, HW):
    N = x.shape[0]
    T = len(shifts)
    kern = functools.partial(_tail_kernel, shifts=shifts)
    return pl.pallas_call(
        kern,
        out_shape=jax.ShapeDtypeStruct((N, C, HW), jnp.bfloat16),
        grid=(N,),
        in_specs=[
            pl.BlockSpec((1, C, HW), lambda n: (n, 0, 0)),
            pl.BlockSpec((1, C, HW), lambda n: (n, 0, 0)),
            pl.BlockSpec((C, T * C), lambda n: (0, 0)),
            pl.BlockSpec((C, 1), lambda n: (0, 0)),
            pl.BlockSpec((T, HW), lambda n: (0, 0)),
        ],
        out_specs=pl.BlockSpec((1, C, HW), lambda n: (n, 0, 0)),
        scratch_shapes=[pltpu.VMEM((T * C, HW), jnp.float32)],
        compiler_params=pltpu.CompilerParams(
            dimension_semantics=("parallel",)),
    )(x, res, w_flat, b_col, mask)


# ----------------------------------------------------------------------------
# Parameter init (deterministic, PyTorch-default-like; raw weights kept HWIO)
# ----------------------------------------------------------------------------

def _uniform(key, shape, bound):
    return jax.random.uniform(key, shape, jnp.float32, -bound, bound)


def init_conv(key, kh, kw, cin, cout, bias=True):
    kw_, kb = jax.random.split(key)
    bound = 1.0 / np.sqrt(cin * kh * kw)
    w = _uniform(kw_, (kh, kw, cin, cout), bound)
    b = _uniform(kb, (cout,), bound) if bias else None
    return w, b


def bn_affine(c, eps=1e-5):
    # Fresh BatchNorm2d, inference mode: gamma=1, beta=0, mean=0, var=1.
    gamma = jnp.ones((c,), jnp.float32)
    beta = jnp.zeros((c,), jnp.float32)
    rm = jnp.zeros((c,), jnp.float32)
    rv = jnp.ones((c,), jnp.float32)
    scale = gamma / jnp.sqrt(rv + eps)
    shift = beta - rm * scale
    return scale, shift


def init_ca(key, nc, number):
    ks = jax.random.split(key, 5)
    w1a, b1a = init_conv(ks[0], 3, 3, nc, nc, bias=True)
    s1a, h1a = bn_affine(nc)
    w1b, b1b = init_conv(ks[1], 3, 3, nc, nc, bias=True)
    s1b, h1b = bn_affine(nc)
    w2a, _ = init_conv(ks[2], 1, 1, nc, number, bias=False)
    w2b, _ = init_conv(ks[3], 1, 1, number, nc, bias=False)
    w3, b3 = init_conv(ks[4], 1, 1, 2 * nc, nc, bias=True)
    return dict(w1a=w1a, s1a=s1a, sh1a=s1a * b1a + h1a,  # conv bias folded in
                alpha1=jnp.full((nc,), 0.25, jnp.float32),
                w1b=w1b, s1b=s1b, sh1b=s1b * b1b + h1b,
                w2a=w2a, w2b=w2b, w3=w3, b3=b3)


def init_mspa(key, nc, number):
    ks = jax.random.split(key, 7)
    w1a, _ = init_conv(ks[0], 3, 3, nc, nc, bias=False)
    s1a, h1a = bn_affine(nc)
    w1b, _ = init_conv(ks[1], 3, 3, nc, number, bias=False)
    s1b, h1b = bn_affine(number)
    w2, _ = init_conv(ks[2], 3, 3, number, number, bias=False)
    w3, _ = init_conv(ks[3], 3, 3, number, number, bias=False)
    w4, _ = init_conv(ks[4], 3, 3, number, number, bias=False)
    w5a, _ = init_conv(ks[5], 3, 3, number * 4, 1, bias=False)
    w5b, _ = init_conv(ks[6], 1, 1, 1, 1, bias=False)
    return dict(w1a=w1a, s1a=s1a, sh1a=h1a,
                alpha1=jnp.full((nc,), 0.25, jnp.float32),
                w1b=w1b, s1b=s1b, sh1b=h1b,
                w2=w2, w3=w3, w4=w4, w5a=w5a, w5b=w5b)


def init_block(key, dim):
    ks = jax.random.split(key, 4)
    c1_w, c1_b = init_conv(ks[0], 3, 3, dim, dim, bias=True)
    c2_w, c2_b = init_conv(ks[1], 3, 3, dim, dim, bias=True)
    return dict(c1_w=c1_w, c1_b=c1_b, c2_w=c2_w, c2_b=c2_b,
                ca=init_ca(ks[2], dim, dim), mspa=init_mspa(ks[3], dim, dim))


def init_group(key, dim, kernel_size, blocks):
    ks = jax.random.split(key, blocks + 1)
    bps = [init_block(ks[i], dim) for i in range(blocks)]
    tw, tb = init_conv(ks[-1], kernel_size, kernel_size, dim, dim, bias=True)
    return dict(blocks=bps, tail_w=tw, tail_b=tb)


# ----------------------------------------------------------------------------
# One-time weight packing (all transposes / reshapes / bf16 casts happen here,
# never inside the jitted forward).  Block always uses number == dim.
# ----------------------------------------------------------------------------

def pack_block(bp, dim):
    C = dim
    ca, ms = bp["ca"], bp["mspa"]
    # The nine (C, 9C) conv matrices of a block, stacked along a leading axis.
    w9 = jnp.stack([
        _w_flat(bp["c1_w"]),                 # 0: block conv1
        _w_flat(bp["c2_w"]),                 # 1: block conv2
        _w_flat(ca["w1a"], ca["s1a"]),       # 2: CA conv1a (BN scale folded)
        _w_flat(ca["w1b"], ca["s1b"]),       # 3: CA conv1b
        _w_flat(ms["w1a"], ms["s1a"]),       # 4: MSPA conv1a
        _w_flat(ms["w1b"], ms["s1b"]),       # 5: MSPA conv1b
        _w_flat(ms["w2"]),                   # 6: MSPA dilated 3
        _w_flat(ms["w3"]),                   # 7: MSPA dilated 5
        _w_flat(ms["w4"]),                   # 8: MSPA dilated 7
    ], axis=0)                               # (9, C, 9C) bf16
    # CA gate MLP weights (OI), stacked: rows [0:C)=w2a, [C:2C)=w2b.
    ca_gate = jnp.concatenate(
        [jnp.transpose(ca["w2a"][0, 0]),     # (number, C)
         jnp.transpose(ca["w2b"][0, 0])],    # (C, number)
        axis=0).astype(jnp.float32)          # (2C, C)
    # CA conv3 1x1 on concat([ca_avg, ca_max]) -> stacked (C, 2C) bf16.
    w3 = ca["w3"][0, 0]                      # (2C, C)  (in, out)
    ca_w3 = jnp.concatenate(
        [jnp.transpose(w3[:C, :]), jnp.transpose(w3[C:, :])],
        axis=1).astype(jnp.bfloat16)         # (C, 2C)
    ms_w5a = _w_flat(ms["w5a"])              # (1, 36C) bf16
    # All per-channel column vectors packed into one array.
    cols = jnp.stack([
        bp["c1_b"], bp["c2_b"],
        ca["sh1a"], ca["alpha1"], ca["sh1b"], ca["b3"],
        ms["sh1a"], ms["alpha1"], ms["sh1b"],
        jnp.zeros((C,), jnp.float32).at[0].set(ms["w5b"].reshape(())),
    ], axis=0).astype(jnp.float32).reshape(NCOL, C, 1)
    return dict(w9=w9, ca_gate=ca_gate, ca_w3=ca_w3, ms_w5a=ms_w5a, cols=cols)


def pack_group(raw, dim):
    return dict(blocks=[pack_block(bp, dim) for bp in raw["blocks"]],
                tail_w=_w_flat(raw["tail_w"]),
                tail_b=_col(raw["tail_b"]))


# ----------------------------------------------------------------------------
# Forward: 1 pallas_call per Block + 1 for the tail conv
# ----------------------------------------------------------------------------

def group_forward(params, x):
    N, C, H, W = x.shape
    HW = H * W
    t1, m1 = _taps(H, W, 3, 3, 1)
    t3, m3 = _taps(H, W, 3, 3, 3)
    t5, m5 = _taps(H, W, 3, 3, 5)
    t7, m7 = _taps(H, W, 3, 3, 7)
    masks = jnp.asarray(np.stack([m1, m3, m5, m7], axis=0))   # (4, 9, HW)

    x0 = x.reshape(N, C, HW).astype(jnp.bfloat16)   # bf16 at the HBM boundary
    r = x0
    for pb in params["blocks"]:
        r = _block_call(pb, r, masks, t1, t3, t5, t7, C, HW)

    tail_w = params["tail_w"]                        # (C, kk*kk*C) bf16
    kk = int(round(np.sqrt(tail_w.shape[1] // C)))
    tt, tm = _taps(H, W, kk, kk, 1)
    r = _tail_call(r, x0, tail_w, params["tail_b"], jnp.asarray(tm), tt, C, HW)
    return r.reshape(N, C, H, W).astype(x.dtype)


# ----------------------------------------------------------------------------

if __name__ == "__main__":
    key = jax.random.PRNGKey(0)
    kx, kp = jax.random.split(key)

    N, C, H, W = 2, 8, 16, 16                 # dim = C (PyTorch NCHW layout)
    x = jax.random.normal(kx, (N, C, H, W), jnp.float32)

    raw_params = init_group(kp, dim=C, kernel_size=3, blocks=2)
    params = pack_group(raw_params, C)        # one-time weight packing

    fwd = jax.jit(group_forward)
    out = jax.block_until_ready(fwd(params, x))

    assert out.shape == (N, C, H, W)
    assert bool(jnp.isfinite(out).all())
    print("KERNEL_OK")
</pallas_src>

<mosaic_0001>
module attributes {stable_mosaic.version = 11 : i64} {
  func.func @_tail_kernel(%arg0: i32, %arg1: memref<1x8x256xbf16, #tpu.memory_space<vmem>>, %arg2: memref<1x8x256xbf16, #tpu.memory_space<vmem>>, %arg3: memref<8x72xbf16, #tpu.memory_space<vmem>>, %arg4: memref<8x1xf32, #tpu.memory_space<vmem>>, %arg5: memref<9x256xf32, #tpu.memory_space<vmem>>, %arg6: memref<1x8x256xbf16, #tpu.memory_space<vmem>>, %arg7: memref<72x256xf32, #tpu.memory_space<vmem>>) attributes {dimension_semantics = [#tpu.dimension_semantics<parallel>], iteration_bounds = array<i64: 2>, scalar_prefetch = 0 : i64, scratch_operands = 1 : i64, tpu.core_type = #tpu.core_type<tc>, window_params = [{transform_indices = @transform_0, window_bounds = array<i64: 1, 8, 256>}, {transform_indices = @transform_1, window_bounds = array<i64: 1, 8, 256>}, {pipeline_mode = #tpu.pipeline_mode<synchronous>, transform_indices = @transform_2, window_bounds = array<i64: 8, 72>}, {pipeline_mode = #tpu.pipeline_mode<synchronous>, transform_indices = @transform_3, window_bounds = array<i64: 8, 1>}, {pipeline_mode = #tpu.pipeline_mode<synchronous>, transform_indices = @transform_4, window_bounds = array<i64: 9, 256>}, {transform_indices = @transform_5, window_bounds = array<i64: 1, 8, 256>}]} {
    %c0 = arith.constant 0 : index
    %c0_0 = arith.constant 0 : index
    %c0_1 = arith.constant 0 : index
    %0 = vector.load %arg1[%c0, %c0_0, %c0_1] : memref<1x8x256xbf16, #tpu.memory_space<vmem>>, vector<1x8x256xbf16>
    %1 = vector.shape_cast %0 : vector<1x8x256xbf16> to vector<8x256xbf16>
    %2 = arith.extf %1 : vector<8x256xbf16> to vector<8x256xf32>
    %c0_2 = arith.constant 0 : index
    %c0_3 = arith.constant 0 : index
    %3 = vector.load %arg5[%c0_2, %c0_3] : memref<9x256xf32, #tpu.memory_space<vmem>>, vector<9x256xf32>
    %c17_i32 = arith.constant 17 : i32
    %4 = tpu.dynamic_rotate %2 by %c17_i32 dim 1 : vector<8x256xf32>, i32 -> vector<8x256xf32>
    %5 = vector.extract_strided_slice %3 {offsets = [0, 0], sizes = [1, 256], strides = [1, 1]} : vector<9x256xf32> to vector<1x256xf32>
    %6 = vector.broadcast %5 : vector<1x256xf32> to vector<8x256xf32>
    %7 = arith.mulf %4, %6 : vector<8x256xf32>
    %c0_4 = arith.constant 0 : index
    %c0_5 = arith.constant 0 : index
    %8 = vector.load %arg7[%c0_4, %c0_5] : memref<72x256xf32, #tpu.memory_space<vmem>>, vector<8x256xf32>
    tpu.vector_store %arg7[%c0_4, %c0_5], %7 {strides = array<i32>} : memref<72x256xf32, #tpu.memory_space<vmem>>, vector<8x256xf32>,
    %c16_i32 = arith.constant 16 : i32
    %9 = tpu.dynamic_rotate %2 by %c16_i32 dim 1 : vector<8x256xf32>, i32 -> vector<8x256xf32>
    %10 = vector.extract_strided_slice %3 {offsets = [1, 0], sizes = [1, 256], strides = [1, 1]} : vector<9x256xf32> to vector<1x256xf32>
    %11 = vector.broadcast %10 : vector<1x256xf32> to vector<8x256xf32>
    %12 = arith.mulf %9, %11 : vector<8x256xf32>
    %c8 = arith.constant 8 : index
    %c0_6 = arith.constant 0 : index
    %13 = vector.load %arg7[%c8, %c0_6] : memref<72x256xf32, #tpu.memory_space<vmem>>, vector<8x256xf32>
    tpu.vector_store %arg7[%c8, %c0_6], %12 {strides = array<i32>} : memref<72x256xf32, #tpu.memory_space<vmem>>, vector<8x256xf32>,
    %c15_i32 = arith.constant 15 : i32
    %14 = tpu.dynamic_rotate %2 by %c15_i32 dim 1 : vector<8x256xf32>, i32 -> vector<8x256xf32>
    %15 = vector.extract_strided_slice %3 {offsets = [2, 0], sizes = [1, 256], strides = [1, 1]} : vector<9x256xf32> to vector<1x256xf32>
    %16 = vector.broadcast %15 : vector<1x256xf32> to vector<8x256xf32>
    %17 = arith.mulf %14, %16 : vector<8x256xf32>
    %c16 = arith.constant 16 : index
    %c0_7 = arith.constant 0 : index
    %18 = vector.load %arg7[%c16, %c0_7] : memref<72x256xf32, #tpu.memory_space<vmem>>, vector<8x256xf32>
    tpu.vector_store %arg7[%c16, %c0_7], %17 {strides = array<i32>} : memref<72x256xf32, #tpu.memory_space<vmem>>, vector<8x256xf32>,
    %c1_i32 = arith.constant 1 : i32
    %19 = tpu.dynamic_rotate %2 by %c1_i32 dim 1 : vector<8x256xf32>, i32 -> vector<8x256xf32>
    %20 = vector.extract_strided_slice %3 {offsets = [3, 0], sizes = [1, 256], strides = [1, 1]} : vector<9x256xf32> to vector<1x256xf32>
    %21 = vector.broadcast %20 : vector<1x256xf32> to vector<8x256xf32>
    %22 = arith.mulf %19, %21 : vector<8x256xf32>
    %c24 = arith.constant 24 : index
    %c0_8 = arith.constant 0 : index
    %23 = vector.load %arg7[%c24, %c0_8] : memref<72x256xf32, #tpu.memory_space<vmem>>, vector<8x256xf32>
    tpu.vector_store %arg7[%c24, %c0_8], %22 {strides = array<i32>} : memref<72x256xf32, #tpu.memory_space<vmem>>, vector<8x256xf32>,
    %24 = vector.extract_strided_slice %3 {offsets = [4, 0], sizes = [1, 256], strides = [1, 1]} : vector<9x256xf32> to vector<1x256xf32>
    %25 = vector.broadcast %24 : vector<1x256xf32> to vector<8x256xf32>
    %26 = arith.mulf %2, %25 : vector<8x256xf32>
    %c32 = arith.constant 32 : index
    %c0_9 = arith.constant 0 : index
    %27 = vector.load %arg7[%c32, %c0_9] : memref<72x256xf32, #tpu.memory_space<vmem>>, vector<8x256xf32>
    tpu.vector_store %arg7[%c32, %c0_9], %26 {strides = array<i32>} : memref<72x256xf32, #tpu.memory_space<vmem>>, vector<8x256xf32>,
    %c255_i32 = arith.constant 255 : i32
    %28 = tpu.dynamic_rotate %2 by %c255_i32 dim 1 : vector<8x256xf32>, i32 -> vector<8x256xf32>
    %29 = vector.extract_strided_slice %3 {offsets = [5, 0], sizes = [1, 256], strides = [1, 1]} : vector<9x256xf32> to vector<1x256xf32>
    %30 = vector.broadcast %29 : vector<1x256xf32> to vector<8x256xf32>
    %31 = arith.mulf %28, %30 : vector<8x256xf32>
    %c40 = arith.constant 40 : index
    %c0_10 = arith.constant 0 : index
    %32 = vector.load %arg7[%c40, %c0_10] : memref<72x256xf32, #tpu.memory_space<vmem>>, vector<8x256xf32>
    tpu.vector_store %arg7[%c40, %c0_10], %31 {strides = array<i32>} : memref<72x256xf32, #tpu.memory_space<vmem>>, vector<8x256xf32>,
    %c241_i32 = arith.constant 241 : i32
    %33 = tpu.dynamic_rotate %2 by %c241_i32 dim 1 : vector<8x256xf32>, i32 -> vector<8x256xf32>
    %34 = vector.extract_strided_slice %3 {offsets = [6, 0], sizes = [1, 256], strides = [1, 1]} : vector<9x256xf32> to vector<1x256xf32>
    %35 = vector.broadcast %34 : vector<1x256xf32> to vector<8x256xf32>
    %36 = arith.mulf %33, %35 : vector<8x256xf32>
    %c48 = arith.constant 48 : index
    %c0_11 = arith.constant 0 : index
    %37 = vector.load %arg7[%c48, %c0_11] : memref<72x256xf32, #tpu.memory_space<vmem>>, vector<8x256xf32>
    tpu.vector_store %arg7[%c48, %c0_11], %36 {strides = array<i32>} : memref<72x256xf32, #tpu.memory_space<vmem>>, vector<8x256xf32>,
    %c240_i32 = arith.constant 240 : i32
    %38 = tpu.dynamic_rotate %2 by %c240_i32 dim 1 : vector<8x256xf32>, i32 -> vector<8x256xf32>
    %39 = vector.extract_strided_slice %3 {offsets = [7, 0], sizes = [1, 256], strides = [1, 1]} : vector<9x256xf32> to vector<1x256xf32>
    %40 = vector.broadcast %39 : vector<1x256xf32> to vector<8x256xf32>
    %41 = arith.mulf %38, %40 : vector<8x256xf32>
    %c56 = arith.constant 56 : index
    %c0_12 = arith.constant 0 : index
    %42 = vector.load %arg7[%c56, %c0_12] : memref<72x256xf32, #tpu.memory_space<vmem>>, vector<8x256xf32>
    tpu.vector_store %arg7[%c56, %c0_12], %41 {strides = array<i32>} : memref<72x256xf32, #tpu.memory_space<vmem>>, vector<8x256xf32>,
    %c239_i32 = arith.constant 239 : i32
    %43 = tpu.dynamic_rotate %2 by %c239_i32 dim 1 : vector<8x256xf32>, i32 -> vector<8x256xf32>
    %44 = vector.extract_strided_slice %3 {offsets = [8, 0], sizes = [1, 256], strides = [1, 1]} : vector<9x256xf32> to vector<1x256xf32>
    %45 = vector.broadcast %44 : vector<1x256xf32> to vector<8x256xf32>
    %46 = arith.mulf %43, %45 : vector<8x256xf32>
    %c64 = arith.constant 64 : index
    %c0_13 = arith.constant 0 : index
    %47 = vector.load %arg7[%c64, %c0_13] : memref<72x256xf32, #tpu.memory_space<vmem>>, vector<8x256xf32>
    tpu.vector_store %arg7[%c64, %c0_13], %46 {strides = array<i32>} : memref<72x256xf32, #tpu.memory_space<vmem>>, vector<8x256xf32>,
    %c0_14 = arith.constant 0 : index
    %c0_15 = arith.constant 0 : index
    %48 = vector.load %arg3[%c0_14, %c0_15] : memref<8x72xbf16, #tpu.memory_space<vmem>>, vector<8x72xbf16>
    %c0_16 = arith.constant 0 : index
    %c0_17 = arith.constant 0 : index
    %49 = vector.load %arg7[%c0_16, %c0_17] : memref<72x256xf32, #tpu.memory_space<vmem>>, vector<72x256xf32>
    %50 = arith.truncf %49 : vector<72x256xf32> to vector<72x256xbf16>
    %cst = arith.constant dense<0.000000e+00> : vector<8x256xf32>
    %51 = tpu.matmul %48, %50, %cst {dimension_numbers = #tpu.dot_dimension_numbers<[1], [0], [0], [1], [0, 0, 1, 1], [], []>} : vector<8x72xbf16>, vector<72x256xbf16>, vector<8x256xf32> -> vector<8x256xf32>
    %c0_18 = arith.constant 0 : index
    %c0_19 = arith.constant 0 : index
    %52 = vector.load %arg4[%c0_18, %c0_19] : memref<8x1xf32, #tpu.memory_space<vmem>>, vector<8x1xf32>
    %53 = vector.broadcast %52 : vector<8x1xf32> to vector<8x256xf32>
    %54 = arith.addf %51, %53 : vector<8x256xf32>
    %c0_20 = arith.constant 0 : index
    %c0_21 = arith.constant 0 : index
    %c0_22 = arith.constant 0 : index
    %55 = vector.load %arg2[%c0_20, %c0_21, %c0_22] : memref<1x8x256xbf16, #tpu.memory_space<vmem>>, vector<1x8x256xbf16>
    %56 = vector.shape_cast %55 : vector<1x8x256xbf16> to vector<8x256xbf16>
    %57 = arith.extf %56 : vector<8x256xbf16> to vector<8x256xf32>
    %58 = arith.addf %54, %57 : vector<8x256xf32>
    %59 = vector.shape_cast %58 : vector<8x256xf32> to vector<1x8x256xf32>
    %60 = arith.truncf %59 : vector<1x8x256xf32> to vector<1x8x256xbf16>
    %c0_23 = arith.constant 0 : index
    %c0_24 = arith.constant 0 : index
    %c0_25 = arith.constant 0 : index
    %61 = vector.load %arg6[%c0_23, %c0_24, %c0_25] : memref<1x8x256xbf16, #tpu.memory_space<vmem>>, vector<1x8x256xbf16>
    tpu.vector_store %arg6[%c0_23, %c0_24, %c0_25], %60 {strides = array<i32>} : memref<1x8x256xbf16, #tpu.memory_space<vmem>>, vector<1x8x256xbf16>,
    return
  }
  func.func @transform_0(%arg0: i32) -> (i32, i32, i32) {
    %c0_i32 = arith.constant 0 : i32
    %c0_i32_0 = arith.constant 0 : i32
    %c0_i32_1 = arith.constant 0 : i32
    return %arg0, %c0_i32, %c0_i32_0 : i32, i32, i32
  }
  func.func @transform_1(%arg0: i32) -> (i32, i32, i32) {
    %c0_i32 = arith.constant 0 : i32
    %c0_i32_0 = arith.constant 0 : i32
    %c0_i32_1 = arith.constant 0 : i32
    return %arg0, %c0_i32, %c0_i32_0 : i32, i32, i32
  }
  func.func @transform_2(%arg0: i32) -> (i32, i32) {
    %c0_i32 = arith.constant 0 : i32
    %c0_i32_0 = arith.constant 0 : i32
    %c0_i32_1 = arith.constant 0 : i32
    return %c0_i32, %c0_i32_0 : i32, i32
  }
  func.func @transform_3(%arg0: i32) -> (i32, i32) {
    %c0_i32 = arith.constant 0 : i32
    %c0_i32_0 = arith.constant 0 : i32
    %c0_i32_1 = arith.constant 0 : i32
    return %c0_i32, %c0_i32_0 : i32, i32
  }
  func.func @transform_4(%arg0: i32) -> (i32, i32) {
    %c0_i32 = arith.constant 0 : i32
    %c0_i32_0 = arith.constant 0 : i32
    %c0_i32_1 = arith.constant 0 : i32
    return %c0_i32, %c0_i32_0 : i32, i32
  }
  func.func @transform_5(%arg0: i32) -> (i32, i32, i32) {
    %c0_i32 = arith.constant 0 : i32
    %c0_i32_0 = arith.constant 0 : i32
    %c0_i32_1 = arith.constant 0 : i32
    return %arg0, %c0_i32, %c0_i32_0 : i32, i32, i32
  }
}

module attributes {stable_mosaic.version = 11 : i64} {
  func.func @_block_kernel(%arg0: i32, %arg1: memref<1x8x256xbf16, #tpu.memory_space<vmem>>, %arg2: memref<4x9x256xf32, #tpu.memory_space<vmem>>, %arg3: memref<9x8x72xbf16, #tpu.memory_space<vmem>>, %arg4: memref<16x8xf32, #tpu.memory_space<vmem>>, %arg5: memref<8x16xbf16, #tpu.memory_space<vmem>>, %arg6: memref<1x288xbf16, #tpu.memory_space<vmem>>, %arg7: memref<10x8x1xf32, #tpu.memory_space<vmem>>, %arg8: memref<1x8x256xbf16, #tpu.memory_space<vmem>>, %arg9: memref<288x256xf32, #tpu.memory_space<vmem>>) attributes {dimension_semantics = [#tpu.dimension_semantics<parallel>], iteration_bounds = array<i64: 2>, scalar_prefetch = 0 : i64, scratch_operands = 1 : i64, tpu.core_type = #tpu.core_type<tc>, window_params = [{transform_indices = @transform_0, window_bounds = array<i64: 1, 8, 256>}, {pipeline_mode = #tpu.pipeline_mode<synchronous>, transform_indices = @transform_1, window_bounds = array<i64: 4, 9, 256>}, {pipeline_mode = #tpu.pipeline_mode<synchronous>, transform_indices = @transform_2, window_bounds = array<i64: 9, 8, 72>}, {pipeline_mode = #tpu.pipeline_mode<synchronous>, transform_indices = @transform_3, window_bounds = array<i64: 16, 8>}, {pipeline_mode = #tpu.pipeline_mode<synchronous>, transform_indices = @transform_4, window_bounds = array<i64: 8, 16>}, {pipeline_mode = #tpu.pipeline_mode<synchronous>, transform_indices = @transform_5, window_bounds = array<i64: 1, 288>}, {pipeline_mode = #tpu.pipeline_mode<synchronous>, transform_indices = @transform_6, window_bounds = array<i64: 10, 8, 1>}, {transform_indices = @transform_7, window_bounds = array<i64: 1, 8, 256>}]} {
    %c0 = arith.constant 0 : index
    %c0_0 = arith.constant 0 : index
    %c0_1 = arith.constant 0 : index
    %0 = vector.load %arg1[%c0, %c0_0, %c0_1] : memref<1x8x256xbf16, #tpu.memory_space<vmem>>, vector<1x8x256xbf16>
    %1 = vector.shape_cast %0 : vector<1x8x256xbf16> to vector<8x256xbf16>
    %2 = arith.extf %1 : vector<8x256xbf16> to vector<8x256xf32>
    %c0_2 = arith.constant 0 : index
    %c0_3 = arith.constant 0 : index
    %c0_4 = arith.constant 0 : index
    %3 = vector.load %arg2[%c0_2, %c0_3, %c0_4] : memref<4x9x256xf32, #tpu.memory_space<vmem>>, vector<1x9x256xf32>
    %4 = vector.shape_cast %3 : vector<1x9x256xf32> to vector<9x256xf32>
    %c1 = arith.constant 1 : index
    %c0_5 = arith.constant 0 : index
    %c0_6 = arith.constant 0 : index
    %5 = vector.load %arg2[%c1, %c0_5, %c0_6] : memref<4x9x256xf32, #tpu.memory_space<vmem>>, vector<1x9x256xf32>
    %6 = vector.shape_cast %5 : vector<1x9x256xf32> to vector<9x256xf32>
    %c2 = arith.constant 2 : index
    %c0_7 = arith.constant 0 : index
    %c0_8 = arith.constant 0 : index
    %7 = vector.load %arg2[%c2, %c0_7, %c0_8] : memref<4x9x256xf32, #tpu.memory_space<vmem>>, vector<1x9x256xf32>
    %8 = vector.shape_cast %7 : vector<1x9x256xf32> to vector<9x256xf32>
    %c3 = arith.constant 3 : index
    %c0_9 = arith.constant 0 : index
    %c0_10 = arith.constant 0 : index
    %9 = vector.load %arg2[%c3, %c0_9, %c0_10] : memref<4x9x256xf32, #tpu.memory_space<vmem>>, vector<1x9x256xf32>
    %10 = vector.shape_cast %9 : vector<1x9x256xf32> to vector<9x256xf32>
    %c0_11 = arith.constant 0 : index
    %c0_12 = arith.constant 0 : index
    %c0_13 = arith.constant 0 : index
    %11 = vector.load %arg3[%c0_11, %c0_12, %c0_13] : memref<9x8x72xbf16, #tpu.memory_space<vmem>>, vector<1x8x72xbf16>
    %12 = vector.shape_cast %11 : vector<1x8x72xbf16> to vector<8x72xbf16>
    %13 = vector.extract_strided_slice %4 {offsets = [0, 0], sizes = [1, 256], strides = [1, 1]} : vector<9x256xf32> to vector<1x256xf32>
    %c17_i32 = arith.constant 17 : i32
    %14 = tpu.dynamic_rotate %2 by %c17_i32 dim 1 : vector<8x256xf32>, i32 -> vector<8x256xf32>
    %15 = vector.broadcast %13 : vector<1x256xf32> to vector<8x256xf32>
    %16 = arith.mulf %14, %15 : vector<8x256xf32>
    %c0_14 = arith.constant 0 : index
    %c0_15 = arith.constant 0 : index
    %17 = vector.load %arg9[%c0_14, %c0_15] : memref<288x256xf32, #tpu.memory_space<vmem>>, vector<8x256xf32>
    tpu.vector_store %arg9[%c0_14, %c0_15], %16 {strides = array<i32>} : memref<288x256xf32, #tpu.memory_space<vmem>>, vector<8x256xf32>,
    %18 = vector.extract_strided_slice %4 {offsets = [1, 0], sizes = [1, 256], strides = [1, 1]} : vector<9x256xf32> to vector<1x256xf32>
    %c16_i32 = arith.constant 16 : i32
    %19 = tpu.dynamic_rotate %2 by %c16_i32 dim 1 : vector<8x256xf32>, i32 -> vector<8x256xf32>
    %20 = vector.broadcast %18 : vector<1x256xf32> to vector<8x256xf32>
    %21 = arith.mulf %19, %20 : vector<8x256xf32>
    %c8 = arith.constant 8 : index
    %c0_16 = arith.constant 0 : index
    %22 = vector.load %arg9[%c8, %c0_16] : memref<288x256xf32, #tpu.memory_space<vmem>>, vector<8x256xf32>
    tpu.vector_store %arg9[%c8, %c0_16], %21 {strides = array<i32>} : memref<288x256xf32, #tpu.memory_space<vmem>>, vector<8x256xf32>,
    %23 = vector.extract_strided_slice %4 {offsets = [2, 0], sizes = [1, 256], strides = [1, 1]} : vector<9x256xf32> to vector<1x256xf32>
    %c15_i32 = arith.constant 15 : i32
    %24 = tpu.dynamic_rotate %2 by %c15_i32 dim 1 : vector<8x256xf32>, i32 -> vector<8x256xf32>
    %25 = vector.broadcast %23 : vector<1x256xf32> to vector<8x256xf32>
    %26 = arith.mulf %24, %25 : vector<8x256xf32>
    %c16 = arith.constant 16 : index
    %c0_17 = arith.constant 0 : index
    %27 = vector.load %arg9[%c16, %c0_17] : memref<288x256xf32, #tpu.memory_space<vmem>>, vector<8x256xf32>
    tpu.vector_store %arg9[%c16, %c0_17], %26 {strides = array<i32>} : memref<288x256xf32, #tpu.memory_space<vmem>>, vector<8x256xf32>,
    %28 = vector.extract_strided_slice %4 {offsets = [3, 0], sizes = [1, 256], strides = [1, 1]} : vector<9x256xf32> to vector<1x256xf32>
    %c1_i32 = arith.constant 1 : i32
    %29 = tpu.dynamic_rotate %2 by %c1_i32 dim 1 : vector<8x256xf32>, i32 -> vector<8x256xf32>
    %30 = vector.broadcast %28 : vector<1x256xf32> to vector<8x256xf32>
    %31 = arith.mulf %29, %30 : vector<8x256xf32>
    %c24 = arith.constant 24 : index
    %c0_18 = arith.constant 0 : index
    %32 = vector.load %arg9[%c24, %c0_18] : memref<288x256xf32, #tpu.memory_space<vmem>>, vector<8x256xf32>
    tpu.vector_store %arg9[%c24, %c0_18], %31 {strides = array<i32>} : memref<288x256xf32, #tpu.memory_space<vmem>>, vector<8x256xf32>,
    %33 = vector.extract_strided_slice %4 {offsets = [4, 0], sizes = [1, 256], strides = [1, 1]} : vector<9x256xf32> to vector<1x256xf32>
    %34 = vector.broadcast %33 : vector<1x256xf32> to vector<8x256xf32>
    %35 = arith.mulf %2, %34 : vector<8x256xf32>
    %c32 = arith.constant 32 : index
    %c0_19 = arith.constant 0 : index
    %36 = vector.load %arg9[%c32, %c0_19] : memref<288x256xf32, #tpu.memory_space<vmem>>, vector<8x256xf32>
    tpu.vector_store %arg9[%c32, %c0_19], %35 {strides = array<i32>} : memref<288x256xf32, #tpu.memory_space<vmem>>, vector<8x256xf32>,
    %37 = vector.extract_strided_slice %4 {offsets = [5, 0], sizes = [1, 256], strides = [1, 1]} : vector<9x256xf32> to vector<1x256xf32>
    %c255_i32 = arith.constant 255 : i32
    %38 = tpu.dynamic_rotate %2 by %c255_i32 dim 1 : vector<8x256xf32>, i32 -> vector<8x256xf32>
    %39 = vector.broadcast %37 : vector<1x256xf32> to vector<8x256xf32>
    %40 = arith.mulf %38, %39 : vector<8x256xf32>
    %c40 = arith.constant 40 : index
    %c0_20 = arith.constant 0 : index
    %41 = vector.load %arg9[%c40, %c0_20] : memref<288x256xf32, #tpu.memory_space<vmem>>, vector<8x256xf32>
    tpu.vector_store %arg9[%c40, %c0_20], %40 {strides = array<i32>} : memref<288x256xf32, #tpu.memory_space<vmem>>, vector<8x256xf32>,
    %42 = vector.extract_strided_slice %4 {offsets = [6, 0], sizes = [1, 256], strides = [1, 1]} : vector<9x256xf32> to vector<1x256xf32>
    %c241_i32 = arith.constant 241 : i32
    %43 = tpu.dynamic_rotate %2 by %c241_i32 dim 1 : vector<8x256xf32>, i32 -> vector<8x256xf32>
    %44 = vector.broadcast %42 : vector<1x256xf32> to vector<8x256xf32>
    %45 = arith.mulf %43, %44 : vector<8x256xf32>
    %c48 = arith.constant 48 : index
    %c0_21 = arith.constant 0 : index
    %46 = vector.load %arg9[%c48, %c0_21] : memref<288x256xf32, #tpu.memory_space<vmem>>, vector<8x256xf32>
    tpu.vector_store %arg9[%c48, %c0_21], %45 {strides = array<i32>} : memref<288x256xf32, #tpu.memory_space<vmem>>, vector<8x256xf32>,
    %47 = vector.extract_strided_slice %4 {offsets = [7, 0], sizes = [1, 256], strides = [1, 1]} : vector<9x256xf32> to vector<1x256xf32>
    %c240_i32 = arith.constant 240 : i32
    %48 = tpu.dynamic_rotate %2 by %c240_i32 dim 1 : vector<8x256xf32>, i32 -> vector<8x256xf32>
    %49 = vector.broadcast %47 : vector<1x256xf32> to vector<8x256xf32>
    %50 = arith.mulf %48, %49 : vector<8x256xf32>
    %c56 = arith.constant 56 : index
    %c0_22 = arith.constant 0 : index
    %51 = vector.load %arg9[%c56, %c0_22] : memref<288x256xf32, #tpu.memory_space<vmem>>, vector<8x256xf32>
    tpu.vector_store %arg9[%c56, %c0_22], %50 {strides = array<i32>} : memref<288x256xf32, #tpu.memory_space<vmem>>, vector<8x256xf32>,
    %52 = vector.extract_strided_slice %4 {offsets = [8, 0], sizes = [1, 256], strides = [1, 1]} : vector<9x256xf32> to vector<1x256xf32>
    %c239_i32 = arith.constant 239 : i32
    %53 = tpu.dynamic_rotate %2 by %c239_i32 dim 1 : vector<8x256xf32>, i32 -> vector<8x256xf32>
    %54 = vector.broadcast %52 : vector<1x256xf32> to vector<8x256xf32>
    %55 = arith.mulf %53, %54 : vector<8x256xf32>
    %c64 = arith.constant 64 : index
    %c0_23 = arith.constant 0 : index
    %56 = vector.load %arg9[%c64, %c0_23] : memref<288x256xf32, #tpu.memory_space<vmem>>, vector<8x256xf32>
    tpu.vector_store %arg9[%c64, %c0_23], %55 {strides = array<i32>} : memref<288x256xf32, #tpu.memory_space<vmem>>, vector<8x256xf32>,
    %c0_24 = arith.constant 0 : index
    %c0_25 = arith.constant 0 : index
    %57 = vector.load %arg9[%c0_24, %c0_25] : memref<288x256xf32, #tpu.memory_space<vmem>>, vector<72x256xf32>
    %58 = arith.truncf %57 : vector<72x256xf32> to vector<72x256xbf16>
    %cst = arith.constant dense<0.000000e+00> : vector<8x256xf32>
    %59 = tpu.matmul %12, %58, %cst {dimension_numbers = #tpu.dot_dimension_numbers<[1], [0], [0], [1], [0, 0, 1, 1], [], []>} : vector<8x72xbf16>, vector<72x256xbf16>, vector<8x256xf32> -> vector<8x256xf32>
    %c0_26 = arith.constant 0 : index
    %c0_27 = arith.constant 0 : index
    %c0_28 = arith.constant 0 : index
    %60 = vector.load %arg7[%c0_26, %c0_27, %c0_28] : memref<10x8x1xf32, #tpu.memory_space<vmem>>, vector<1x8x1xf32>
    %61 = vector.shape_cast %60 : vector<1x8x1xf32> to vector<8x1xf32>
    %62 = vector.broadcast %61 : vector<8x1xf32> to vector<8x256xf32>
    %63 = arith.addf %59, %62 : vector<8x256xf32>
    %cst_29 = arith.constant 0.000000e+00 : f32
    %64 = vector.broadcast %cst_29 : f32 to vector<8x256xf32>
    %65 = arith.maximumf %63, %64 : vector<8x256xf32>
    %66 = arith.addf %65, %2 : vector<8x256xf32>
    %c1_30 = arith.constant 1 : index
    %c0_31 = arith.constant 0 : index
    %c0_32 = arith.constant 0 : index
    %67 = vector.load %arg3[%c1_30, %c0_31, %c0_32] : memref<9x8x72xbf16, #tpu.memory_space<vmem>>, vector<1x8x72xbf16>
    %68 = vector.shape_cast %67 : vector<1x8x72xbf16> to vector<8x72xbf16>
    %69 = vector.extract_strided_slice %4 {offsets = [0, 0], sizes = [1, 256], strides = [1, 1]} : vector<9x256xf32> to vector<1x256xf32>
    %c17_i32_33 = arith.constant 17 : i32
    %70 = tpu.dynamic_rotate %66 by %c17_i32_33 dim 1 : vector<8x256xf32>, i32 -> vector<8x256xf32>
    %71 = vector.broadcast %69 : vector<1x256xf32> to vector<8x256xf32>
    %72 = arith.mulf %70, %71 : vector<8x256xf32>
    %c0_34 = arith.constant 0 : index
    %c0_35 = arith.constant 0 : index
    %73 = vector.load %arg9[%c0_34, %c0_35] : memref<288x256xf32, #tpu.memory_space<vmem>>, vector<8x256xf32>
    tpu.vector_store %arg9[%c0_34, %c0_35], %72 {strides = array<i32>} : memref<288x256xf32, #tpu.memory_space<vmem>>, vector<8x256xf32>,
    %74 = vector.extract_strided_slice %4 {offsets = [1, 0], sizes = [1, 256], strides = [1, 1]} : vector<9x256xf32> to vector<1x256xf32>
    %c16_i32_36 = arith.constant 16 : i32
    %75 = tpu.dynamic_rotate %66 by %c16_i32_36 dim 1 : vector<8x256xf32>, i32 -> vector<8x256xf32>
    %76 = vector.broadcast %74 : vector<1x256xf32> to vector<8x256xf32>
    %77 = arith.mulf %75, %76 : vector<8x256xf32>
    %c8_37 = arith.constant 8 : index
    %c0_38 = arith.constant 0 : index
    %78 = vector.load %arg9[%c8_37, %c0_38] : memref<288x256xf32, #tpu.memory_space<vmem>>, vector<8x256xf32>
    tpu.vector_store %arg9[%c8_37, %c0_38], %77 {strides = array<i32>} : memref<288x256xf32, #tpu.memory_space<vmem>>, vector<8x256xf32>,
    %79 = vector.extract_strided_slice %4 {offsets = [2, 0], sizes = [1, 256], strides = [1, 1]} : vector<9x256xf32> to vector<1x256xf32>
    %c15_i32_39 = arith.constant 15 : i32
    %80 = tpu.dynamic_rotate %66 by %c15_i32_39 dim 1 : vector<8x256xf32>, i32 -> vector<8x256xf32>
    %81 = vector.broadcast %79 : vector<1x256xf32> to vector<8x256xf32>
    %82 = arith.mulf %80, %81 : vector<8x256xf32>
    %c16_40 = arith.constant 16 : index
    %c0_41 = arith.constant 0 : index
    %83 = vector.load %arg9[%c16_40, %c0_41] : memref<288x256xf32, #tpu.memory_space<vmem>>, vector<8x256xf32>
    tpu.vector_store %arg9[%c16_40, %c0_41], %82 {strides = array<i32>} : memref<288x256xf32, #tpu.memory_space<vmem>>, vector<8x256xf32>,
    %84 = vector.extract_strided_slice %4 {offsets = [3, 0], sizes = [1, 256], strides = [1, 1]} : vector<9x256xf32> to vector<1x256xf32>
    %c1_i32_42 = arith.constant 1 : i32
    %85 = tpu.dynamic_rotate %66 by %c1_i32_42 dim 1 : vector<8x256xf32>, i32 -> vector<8x256xf32>
    %86 = vector.broadcast %84 : vector<1x256xf32> to vector<8x256xf32>
    %87 = arith.mulf %85, %86 : vector<8x256xf32>
    %c24_43 = arith.constant 24 : index
    %c0_44 = arith.constant 0 : index
    %88 = vector.load %arg9[%c24_43, %c0_44] : memref<288x256xf32, #tpu.memory_space<vmem>>, vector<8x256xf32>
    tpu.vector_store %arg9[%c24_43, %c0_44], %87 {strides = array<i32>} : memref<288x256xf32, #tpu.memory_space<vmem>>, vector<8x256xf32>,
    %89 = vector.extract_strided_slice %4 {offsets = [4, 0], sizes = [1, 256], strides = [1, 1]} : vector<9x256xf32> to vector<1x256xf32>
    %90 = vector.broadcast %89 : vector<1x256xf32> to vector<8x256xf32>
    %91 = arith.mulf %66, %90 : vector<8x256xf32>
    %c32_45 = arith.constant 32 : index
    %c0_46 = arith.constant 0 : index
    %92 = vector.load %arg9[%c32_45, %c0_46] : memref<288x256xf32, #tpu.memory_space<vmem>>, vector<8x256xf32>
    tpu.vector_store %arg9[%c32_45, %c0_46], %91 {strides = array<i32>} : memref<288x256xf32, #tpu.memory_space<vmem>>, vector<8x256xf32>,
    %93 = vector.extract_strided_slice %4 {offsets = [5, 0], sizes = [1, 256], strides = [1, 1]} : vector<9x256xf32> to vector<1x256xf32>
    %c255_i32_47 = arith.constant 255 : i32
    %94 = tpu.dynamic_rotate %66 by %c255_i32_47 dim 1 : vector<8x256xf32>, i32 -> vector<8x256xf32>
    %95 = vector.broadcast %93 : vector<1x256xf32> to vector<8x256xf32>
    %96 = arith.mulf %94, %95 : vector<8x256xf32>
    %c40_48 = arith.constant 40 : index
    %c0_49 = arith.constant 0 : index
    %97 = vector.load %arg9[%c40_48, %c0_49] : memref<288x256xf32, #tpu.memory_space<vmem>>, vector<8x256xf32>
    tpu.vector_store %arg9[%c40_48, %c0_49], %96 {strides = array<i32>} : memref<288x256xf32, #tpu.memory_space<vmem>>, vector<8x256xf32>,
    %98 = vector.extract_strided_slice %4 {offsets = [6, 0], sizes = [1, 256], strides = [1, 1]} : vector<9x256xf32> to vector<1x256xf32>
    %c241_i32_50 = arith.constant 241 : i32
    %99 = tpu.dynamic_rotate %66 by %c241_i32_50 dim 1 : vector<8x256xf32>, i32 -> vector<8x256xf32>
    %100 = vector.broadcast %98 : vector<1x256xf32> to vector<8x256xf32>
    %101 = arith.mulf %99, %100 : vector<8x256xf32>
    %c48_51 = arith.constant 48 : index
    %c0_52 = arith.constant 0 : index
    %102 = vector.load %arg9[%c48_51, %c0_52] : memref<288x256xf32, #tpu.memory_space<vmem>>, vector<8x256xf32>
    tpu.vector_store %arg9[%c48_51, %c0_52], %101 {strides = array<i32>} : memref<288x256xf32, #tpu.memory_space<vmem>>, vector<8x256xf32>,
    %103 = vector.extract_strided_slice %4 {offsets = [7, 0], sizes = [1, 256], strides = [1, 1]} : vector<9x256xf32> to vector<1x256xf32>
    %c240_i32_53 = arith.constant 240 : i32
    %104 = tpu.dynamic_rotate %66 by %c240_i32_53 dim 1 : vector<8x256xf32>, i32 -> vector<8x256xf32>
    %105 = vector.broadcast %103 : vector<1x256xf32> to vector<8x256xf32>
    %106 = arith.mulf %104, %105 : vector<8x256xf32>
    %c56_54 = arith.constant 56 : index
    %c0_55 = arith.constant 0 : index
    %107 = vector.load %arg9[%c56_54, %c0_55] : memref<288x256xf32, #tpu.memory_space<vmem>>, vector<8x256xf32>
    tpu.vector_store %arg9[%c56_54, %c0_55], %106 {strides = array<i32>} : memref<288x256xf32, #tpu.memory_space<vmem>>, vector<8x256xf32>,
    %108 = vector.extract_strided_slice %4 {offsets = [8, 0], sizes = [1, 256], strides = [1, 1]} : vector<9x256xf32> to vector<1x256xf32>
    %c239_i32_56 = arith.constant 239 : i32
    %109 = tpu.dynamic_rotate %66 by %c239_i32_56 dim 1 : vector<8x256xf32>, i32 -> vector<8x256xf32>
    %110 = vector.broadcast %108 : vector<1x256xf32> to vector<8x256xf32>
    %111 = arith.mulf %109, %110 : vector<8x256xf32>
    %c64_57 = arith.constant 64 : index
    %c0_58 = arith.constant 0 : index
    %112 = vector.load %arg9[%c64_57, %c0_58] : memref<288x256xf32, #tpu.memory_space<vmem>>, vector<8x256xf32>
    tpu.vector_store %arg9[%c64_57, %c0_58], %111 {strides = array<i32>} : memref<288x256xf32, #tpu.memory_space<vmem>>, vector<8x256xf32>,
    %c0_59 = arith.constant 0 : index
    %c0_60 = arith.constant 0 : index
    %113 = vector.load %arg9[%c0_59, %c0_60] : memref<288x256xf32, #tpu.memory_space<vmem>>, vector<72x256xf32>
    %114 = arith.truncf %113 : vector<72x256xf32> to vector<72x256xbf16>
    %cst_61 = arith.constant dense<0.000000e+00> : vector<8x256xf32>
    %115 = tpu.matmul %68, %114, %cst_61 {dimension_numbers = #tpu.dot_dimension_numbers<[1], [0], [0], [1], [0, 0, 1, 1], [], []>} : vector<8x72xbf16>, vector<72x256xbf16>, vector<8x256xf32> -> vector<8x256xf32>
    %c1_62 = arith.constant 1 : index
    %c0_63 = arith.constant 0 : index
    %c0_64 = arith.constant 0 : index
    %116 = vector.load %arg7[%c1_62, %c0_63, %c0_64] : memref<10x8x1xf32, #tpu.memory_space<vmem>>, vector<1x8x1xf32>
    %117 = vector.shape_cast %116 : vector<1x8x1xf32> to vector<8x1xf32>
    %118 = vector.broadcast %117 : vector<8x1xf32> to vector<8x256xf32>
    %119 = arith.addf %115, %118 : vector<8x256xf32>
    %c2_65 = arith.constant 2 : index
    %c0_66 = arith.constant 0 : index
    %c0_67 = arith.constant 0 : index
    %120 = vector.load %arg3[%c2_65, %c0_66, %c0_67] : memref<9x8x72xbf16, #tpu.memory_space<vmem>>, vector<1x8x72xbf16>
    %121 = vector.shape_cast %120 : vector<1x8x72xbf16> to vector<8x72xbf16>
    %122 = vector.extract_strided_slice %4 {offsets = [0, 0], sizes = [1, 256], strides = [1, 1]} : vector<9x256xf32> to vector<1x256xf32>
    %c17_i32_68 = arith.constant 17 : i32
    %123 = tpu.dynamic_rotate %119 by %c17_i32_68 dim 1 : vector<8x256xf32>, i32 -> vector<8x256xf32>
    %124 = vector.broadcast %122 : vector<1x256xf32> to vector<8x256xf32>
    %125 = arith.mulf %123, %124 : vector<8x256xf32>
    %c0_69 = arith.constant 0 : index
    %c0_70 = arith.constant 0 : index
    %126 = vector.load %arg9[%c0_69, %c0_70] : memref<288x256xf32, #tpu.memory_space<vmem>>, vector<8x256xf32>
    tpu.vector_store %arg9[%c0_69, %c0_70], %125 {strides = array<i32>} : memref<288x256xf32, #tpu.memory_space<vmem>>, vector<8x256xf32>,
    %127 = vector.extract_strided_slice %4 {offsets = [1, 0], sizes = [1, 256], strides = [1, 1]} : vector<9x256xf32> to vector<1x256xf32>
    %c16_i32_71 = arith.constant 16 : i32
    %128 = tpu.dynamic_rotate %119 by %c16_i32_71 dim 1 : vector<8x256xf32>, i32 -> vector<8x256xf32>
    %129 = vector.broadcast %127 : vector<1x256xf32> to vector<8x256xf32>
    %130 = arith.mulf %128, %129 : vector<8x256xf32>
    %c8_72 = arith.constant 8 : index
    %c0_73 = arith.constant 0 : index
    %131 = vector.load %arg9[%c8_72, %c0_73] : memref<288x256xf32, #tpu.memory_space<vmem>>, vector<8x256xf32>
    tpu.vector_store %arg9[%c8_72, %c0_73], %130 {strides = array<i32>} : memref<288x256xf32, #tpu.memory_space<vmem>>, vector<8x256xf32>,
    %132 = vector.extract_strided_slice %4 {offsets = [2, 0], sizes = [1, 256], strides = [1, 1]} : vector<9x256xf32> to vector<1x256xf32>
    %c15_i32_74 = arith.constant 15 : i32
    %133 = tpu.dynamic_rotate %119 by %c15_i32_74 dim 1 : vector<8x256xf32>, i32 -> vector<8x256xf32>
    %134 = vector.broadcast %132 : vector<1x256xf32> to vector<8x256xf32>
    %135 = arith.mulf %133, %134 : vector<8x256xf32>
    %c16_75 = arith.constant 16 : index
    %c0_76 = arith.constant 0 : index
    %136 = vector.load %arg9[%c16_75, %c0_76] : memref<288x256xf32, #tpu.memory_space<vmem>>, vector<8x256xf32>
    tpu.vector_store %arg9[%c16_75, %c0_76], %135 {strides = array<i32>} : memref<288x256xf32, #tpu.memory_space<vmem>>, vector<8x256xf32>,
    %137 = vector.extract_strided_slice %4 {offsets = [3, 0], sizes = [1, 256], strides = [1, 1]} : vector<9x256xf32> to vector<1x256xf32>
    %c1_i32_77 = arith.constant 1 : i32
    %138 = tpu.dynamic_rotate %119 by %c1_i32_77 dim 1 : vector<8x256xf32>, i32 -> vector<8x256xf32>
    %139 = vector.broadcast %137 : vector<1x256xf32> to vector<8x256xf32>
    %140 = arith.mulf %138, %139 : vector<8x256xf32>
    %c24_78 = arith.constant 24 : index
    %c0_79 = arith.constant 0 : index
    %141 = vector.load %arg9[%c24_78, %c0_79] : memref<288x256xf32, #tpu.memory_space<vmem>>, vector<8x256xf32>
    tpu.vector_store %arg9[%c24_78, %c0_79], %140 {strides = array<i32>} : memref<288x256xf32, #tpu.memory_space<vmem>>, vector<8x256xf32>,
    %142 = vector.extract_strided_slice %4 {offsets = [4, 0], sizes = [1, 256], strides = [1, 1]} : vector<9x256xf32> to vector<1x256xf32>
    %143 = vector.broadcast %142 : vector<1x256xf32> to vector<8x256xf32>
    %144 = arith.mulf %119, %143 : vector<8x256xf32>
    %c32_80 = arith.constant 32 : index
    %c0_81 = arith.constant 0 : index
    %145 = vector.load %arg9[%c32_80, %c0_81] : memref<288x256xf32, #tpu.memory_space<vmem>>, vector<8x256xf32>
    tpu.vector_store %arg9[%c32_80, %c0_81], %144 {strides = array<i32>} : memref<288x256xf32, #tpu.memory_space<vmem>>, vector<8x256xf32>,
    %146 = vector.extract_strided_slice %4 {offsets = [5, 0], sizes = [1, 256], strides = [1, 1]} : vector<9x256xf32> to vector<1x256xf32>
    %c255_i32_82 = arith.constant 255 : i32
    %147 = tpu.dynamic_rotate %119 by %c255_i32_82 dim 1 : vector<8x256xf32>, i32 -> vector<8x256xf32>
    %148 = vector.broadcast %146 : vector<1x256xf32> to vector<8x256xf32>
    %149 = arith.mulf %147, %148 : vector<8x256xf32>
    %c40_83 = arith.constant 40 : index
    %c0_84 = arith.constant 0 : index
    %150 = vector.load %arg9[%c40_83, %c0_84] : memref<288x256xf32, #tpu.memory_space<vmem>>, vector<8x256xf32>
    tpu.vector_store %arg9[%c40_83, %c0_84], %149 {strides = array<i32>} : memref<288x256xf32, #tpu.memory_space<vmem>>, vector<8x256xf32>,
    %151 = vector.extract_strided_slice %4 {offsets = [6, 0], sizes = [1, 256], strides = [1, 1]} : vector<9x256xf32> to vector<1x256xf32>
    %c241_i32_85 = arith.constant 241 : i32
    %152 = tpu.dynamic_rotate %119 by %c241_i32_85 dim 1 : vector<8x256xf32>, i32 -> vector<8x256xf32>
    %153 = vector.broadcast %151 : vector<1x256xf32> to vector<8x256xf32>
    %154 = arith.mulf %152, %153 : vector<8x256xf32>
    %c48_86 = arith.constant 48 : index
    %c0_87 = arith.constant 0 : index
    %155 = vector.load %arg9[%c48_86, %c0_87] : memref<288x256xf32, #tpu.memory_space<vmem>>, vector<8x256xf32>
    tpu.vector_store %arg9[%c48_86, %c0_87], %154 {strides = array<i32>} : memref<288x256xf32, #tpu.memory_space<vmem>>, vector<8x256xf32>,
    %156 = vector.extract_strided_slice %4 {offsets = [7, 0], sizes = [1, 256], strides = [1, 1]} : vector<9x256xf32> to vector<1x256xf32>
    %c240_i32_88 = arith.constant 240 : i32
    %157 = tpu.dynamic_rotate %119 by %c240_i32_88 dim 1 : vector<8x256xf32>, i32 -> vector<8x256xf32>
    %158 = vector.broadcast %156 : vector<1x256xf32> to vector<8x256xf32>
    %159 = arith.mulf %157, %158 : vector<8x256xf32>
    %c56_89 = arith.constant 56 : index
    %c0_90 = arith.constant 0 : index
    %160 = vector.load %arg9[%c56_89, %c0_90] : memref<288x256xf32, #tpu.memory_space<vmem>>, vector<8x256xf32>
    tpu.vector_store %arg9[%c56_89, %c0_90], %159 {strides = array<i32>} : memref<288x256xf32, #tpu.memory_space<vmem>>, vector<8x256xf32>,
    %161 = vector.extract_strided_slice %4 {offsets = [8, 0], sizes = [1, 256], strides = [1, 1]} : vector<9x256xf32> to vector<1x256xf32>
    %c239_i32_91 = arith.constant 239 : i32
    %162 = tpu.dynamic_rotate %119 by %c239_i32_91 dim 1 : vector<8x256xf32>, i32 -> vector<8x256xf32>
    %163 = vector.broadcast %161 : vector<1x256xf32> to vector<8x256xf32>
    %164 = arith.mulf %162, %163 : vector<8x256xf32>
    %c64_92 = arith.constant 64 : index
    %c0_93 = arith.constant 0 : index
    %165 = vector.load %arg9[%c64_92, %c0_93] : memref<288x256xf32, #tpu.memory_space<vmem>>, vector<8x256xf32>
    tpu.vector_store %arg9[%c64_92, %c0_93], %164 {strides = array<i32>} : memref<288x256xf32, #tpu.memory_space<vmem>>, vector<8x256xf32>,
    %c0_94 = arith.constant 0 : index
    %c0_95 = arith.constant 0 : index
    %166 = vector.load %arg9[%c0_94, %c0_95] : memref<288x256xf32, #tpu.memory_space<vmem>>, vector<72x256xf32>
    %167 = arith.truncf %166 : vector<72x256xf32> to vector<72x256xbf16>
    %cst_96 = arith.constant dense<0.000000e+00> : vector<8x256xf32>
    %168 = tpu.matmul %121, %167, %cst_96 {dimension_numbers = #tpu.dot_dimension_numbers<[1], [0], [0], [1], [0, 0, 1, 1], [], []>} : vector<8x72xbf16>, vector<72x256xbf16>, vector<8x256xf32> -> vector<8x256xf32>
    %c2_97 = arith.constant 2 : index
    %c0_98 = arith.constant 0 : index
    %c0_99 = arith.constant 0 : index
    %169 = vector.load %arg7[%c2_97, %c0_98, %c0_99] : memref<10x8x1xf32, #tpu.memory_space<vmem>>, vector<1x8x1xf32>
    %170 = vector.shape_cast %169 : vector<1x8x1xf32> to vector<8x1xf32>
    %171 = vector.broadcast %170 : vector<8x1xf32> to vector<8x256xf32>
    %172 = arith.addf %168, %171 : vector<8x256xf32>
    %cst_100 = arith.constant 0.000000e+00 : f32
    %173 = vector.broadcast %cst_100 : f32 to vector<8x256xf32>
    %174 = arith.cmpf oge, %172, %173 : vector<8x256xf32>
    %c3_101 = arith.constant 3 : index
    %c0_102 = arith.constant 0 : index
    %c0_103 = arith.constant 0 : index
    %175 = vector.load %arg7[%c3_101, %c0_102, %c0_103] : memref<10x8x1xf32, #tpu.memory_space<vmem>>, vector<1x8x1xf32>
    %176 = vector.shape_cast %175 : vector<1x8x1xf32> to vector<8x1xf32>
    %177 = vector.broadcast %176 : vector<8x1xf32> to vector<8x256xf32>
    %178 = arith.mulf %177, %172 : vector<8x256xf32>
    %179 = arith.select %174, %172, %178 : vector<8x256xi1>, vector<8x256xf32>
    %c3_104 = arith.constant 3 : index
    %c0_105 = arith.constant 0 : index
    %c0_106 = arith.constant 0 : index
    %180 = vector.load %arg3[%c3_104, %c0_105, %c0_106] : memref<9x8x72xbf16, #tpu.memory_space<vmem>>, vector<1x8x72xbf16>
    %181 = vector.shape_cast %180 : vector<1x8x72xbf16> to vector<8x72xbf16>
    %182 = vector.extract_strided_slice %4 {offsets = [0, 0], sizes = [1, 256], strides = [1, 1]} : vector<9x256xf32> to vector<1x256xf32>
    %c17_i32_107 = arith.constant 17 : i32
    %183 = tpu.dynamic_rotate %179 by %c17_i32_107 dim 1 : vector<8x256xf32>, i32 -> vector<8x256xf32>
    %184 = vector.broadcast %182 : vector<1x256xf32> to vector<8x256xf32>
    %185 = arith.mulf %183, %184 : vector<8x256xf32>
    %c0_108 = arith.constant 0 : index
    %c0_109 = arith.constant 0 : index
    %186 = vector.load %arg9[%c0_108, %c0_109] : memref<288x256xf32, #tpu.memory_space<vmem>>, vector<8x256xf32>
    tpu.vector_store %arg9[%c0_108, %c0_109], %185 {strides = array<i32>} : memref<288x256xf32, #tpu.memory_space<vmem>>, vector<8x256xf32>,
    %187 = vector.extract_strided_slice %4 {offsets = [1, 0], sizes = [1, 256], strides = [1, 1]} : vector<9x256xf32> to vector<1x256xf32>
    %c16_i32_110 = arith.constant 16 : i32
    %188 = tpu.dynamic_rotate %179 by %c16_i32_110 dim 1 : vector<8x256xf32>, i32 -> vector<8x256xf32>
    %189 = vector.broadcast %187 : vector<1x256xf32> to vector<8x256xf32>
    %190 = arith.mulf %188, %189 : vector<8x256xf32>
    %c8_111 = arith.constant 8 : index
    %c0_112 = arith.constant 0 : index
    %191 = vector.load %arg9[%c8_111, %c0_112] : memref<288x256xf32, #tpu.memory_space<vmem>>, vector<8x256xf32>
    tpu.vector_store %arg9[%c8_111, %c0_112], %190 {strides = array<i32>} : memref<288x256xf32, #tpu.memory_space<vmem>>, vector<8x256xf32>,
    %192 = vector.extract_strided_slice %4 {offsets = [2, 0], sizes = [1, 256], strides = [1, 1]} : vector<9x256xf32> to vector<1x256xf32>
    %c15_i32_113 = arith.constant 15 : i32
    %193 = tpu.dynamic_rotate %179 by %c15_i32_113 dim 1 : vector<8x256xf32>, i32 -> vector<8x256xf32>
    %194 = vector.broadcast %192 : vector<1x256xf32> to vector<8x256xf32>
    %195 = arith.mulf %193, %194 : vector<8x256xf32>
    %c16_114 = arith.constant 16 : index
    %c0_115 = arith.constant 0 : index
    %196 = vector.load %arg9[%c16_114, %c0_115] : memref<288x256xf32, #tpu.memory_space<vmem>>, vector<8x256xf32>
    tpu.vector_store %arg9[%c16_114, %c0_115], %195 {strides = array<i32>} : memref<288x256xf32, #tpu.memory_space<vmem>>, vector<8x256xf32>,
    %197 = vector.extract_strided_slice %4 {offsets = [3, 0], sizes = [1, 256], strides = [1, 1]} : vector<9x256xf32> to vector<1x256xf32>
    %c1_i32_116 = arith.constant 1 : i32
    %198 = tpu.dynamic_rotate %179 by %c1_i32_116 dim 1 : vector<8x256xf32>, i32 -> vector<8x256xf32>
    %199 = vector.broadcast %197 : vector<1x256xf32> to vector<8x256xf32>
    %200 = arith.mulf %198, %199 : vector<8x256xf32>
    %c24_117 = arith.constant 24 : index
    %c0_118 = arith.constant 0 : index
    %201 = vector.load %arg9[%c24_117, %c0_118] : memref<288x256xf32, #tpu.memory_space<vmem>>, vector<8x256xf32>
    tpu.vector_store %arg9[%c24_117, %c0_118], %200 {strides = array<i32>} : memref<288x256xf32, #tpu.memory_space<vmem>>, vector<8x256xf32>,
    %202 = vector.extract_strided_slice %4 {offsets = [4, 0], sizes = [1, 256], strides = [1, 1]} : vector<9x256xf32> to vector<1x256xf32>
    %203 = vector.broadcast %202 : vector<1x256xf32> to vector<8x256xf32>
    %204 = arith.mulf %179, %203 : vector<8x256xf32>
    %c32_119 = arith.constant 32 : index
    %c0_120 = arith.constant 0 : index
    %205 = vector.load %arg9[%c32_119, %c0_120] : memref<288x256xf32, #tpu.memory_space<vmem>>, vector<8x256xf32>
    tpu.vector_store %arg9[%c32_119, %c0_120], %204 {strides = array<i32>} : memref<288x256xf32, #tpu.memory_space<vmem>>, vector<8x256xf32>,
    %206 = vector.extract_strided_slice %4 {offsets = [5, 0], sizes = [1, 256], strides = [1, 1]} : vector<9x256xf32> to vector<1x256xf32>
    %c255_i32_121 = arith.constant 255 : i32
    %207 = tpu.dynamic_rotate %179 by %c255_i32_121 dim 1 : vector<8x256xf32>, i32 -> vector<8x256xf32>
    %208 = vector.broadcast %206 : vector<1x256xf32> to vector<8x256xf32>
    %209 = arith.mulf %207, %208 : vector<8x256xf32>
    %c40_122 = arith.constant 40 : index
    %c0_123 = arith.constant 0 : index
    %210 = vector.load %arg9[%c40_122, %c0_123] : memref<288x256xf32, #tpu.memory_space<vmem>>, vector<8x256xf32>
    tpu.vector_store %arg9[%c40_122, %c0_123], %209 {strides = array<i32>} : memref<288x256xf32, #tpu.memory_space<vmem>>, vector<8x256xf32>,
    %211 = vector.extract_strided_slice %4 {offsets = [6, 0], sizes = [1, 256], strides = [1, 1]} : vector<9x256xf32> to vector<1x256xf32>
    %c241_i32_124 = arith.constant 241 : i32
    %212 = tpu.dynamic_rotate %179 by %c241_i32_124 dim 1 : vector<8x256xf32>, i32 -> vector<8x256xf32>
    %213 = vector.broadcast %211 : vector<1x256xf32> to vector<8x256xf32>
    %214 = arith.mulf %212, %213 : vector<8x256xf32>
    %c48_125 = arith.constant 48 : index
    %c0_126 = arith.constant 0 : index
    %215 = vector.load %arg9[%c48_125, %c0_126] : memref<288x256xf32, #tpu.memory_space<vmem>>, vector<8x256xf32>
    tpu.vector_store %arg9[%c48_125, %c0_126], %214 {strides = array<i32>} : memref<288x256xf32, #tpu.memory_space<vmem>>, vector<8x256xf32>,
    %216 = vector.extract_strided_slice %4 {offsets = [7, 0], sizes = [1, 256], strides = [1, 1]} : vector<9x256xf32> to vector<1x256xf32>
    %c240_i32_127 = arith.constant 240 : i32
    %217 = tpu.dynamic_rotate %179 by %c240_i32_127 dim 1 : vector<8x256xf32>, i32 -> vector<8x256xf32>
    %218 = vector.broadcast %216 : vector<1x256xf32> to vector<8x256xf32>
    %219 = arith.mulf %217, %218 : vector<8x256xf32>
    %c56_128 = arith.constant 56 : index
    %c0_129 = arith.constant 0 : index
    %220 = vector.load %arg9[%c56_128, %c0_129] : memref<288x256xf32, #tpu.memory_space<vmem>>, vector<8x256xf32>
    tpu.vector_store %arg9[%c56_128, %c0_129], %219 {strides = array<i32>} : memref<288x256xf32, #tpu.memory_space<vmem>>, vector<8x256xf32>,
    %221 = vector.extract_strided_slice %4 {offsets = [8, 0], sizes = [1, 256], strides = [1, 1]} : vector<9x256xf32> to vector<1x256xf32>
    %c239_i32_130 = arith.constant 239 : i32
    %222 = tpu.dynamic_rotate %179 by %c239_i32_130 dim 1 : vector<8x256xf32>, i32 -> vector<8x256xf32>
    %223 = vector.broadcast %221 : vector<1x256xf32> to vector<8x256xf32>
    %224 = arith.mulf %222, %223 : vector<8x256xf32>
    %c64_131 = arith.constant 64 : index
    %c0_132 = arith.constant 0 : index
    %225 = vector.load %arg9[%c64_131, %c0_132] : memref<288x256xf32, #tpu.memory_space<vmem>>, vector<8x256xf32>
    tpu.vector_store %arg9[%c64_131, %c0_132], %224 {strides = array<i32>} : memref<288x256xf32, #tpu.memory_space<vmem>>, vector<8x256xf32>,
    %c0_133 = arith.constant 0 : index
    %c0_134 = arith.constant 0 : index
    %226 = vector.load %arg9[%c0_133, %c0_134] : memref<288x256xf32, #tpu.memory_space<vmem>>, vector<72x256xf32>
    %227 = arith.truncf %226 : vector<72x256xf32> to vector<72x256xbf16>
    %cst_135 = arith.constant dense<0.000000e+00> : vector<8x256xf32>
    %228 = tpu.matmul %181, %227, %cst_135 {dimension_numbers = #tpu.dot_dimension_numbers<[1], [0], [0], [1], [0, 0, 1, 1], [], []>} : vector<8x72xbf16>, vector<72x256xbf16>, vector<8x256xf32> -> vector<8x256xf32>
    %c4 = arith.constant 4 : index
    %c0_136 = arith.constant 0 : index
    %c0_137 = arith.constant 0 : index
    %229 = vector.load %arg7[%c4, %c0_136, %c0_137] : memref<10x8x1xf32, #tpu.memory_space<vmem>>, vector<1x8x1xf32>
    %230 = vector.shape_cast %229 : vector<1x8x1xf32> to vector<8x1xf32>
    %231 = vector.broadcast %230 : vector<8x1xf32> to vector<8x256xf32>
    %232 = arith.addf %228, %231 : vector<8x256xf32>
    %cst_138 = arith.constant dense<0.000000e+00> : vector<8xf32>
    %233 = vector.multi_reduction <add>, %232, %cst_138 [1] : vector<8x256xf32> to vector<8xf32>
    %234 = vector.shape_cast %233 : vector<8xf32> to vector<8x1xf32>
    %cst_139 = arith.constant 2.560000e+02 : f32
    %235 = vector.broadcast %cst_139 : f32 to vector<8x1xf32>
    %236 = arith.divf %234, %235 : vector<8x1xf32>
    %cst_140 = arith.constant dense<0xFF800000> : vector<8xf32>
    %237 = vector.multi_reduction <maximumf>, %232, %cst_140 [1] : vector<8x256xf32> to vector<8xf32>
    %238 = vector.shape_cast %237 : vector<8xf32> to vector<8x1xf32>
    %239 = tpu.iota {dimensions = array<i32: 1>} : vector<8x2xi32>
    %c0_i32 = arith.constant 0 : i32
    %240 = vector.broadcast %c0_i32 : i32 to vector<8x2xi32>
    %241 = arith.cmpi eq, %239, %240 : vector<8x2xi32>
    %242 = vector.shape_cast %236 : vector<8x1xf32> to vector<8x1xf32>
    %243 = vector.broadcast %242 : vector<8x1xf32> to vector<8x2xf32>
    %244 = vector.shape_cast %238 : vector<8x1xf32> to vector<8x1xf32>
    %245 = vector.broadcast %244 : vector<8x1xf32> to vector<8x2xf32>
    %246 = arith.select %241, %243, %245 : vector<8x2xi1>, vector<8x2xf32>
    %c0_141 = arith.constant 0 : index
    %c0_142 = arith.constant 0 : index
    %247 = vector.load %arg4[%c0_141, %c0_142] : memref<16x8xf32, #tpu.memory_space<vmem>>, vector<8x8xf32>
    %c8_143 = arith.constant 8 : index
    %c0_144 = arith.constant 0 : index
    %248 = vector.load %arg4[%c8_143, %c0_144] : memref<16x8xf32, #tpu.memory_space<vmem>>, vector<8x8xf32>
    %cst_145 = arith.constant dense<0.000000e+00> : vector<8x2xf32>
    %249 = tpu.matmul %247, %246, %cst_145 {dimension_numbers = #tpu.dot_dimension_numbers<[1], [0], [0], [1], [0, 0, 1, 1], [], []>} : vector<8x8xf32>, vector<8x2xf32>, vector<8x2xf32> -> vector<8x2xf32>
    %cst_146 = arith.constant 0.000000e+00 : f32
    %250 = vector.broadcast %cst_146 : f32 to vector<8x2xf32>
    %251 = arith.maximumf %249, %250 : vector<8x2xf32>
    %cst_147 = arith.constant dense<0.000000e+00> : vector<8x2xf32>
    %252 = tpu.matmul %248, %251, %cst_147 {dimension_numbers = #tpu.dot_dimension_numbers<[1], [0], [0], [1], [0, 0, 1, 1], [], []>} : vector<8x8xf32>, vector<8x2xf32>, vector<8x2xf32> -> vector<8x2xf32>
    %253 = arith.negf %252 : vector<8x2xf32>
    %254 = math.exp %253 : vector<8x2xf32>
    %cst_148 = arith.constant 1.000000e+00 : f32
    %255 = vector.broadcast %cst_148 : f32 to vector<8x2xf32>
    %256 = arith.addf %255, %254 : vector<8x2xf32>
    %257 = arith.divf %255, %256 : vector<8x2xf32>
    %c0_i32_149 = arith.constant 0 : i32
    %258 = vector.broadcast %c0_i32_149 : i32 to vector<8x2xi32>
    %259 = arith.cmpi eq, %239, %258 : vector<8x2xi32>
    %cst_150 = arith.constant 0.000000e+00 : f32
    %260 = vector.broadcast %cst_150 : f32 to vector<8x2xf32>
    %261 = arith.select %259, %257, %260 : vector<8x2xi1>, vector<8x2xf32>
    %cst_151 = arith.constant dense<0.000000e+00> : vector<8xf32>
    %262 = vector.multi_reduction <add>, %261, %cst_151 [1] : vector<8x2xf32> to vector<8xf32>
    %263 = vector.shape_cast %262 : vector<8xf32> to vector<8x1xf32>
    %c1_i32_152 = arith.constant 1 : i32
    %264 = vector.broadcast %c1_i32_152 : i32 to vector<8x2xi32>
    %265 = arith.cmpi eq, %239, %264 : vector<8x2xi32>
    %cst_153 = arith.constant 0.000000e+00 : f32
    %266 = vector.broadcast %cst_153 : f32 to vector<8x2xf32>
    %267 = arith.select %265, %257, %266 : vector<8x2xi1>, vector<8x2xf32>
    %cst_154 = arith.constant dense<0.000000e+00> : vector<8xf32>
    %268 = vector.multi_reduction <add>, %267, %cst_154 [1] : vector<8x2xf32> to vector<8xf32>
    %269 = vector.shape_cast %268 : vector<8xf32> to vector<8x1xf32>
    %270 = vector.broadcast %263 : vector<8x1xf32> to vector<8x256xf32>
    %271 = arith.mulf %270, %119 : vector<8x256xf32>
    %c0_155 = arith.constant 0 : index
    %c0_156 = arith.constant 0 : index
    %272 = vector.load %arg9[%c0_155, %c0_156] : memref<288x256xf32, #tpu.memory_space<vmem>>, vector<8x256xf32>
    tpu.vector_store %arg9[%c0_155, %c0_156], %271 {strides = array<i32>} : memref<288x256xf32, #tpu.memory_space<vmem>>, vector<8x256xf32>,
    %273 = vector.broadcast %269 : vector<8x1xf32> to vector<8x256xf32>
    %274 = arith.mulf %273, %119 : vector<8x256xf32>
    %c8_157 = arith.constant 8 : index
    %c0_158 = arith.constant 0 : index
    %275 = vector.load %arg9[%c8_157, %c0_158] : memref<288x256xf32, #tpu.memory_space<vmem>>, vector<8x256xf32>
    tpu.vector_store %arg9[%c8_157, %c0_158], %274 {strides = array<i32>} : memref<288x256xf32, #tpu.memory_space<vmem>>, vector<8x256xf32>,
    %c0_159 = arith.constant 0 : index
    %c0_160 = arith.constant 0 : index
    %276 = vector.load %arg5[%c0_159, %c0_160] : memref<8x16xbf16, #tpu.memory_space<vmem>>, vector<8x16xbf16>
    %c0_161 = arith.constant 0 : index
    %c0_162 = arith.constant 0 : index
    %277 = vector.load %arg9[%c0_161, %c0_162] : memref<288x256xf32, #tpu.memory_space<vmem>>, vector<16x256xf32>
    %278 = arith.truncf %277 : vector<16x256xf32> to vector<16x256xbf16>
    %cst_163 = arith.constant dense<0.000000e+00> : vector<8x256xf32>
    %279 = tpu.matmul %276, %278, %cst_163 {dimension_numbers = #tpu.dot_dimension_numbers<[1], [0], [0], [1], [0, 0, 1, 1], [], []>} : vector<8x16xbf16>, vector<16x256xbf16>, vector<8x256xf32> -> vector<8x256xf32>
    %c5 = arith.constant 5 : index
    %c0_164 = arith.constant 0 : index
    %c0_165 = arith.constant 0 : index
    %280 = vector.load %arg7[%c5, %c0_164, %c0_165] : memref<10x8x1xf32, #tpu.memory_space<vmem>>, vector<1x8x1xf32>
    %281 = vector.shape_cast %280 : vector<1x8x1xf32> to vector<8x1xf32>
    %282 = vector.broadcast %281 : vector<8x1xf32> to vector<8x256xf32>
    %283 = arith.addf %279, %282 : vector<8x256xf32>
    %c4_166 = arith.constant 4 : index
    %c0_167 = arith.constant 0 : index
    %c0_168 = arith.constant 0 : index
    %284 = vector.load %arg3[%c4_166, %c0_167, %c0_168] : memref<9x8x72xbf16, #tpu.memory_space<vmem>>, vector<1x8x72xbf16>
    %285 = vector.shape_cast %284 : vector<1x8x72xbf16> to vector<8x72xbf16>
    %286 = vector.extract_strided_slice %4 {offsets = [0, 0], sizes = [1, 256], strides = [1, 1]} : vector<9x256xf32> to vector<1x256xf32>
    %c17_i32_169 = arith.constant 17 : i32
    %287 = tpu.dynamic_rotate %283 by %c17_i32_169 dim 1 : vector<8x256xf32>, i32 -> vector<8x256xf32>
    %288 = vector.broadcast %286 : vector<1x256xf32> to vector<8x256xf32>
    %289 = arith.mulf %287, %288 : vector<8x256xf32>
    %c0_170 = arith.constant 0 : index
    %c0_171 = arith.constant 0 : index
    %290 = vector.load %arg9[%c0_170, %c0_171] : memref<288x256xf32, #tpu.memory_space<vmem>>, vector<8x256xf32>
    tpu.vector_store %arg9[%c0_170, %c0_171], %289 {strides = array<i32>} : memref<288x256xf32, #tpu.memory_space<vmem>>, vector<8x256xf32>,
    %291 = vector.extract_strided_slice %4 {offsets = [1, 0], sizes = [1, 256], strides = [1, 1]} : vector<9x256xf32> to vector<1x256xf32>
    %c16_i32_172 = arith.constant 16 : i32
    %292 = tpu.dynamic_rotate %283 by %c16_i32_172 dim 1 : vector<8x256xf32>, i32 -> vector<8x256xf32>
    %293 = vector.broadcast %291 : vector<1x256xf32> to vector<8x256xf32>
    %294 = arith.mulf %292, %293 : vector<8x256xf32>
    %c8_173 = arith.constant 8 : index
    %c0_174 = arith.constant 0 : index
    %295 = vector.load %arg9[%c8_173, %c0_174] : memref<288x256xf32, #tpu.memory_space<vmem>>, vector<8x256xf32>
    tpu.vector_store %arg9[%c8_173, %c0_174], %294 {strides = array<i32>} : memref<288x256xf32, #tpu.memory_space<vmem>>, vector<8x256xf32>,
    %296 = vector.extract_strided_slice %4 {offsets = [2, 0], sizes = [1, 256], strides = [1, 1]} : vector<9x256xf32> to vector<1x256xf32>
    %c15_i32_175 = arith.constant 15 : i32
    %297 = tpu.dynamic_rotate %283 by %c15_i32_175 dim 1 : vector<8x256xf32>, i32 -> vector<8x256xf32>
    %298 = vector.broadcast %296 : vector<1x256xf32> to vector<8x256xf32>
    %299 = arith.mulf %297, %298 : vector<8x256xf32>
    %c16_176 = arith.constant 16 : index
    %c0_177 = arith.constant 0 : index
    %300 = vector.load %arg9[%c16_176, %c0_177] : memref<288x256xf32, #tpu.memory_space<vmem>>, vector<8x256xf32>
    tpu.vector_store %arg9[%c16_176, %c0_177], %299 {strides = array<i32>} : memref<288x256xf32, #tpu.memory_space<vmem>>, vector<8x256xf32>,
    %301 = vector.extract_strided_slice %4 {offsets = [3, 0], sizes = [1, 256], strides = [1, 1]} : vector<9x256xf32> to vector<1x256xf32>
    %c1_i32_178 = arith.constant 1 : i32
    %302 = tpu.dynamic_rotate %283 by %c1_i32_178 dim 1 : vector<8x256xf32>, i32 -> vector<8x256xf32>
    %303 = vector.broadcast %301 : vector<1x256xf32> to vector<8x256xf32>
    %304 = arith.mulf %302, %303 : vector<8x256xf32>
    %c24_179 = arith.constant 24 : index
    %c0_180 = arith.constant 0 : index
    %305 = vector.load %arg9[%c24_179, %c0_180] : memref<288x256xf32, #tpu.memory_space<vmem>>, vector<8x256xf32>
    tpu.vector_store %arg9[%c24_179, %c0_180], %304 {strides = array<i32>} : memref<288x256xf32, #tpu.memory_space<vmem>>, vector<8x256xf32>,
    %306 = vector.extract_strided_slice %4 {offsets = [4, 0], sizes = [1, 256], strides = [1, 1]} : vector<9x256xf32> to vector<1x256xf32>
    %307 = vector.broadcast %306 : vector<1x256xf32> to vector<8x256xf32>
    %308 = arith.mulf %283, %307 : vector<8x256xf32>
    %c32_181 = arith.constant 32 : index
    %c0_182 = arith.constant 0 : index
    %309 = vector.load %arg9[%c32_181, %c0_182] : memref<288x256xf32, #tpu.memory_space<vmem>>, vector<8x256xf32>
    tpu.vector_store %arg9[%c32_181, %c0_182], %308 {strides = array<i32>} : memref<288x256xf32, #tpu.memory_space<vmem>>, vector<8x256xf32>,
    %310 = vector.extract_strided_slice %4 {offsets = [5, 0], sizes = [1, 256], strides = [1, 1]} : vector<9x256xf32> to vector<1x256xf32>
    %c255_i32_183 = arith.constant 255 : i32
    %311 = tpu.dynamic_rotate %283 by %c255_i32_183 dim 1 : vector<8x256xf32>, i32 -> vector<8x256xf32>
    %312 = vector.broadcast %310 : vector<1x256xf32> to vector<8x256xf32>
    %313 = arith.mulf %311, %312 : vector<8x256xf32>
    %c40_184 = arith.constant 40 : index
    %c0_185 = arith.constant 0 : index
    %314 = vector.load %arg9[%c40_184, %c0_185] : memref<288x256xf32, #tpu.memory_space<vmem>>, vector<8x256xf32>
    tpu.vector_store %arg9[%c40_184, %c0_185], %313 {strides = array<i32>} : memref<288x256xf32, #tpu.memory_space<vmem>>, vector<8x256xf32>,
    %315 = vector.extract_strided_slice %4 {offsets = [6, 0], sizes = [1, 256], strides = [1, 1]} : vector<9x256xf32> to vector<1x256xf32>
    %c241_i32_186 = arith.constant 241 : i32
    %316 = tpu.dynamic_rotate %283 by %c241_i32_186 dim 1 : vector<8x256xf32>, i32 -> vector<8x256xf32>
    %317 = vector.broadcast %315 : vector<1x256xf32> to vector<8x256xf32>
    %318 = arith.mulf %316, %317 : vector<8x256xf32>
    %c48_187 = arith.constant 48 : index
    %c0_188 = arith.constant 0 : index
    %319 = vector.load %arg9[%c48_187, %c0_188] : memref<288x256xf32, #tpu.memory_space<vmem>>, vector<8x256xf32>
    tpu.vector_store %arg9[%c48_187, %c0_188], %318 {strides = array<i32>} : memref<288x256xf32, #tpu.memory_space<vmem>>, vector<8x256xf32>,
    %320 = vector.extract_strided_slice %4 {offsets = [7, 0], sizes = [1, 256], strides = [1, 1]} : vector<9x256xf32> to vector<1x256xf32>
    %c240_i32_189 = arith.constant 240 : i32
    %321 = tpu.dynamic_rotate %283 by %c240_i32_189 dim 1 : vector<8x256xf32>, i32 -> vector<8x256xf32>
    %322 = vector.broadcast %320 : vector<1x256xf32> to vector<8x256xf32>
    %323 = arith.mulf %321, %322 : vector<8x256xf32>
    %c56_190 = arith.constant 56 : index
    %c0_191 = arith.constant 0 : index
    %324 = vector.load %arg9[%c56_190, %c0_191] : memref<288x256xf32, #tpu.memory_space<vmem>>, vector<8x256xf32>
    tpu.vector_store %arg9[%c56_190, %c0_191], %323 {strides = array<i32>} : memref<288x256xf32, #tpu.memory_space<vmem>>, vector<8x256xf32>,
    %325 = vector.extract_strided_slice %4 {offsets = [8, 0], sizes = [1, 256], strides = [1, 1]} : vector<9x256xf32> to vector<1x256xf32>
    %c239_i32_192 = arith.constant 239 : i32
    %326 = tpu.dynamic_rotate %283 by %c239_i32_192 dim 1 : vector<8x256xf32>, i32 -> vector<8x256xf32>
    %327 = vector.broadcast %325 : vector<1x256xf32> to vector<8x256xf32>
    %328 = arith.mulf %326, %327 : vector<8x256xf32>
    %c64_193 = arith.constant 64 : index
    %c0_194 = arith.constant 0 : index
    %329 = vector.load %arg9[%c64_193, %c0_194] : memref<288x256xf32, #tpu.memory_space<vmem>>, vector<8x256xf32>
    tpu.vector_store %arg9[%c64_193, %c0_194], %328 {strides = array<i32>} : memref<288x256xf32, #tpu.memory_space<vmem>>, vector<8x256xf32>,
    %c0_195 = arith.constant 0 : index
    %c0_196 = arith.constant 0 : index
    %330 = vector.load %arg9[%c0_195, %c0_196] : memref<288x256xf32, #tpu.memory_space<vmem>>, vector<72x256xf32>
    %331 = arith.truncf %330 : vector<72x256xf32> to vector<72x256xbf16>
    %cst_197 = arith.constant dense<0.000000e+00> : vector<8x256xf32>
    %332 = tpu.matmul %285, %331, %cst_197 {dimension_numbers = #tpu.dot_dimension_numbers<[1], [0], [0], [1], [0, 0, 1, 1], [], []>} : vector<8x72xbf16>, vector<72x256xbf16>, vector<8x256xf32> -> vector<8x256xf32>
    %c6 = arith.constant 6 : index
    %c0_198 = arith.constant 0 : index
    %c0_199 = arith.constant 0 : index
    %333 = vector.load %arg7[%c6, %c0_198, %c0_199] : memref<10x8x1xf32, #tpu.memory_space<vmem>>, vector<1x8x1xf32>
    %334 = vector.shape_cast %333 : vector<1x8x1xf32> to vector<8x1xf32>
    %335 = vector.broadcast %334 : vector<8x1xf32> to vector<8x256xf32>
    %336 = arith.addf %332, %335 : vector<8x256xf32>
    %cst_200 = arith.constant 0.000000e+00 : f32
    %337 = vector.broadcast %cst_200 : f32 to vector<8x256xf32>
    %338 = arith.cmpf oge, %336, %337 : vector<8x256xf32>
    %c7 = arith.constant 7 : index
    %c0_201 = arith.constant 0 : index
    %c0_202 = arith.constant 0 : index
    %339 = vector.load %arg7[%c7, %c0_201, %c0_202] : memref<10x8x1xf32, #tpu.memory_space<vmem>>, vector<1x8x1xf32>
    %340 = vector.shape_cast %339 : vector<1x8x1xf32> to vector<8x1xf32>
    %341 = vector.broadcast %340 : vector<8x1xf32> to vector<8x256xf32>
    %342 = arith.mulf %341, %336 : vector<8x256xf32>
    %343 = arith.select %338, %336, %342 : vector<8x256xi1>, vector<8x256xf32>
    %c5_203 = arith.constant 5 : index
    %c0_204 = arith.constant 0 : index
    %c0_205 = arith.constant 0 : index
    %344 = vector.load %arg3[%c5_203, %c0_204, %c0_205] : memref<9x8x72xbf16, #tpu.memory_space<vmem>>, vector<1x8x72xbf16>
    %345 = vector.shape_cast %344 : vector<1x8x72xbf16> to vector<8x72xbf16>
    %346 = vector.extract_strided_slice %4 {offsets = [0, 0], sizes = [1, 256], strides = [1, 1]} : vector<9x256xf32> to vector<1x256xf32>
    %c17_i32_206 = arith.constant 17 : i32
    %347 = tpu.dynamic_rotate %343 by %c17_i32_206 dim 1 : vector<8x256xf32>, i32 -> vector<8x256xf32>
    %348 = vector.broadcast %346 : vector<1x256xf32> to vector<8x256xf32>
    %349 = arith.mulf %347, %348 : vector<8x256xf32>
    %c0_207 = arith.constant 0 : index
    %c0_208 = arith.constant 0 : index
    %350 = vector.load %arg9[%c0_207, %c0_208] : memref<288x256xf32, #tpu.memory_space<vmem>>, vector<8x256xf32>
    tpu.vector_store %arg9[%c0_207, %c0_208], %349 {strides = array<i32>} : memref<288x256xf32, #tpu.memory_space<vmem>>, vector<8x256xf32>,
    %351 = vector.extract_strided_slice %4 {offsets = [1, 0], sizes = [1, 256], strides = [1, 1]} : vector<9x256xf32> to vector<1x256xf32>
    %c16_i32_209 = arith.constant 16 : i32
    %352 = tpu.dynamic_rotate %343 by %c16_i32_209 dim 1 : vector<8x256xf32>, i32 -> vector<8x256xf32>
    %353 = vector.broadcast %351 : vector<1x256xf32> to vector<8x256xf32>
    %354 = arith.mulf %352, %353 : vector<8x256xf32>
    %c8_210 = arith.constant 8 : index
    %c0_211 = arith.constant 0 : index
    %355 = vector.load %arg9[%c8_210, %c0_211] : memref<288x256xf32, #tpu.memory_space<vmem>>, vector<8x256xf32>
    tpu.vector_store %arg9[%c8_210, %c0_211], %354 {strides = array<i32>} : memref<288x256xf32, #tpu.memory_space<vmem>>, vector<8x256xf32>,
    %356 = vector.extract_strided_slice %4 {offsets = [2, 0], sizes = [1, 256], strides = [1, 1]} : vector<9x256xf32> to vector<1x256xf32>
    %c15_i32_212 = arith.constant 15 : i32
    %357 = tpu.dynamic_rotate %343 by %c15_i32_212 dim 1 : vector<8x256xf32>, i32 -> vector<8x256xf32>
    %358 = vector.broadcast %356 : vector<1x256xf32> to vector<8x256xf32>
    %359 = arith.mulf %357, %358 : vector<8x256xf32>
    %c16_213 = arith.constant 16 : index
    %c0_214 = arith.constant 0 : index
    %360 = vector.load %arg9[%c16_213, %c0_214] : memref<288x256xf32, #tpu.memory_space<vmem>>, vector<8x256xf32>
    tpu.vector_store %arg9[%c16_213, %c0_214], %359 {strides = array<i32>} : memref<288x256xf32, #tpu.memory_space<vmem>>, vector<8x256xf32>,
    %361 = vector.extract_strided_slice %4 {offsets = [3, 0], sizes = [1, 256], strides = [1, 1]} : vector<9x256xf32> to vector<1x256xf32>
    %c1_i32_215 = arith.constant 1 : i32
    %362 = tpu.dynamic_rotate %343 by %c1_i32_215 dim 1 : vector<8x256xf32>, i32 -> vector<8x256xf32>
    %363 = vector.broadcast %361 : vector<1x256xf32> to vector<8x256xf32>
    %364 = arith.mulf %362, %363 : vector<8x256xf32>
    %c24_216 = arith.constant 24 : index
    %c0_217 = arith.constant 0 : index
    %365 = vector.load %arg9[%c24_216, %c0_217] : memref<288x256xf32, #tpu.memory_space<vmem>>, vector<8x256xf32>
    tpu.vector_store %arg9[%c24_216, %c0_217], %364 {strides = array<i32>} : memref<288x256xf32, #tpu.memory_space<vmem>>, vector<8x256xf32>,
    %366 = vector.extract_strided_slice %4 {offsets = [4, 0], sizes = [1, 256], strides = [1, 1]} : vector<9x256xf32> to vector<1x256xf32>
    %367 = vector.broadcast %366 : vector<1x256xf32> to vector<8x256xf32>
    %368 = arith.mulf %343, %367 : vector<8x256xf32>
    %c32_218 = arith.constant 32 : index
    %c0_219 = arith.constant 0 : index
    %369 = vector.load %arg9[%c32_218, %c0_219] : memref<288x256xf32, #tpu.memory_space<vmem>>, vector<8x256xf32>
    tpu.vector_store %arg9[%c32_218, %c0_219], %368 {strides = array<i32>} : memref<288x256xf32, #tpu.memory_space<vmem>>, vector<8x256xf32>,
    %370 = vector.extract_strided_slice %4 {offsets = [5, 0], sizes = [1, 256], strides = [1, 1]} : vector<9x256xf32> to vector<1x256xf32>
    %c255_i32_220 = arith.constant 255 : i32
    %371 = tpu.dynamic_rotate %343 by %c255_i32_220 dim 1 : vector<8x256xf32>, i32 -> vector<8x256xf32>
    %372 = vector.broadcast %370 : vector<1x256xf32> to vector<8x256xf32>
    %373 = arith.mulf %371, %372 : vector<8x256xf32>
    %c40_221 = arith.constant 40 : index
    %c0_222 = arith.constant 0 : index
    %374 = vector.load %arg9[%c40_221, %c0_222] : memref<288x256xf32, #tpu.memory_space<vmem>>, vector<8x256xf32>
    tpu.vector_store %arg9[%c40_221, %c0_222], %373 {strides = array<i32>} : memref<288x256xf32, #tpu.memory_space<vmem>>, vector<8x256xf32>,
    %375 = vector.extract_strided_slice %4 {offsets = [6, 0], sizes = [1, 256], strides = [1, 1]} : vector<9x256xf32> to vector<1x256xf32>
    %c241_i32_223 = arith.constant 241 : i32
    %376 = tpu.dynamic_rotate %343 by %c241_i32_223 dim 1 : vector<8x256xf32>, i32 -> vector<8x256xf32>
    %377 = vector.broadcast %375 : vector<1x256xf32> to vector<8x256xf32>
    %378 = arith.mulf %376, %377 : vector<8x256xf32>
    %c48_224 = arith.constant 48 : index
    %c0_225 = arith.constant 0 : index
    %379 = vector.load %arg9[%c48_224, %c0_225] : memref<288x256xf32, #tpu.memory_space<vmem>>, vector<8x256xf32>
    tpu.vector_store %arg9[%c48_224, %c0_225], %378 {strides = array<i32>} : memref<288x256xf32, #tpu.memory_space<vmem>>, vector<8x256xf32>,
    %380 = vector.extract_strided_slice %4 {offsets = [7, 0], sizes = [1, 256], strides = [1, 1]} : vector<9x256xf32> to vector<1x256xf32>
    %c240_i32_226 = arith.constant 240 : i32
    %381 = tpu.dynamic_rotate %343 by %c240_i32_226 dim 1 : vector<8x256xf32>, i32 -> vector<8x256xf32>
    %382 = vector.broadcast %380 : vector<1x256xf32> to vector<8x256xf32>
    %383 = arith.mulf %381, %382 : vector<8x256xf32>
    %c56_227 = arith.constant 56 : index
    %c0_228 = arith.constant 0 : index
    %384 = vector.load %arg9[%c56_227, %c0_228] : memref<288x256xf32, #tpu.memory_space<vmem>>, vector<8x256xf32>
    tpu.vector_store %arg9[%c56_227, %c0_228], %383 {strides = array<i32>} : memref<288x256xf32, #tpu.memory_space<vmem>>, vector<8x256xf32>,
    %385 = vector.extract_strided_slice %4 {offsets = [8, 0], sizes = [1, 256], strides = [1, 1]} : vector<9x256xf32> to vector<1x256xf32>
    %c239_i32_229 = arith.constant 239 : i32
    %386 = tpu.dynamic_rotate %343 by %c239_i32_229 dim 1 : vector<8x256xf32>, i32 -> vector<8x256xf32>
    %387 = vector.broadcast %385 : vector<1x256xf32> to vector<8x256xf32>
    %388 = arith.mulf %386, %387 : vector<8x256xf32>
    %c64_230 = arith.constant 64 : index
    %c0_231 = arith.constant 0 : index
    %389 = vector.load %arg9[%c64_230, %c0_231] : memref<288x256xf32, #tpu.memory_space<vmem>>, vector<8x256xf32>
    tpu.vector_store %arg9[%c64_230, %c0_231], %388 {strides = array<i32>} : memref<288x256xf32, #tpu.memory_space<vmem>>, vector<8x256xf32>,
    %c0_232 = arith.constant 0 : index
    %c0_233 = arith.constant 0 : index
    %390 = vector.load %arg9[%c0_232, %c0_233] : memref<288x256xf32, #tpu.memory_space<vmem>>, vector<72x256xf32>
    %391 = arith.truncf %390 : vector<72x256xf32> to vector<72x256xbf16>
    %cst_234 = arith.constant dense<0.000000e+00> : vector<8x256xf32>
    %392 = tpu.matmul %345, %391, %cst_234 {dimension_numbers = #tpu.dot_dimension_numbers<[1], [0], [0], [1], [0, 0, 1, 1], [], []>} : vector<8x72xbf16>, vector<72x256xbf16>, vector<8x256xf32> -> vector<8x256xf32>
    %c8_235 = arith.constant 8 : index
    %c0_236 = arith.constant 0 : index
    %c0_237 = arith.constant 0 : index
    %393 = vector.load %arg7[%c8_235, %c0_236, %c0_237] : memref<10x8x1xf32, #tpu.memory_space<vmem>>, vector<1x8x1xf32>
    %394 = vector.shape_cast %393 : vector<1x8x1xf32> to vector<8x1xf32>
    %395 = vector.broadcast %394 : vector<8x1xf32> to vector<8x256xf32>
    %396 = arith.addf %392, %395 : vector<8x256xf32>
    %c6_238 = arith.constant 6 : index
    %c0_239 = arith.constant 0 : index
    %c0_240 = arith.constant 0 : index
    %397 = vector.load %arg3[%c6_238, %c0_239, %c0_240] : memref<9x8x72xbf16, #tpu.memory_space<vmem>>, vector<1x8x72xbf16>
    %398 = vector.shape_cast %397 : vector<1x8x72xbf16> to vector<8x72xbf16>
    %399 = vector.extract_strided_slice %6 {offsets = [0, 0], sizes = [1, 256], strides = [1, 1]} : vector<9x256xf32> to vector<1x256xf32>
    %c51_i32 = arith.constant 51 : i32
    %400 = tpu.dynamic_rotate %396 by %c51_i32 dim 1 : vector<8x256xf32>, i32 -> vector<8x256xf32>
    %401 = vector.broadcast %399 : vector<1x256xf32> to vector<8x256xf32>
    %402 = arith.mulf %400, %401 : vector<8x256xf32>
    %c0_241 = arith.constant 0 : index
    %c0_242 = arith.constant 0 : index
    %403 = vector.load %arg9[%c0_241, %c0_242] : memref<288x256xf32, #tpu.memory_space<vmem>>, vector<8x256xf32>
    tpu.vector_store %arg9[%c0_241, %c0_242], %402 {strides = array<i32>} : memref<288x256xf32, #tpu.memory_space<vmem>>, vector<8x256xf32>,
    %404 = vector.extract_strided_slice %6 {offsets = [1, 0], sizes = [1, 256], strides = [1, 1]} : vector<9x256xf32> to vector<1x256xf32>
    %c48_i32 = arith.constant 48 : i32
    %405 = tpu.dynamic_rotate %396 by %c48_i32 dim 1 : vector<8x256xf32>, i32 -> vector<8x256xf32>
    %406 = vector.broadcast %404 : vector<1x256xf32> to vector<8x256xf32>
    %407 = arith.mulf %405, %406 : vector<8x256xf32>
    %c8_243 = arith.constant 8 : index
    %c0_244 = arith.constant 0 : index
    %408 = vector.load %arg9[%c8_243, %c0_244] : memref<288x256xf32, #tpu.memory_space<vmem>>, vector<8x256xf32>
    tpu.vector_store %arg9[%c8_243, %c0_244], %407 {strides = array<i32>} : memref<288x256xf32, #tpu.memory_space<vmem>>, vector<8x256xf32>,
    %409 = vector.extract_strided_slice %6 {offsets = [2, 0], sizes = [1, 256], strides = [1, 1]} : vector<9x256xf32> to vector<1x256xf32>
    %c45_i32 = arith.constant 45 : i32
    %410 = tpu.dynamic_rotate %396 by %c45_i32 dim 1 : vector<8x256xf32>, i32 -> vector<8x256xf32>
    %411 = vector.broadcast %409 : vector<1x256xf32> to vector<8x256xf32>
    %412 = arith.mulf %410, %411 : vector<8x256xf32>
    %c16_245 = arith.constant 16 : index
    %c0_246 = arith.constant 0 : index
    %413 = vector.load %arg9[%c16_245, %c0_246] : memref<288x256xf32, #tpu.memory_space<vmem>>, vector<8x256xf32>
    tpu.vector_store %arg9[%c16_245, %c0_246], %412 {strides = array<i32>} : memref<288x256xf32, #tpu.memory_space<vmem>>, vector<8x256xf32>,
    %414 = vector.extract_strided_slice %6 {offsets = [3, 0], sizes = [1, 256], strides = [1, 1]} : vector<9x256xf32> to vector<1x256xf32>
    %c3_i32 = arith.constant 3 : i32
    %415 = tpu.dynamic_rotate %396 by %c3_i32 dim 1 : vector<8x256xf32>, i32 -> vector<8x256xf32>
    %416 = vector.broadcast %414 : vector<1x256xf32> to vector<8x256xf32>
    %417 = arith.mulf %415, %416 : vector<8x256xf32>
    %c24_247 = arith.constant 24 : index
    %c0_248 = arith.constant 0 : index
    %418 = vector.load %arg9[%c24_247, %c0_248] : memref<288x256xf32, #tpu.memory_space<vmem>>, vector<8x256xf32>
    tpu.vector_store %arg9[%c24_247, %c0_248], %417 {strides = array<i32>} : memref<288x256xf32, #tpu.memory_space<vmem>>, vector<8x256xf32>,
    %419 = vector.extract_strided_slice %6 {offsets = [4, 0], sizes = [1, 256], strides = [1, 1]} : vector<9x256xf32> to vector<1x256xf32>
    %420 = vector.broadcast %419 : vector<1x256xf32> to vector<8x256xf32>
    %421 = arith.mulf %396, %420 : vector<8x256xf32>
    %c32_249 = arith.constant 32 : index
    %c0_250 = arith.constant 0 : index
    %422 = vector.load %arg9[%c32_249, %c0_250] : memref<288x256xf32, #tpu.memory_space<vmem>>, vector<8x256xf32>
    tpu.vector_store %arg9[%c32_249, %c0_250], %421 {strides = array<i32>} : memref<288x256xf32, #tpu.memory_space<vmem>>, vector<8x256xf32>,
    %423 = vector.extract_strided_slice %6 {offsets = [5, 0], sizes = [1, 256], strides = [1, 1]} : vector<9x256xf32> to vector<1x256xf32>
    %c253_i32 = arith.constant 253 : i32
    %424 = tpu.dynamic_rotate %396 by %c253_i32 dim 1 : vector<8x256xf32>, i32 -> vector<8x256xf32>
    %425 = vector.broadcast %423 : vector<1x256xf32> to vector<8x256xf32>
    %426 = arith.mulf %424, %425 : vector<8x256xf32>
    %c40_251 = arith.constant 40 : index
    %c0_252 = arith.constant 0 : index
    %427 = vector.load %arg9[%c40_251, %c0_252] : memref<288x256xf32, #tpu.memory_space<vmem>>, vector<8x256xf32>
    tpu.vector_store %arg9[%c40_251, %c0_252], %426 {strides = array<i32>} : memref<288x256xf32, #tpu.memory_space<vmem>>, vector<8x256xf32>,
    %428 = vector.extract_strided_slice %6 {offsets = [6, 0], sizes = [1, 256], strides = [1, 1]} : vector<9x256xf32> to vector<1x256xf32>
    %c211_i32 = arith.constant 211 : i32
    %429 = tpu.dynamic_rotate %396 by %c211_i32 dim 1 : vector<8x256xf32>, i32 -> vector<8x256xf32>
    %430 = vector.broadcast %428 : vector<1x256xf32> to vector<8x256xf32>
    %431 = arith.mulf %429, %430 : vector<8x256xf32>
    %c48_253 = arith.constant 48 : index
    %c0_254 = arith.constant 0 : index
    %432 = vector.load %arg9[%c48_253, %c0_254] : memref<288x256xf32, #tpu.memory_space<vmem>>, vector<8x256xf32>
    tpu.vector_store %arg9[%c48_253, %c0_254], %431 {strides = array<i32>} : memref<288x256xf32, #tpu.memory_space<vmem>>, vector<8x256xf32>,
    %433 = vector.extract_strided_slice %6 {offsets = [7, 0], sizes = [1, 256], strides = [1, 1]} : vector<9x256xf32> to vector<1x256xf32>
    %c208_i32 = arith.constant 208 : i32
    %434 = tpu.dynamic_rotate %396 by %c208_i32 dim 1 : vector<8x256xf32>, i32 -> vector<8x256xf32>
    %435 = vector.broadcast %433 : vector<1x256xf32> to vector<8x256xf32>
    %436 = arith.mulf %434, %435 : vector<8x256xf32>
    %c56_255 = arith.constant 56 : index
    %c0_256 = arith.constant 0 : index
    %437 = vector.load %arg9[%c56_255, %c0_256] : memref<288x256xf32, #tpu.memory_space<vmem>>, vector<8x256xf32>
    tpu.vector_store %arg9[%c56_255, %c0_256], %436 {strides = array<i32>} : memref<288x256xf32, #tpu.memory_space<vmem>>, vector<8x256xf32>,
    %438 = vector.extract_strided_slice %6 {offsets = [8, 0], sizes = [1, 256], strides = [1, 1]} : vector<9x256xf32> to vector<1x256xf32>
    %c205_i32 = arith.constant 205 : i32
    %439 = tpu.dynamic_rotate %396 by %c205_i32 dim 1 : vector<8x256xf32>, i32 -> vector<8x256xf32>
    %440 = vector.broadcast %438 : vector<1x256xf32> to vector<8x256xf32>
    %441 = arith.mulf %439, %440 : vector<8x256xf32>
    %c64_257 = arith.constant 64 : index
    %c0_258 = arith.constant 0 : index
    %442 = vector.load %arg9[%c64_257, %c0_258] : memref<288x256xf32, #tpu.memory_space<vmem>>, vector<8x256xf32>
    tpu.vector_store %arg9[%c64_257, %c0_258], %441 {strides = array<i32>} : memref<288x256xf32, #tpu.memory_space<vmem>>, vector<8x256xf32>,
    %c0_259 = arith.constant 0 : index
    %c0_260 = arith.constant 0 : index
    %443 = vector.load %arg9[%c0_259, %c0_260] : memref<288x256xf32, #tpu.memory_space<vmem>>, vector<72x256xf32>
    %444 = arith.truncf %443 : vector<72x256xf32> to vector<72x256xbf16>
    %cst_261 = arith.constant dense<0.000000e+00> : vector<8x256xf32>
    %445 = tpu.matmul %398, %444, %cst_261 {dimension_numbers = #tpu.dot_dimension_numbers<[1], [0], [0], [1], [0, 0, 1, 1], [], []>} : vector<8x72xbf16>, vector<72x256xbf16>, vector<8x256xf32> -> vector<8x256xf32>
    %c7_262 = arith.constant 7 : index
    %c0_263 = arith.constant 0 : index
    %c0_264 = arith.constant 0 : index
    %446 = vector.load %arg3[%c7_262, %c0_263, %c0_264] : memref<9x8x72xbf16, #tpu.memory_space<vmem>>, vector<1x8x72xbf16>
    %447 = vector.shape_cast %446 : vector<1x8x72xbf16> to vector<8x72xbf16>
    %448 = vector.extract_strided_slice %8 {offsets = [0, 0], sizes = [1, 256], strides = [1, 1]} : vector<9x256xf32> to vector<1x256xf32>
    %c85_i32 = arith.constant 85 : i32
    %449 = tpu.dynamic_rotate %396 by %c85_i32 dim 1 : vector<8x256xf32>, i32 -> vector<8x256xf32>
    %450 = vector.broadcast %448 : vector<1x256xf32> to vector<8x256xf32>
    %451 = arith.mulf %449, %450 : vector<8x256xf32>
    %c0_265 = arith.constant 0 : index
    %c0_266 = arith.constant 0 : index
    %452 = vector.load %arg9[%c0_265, %c0_266] : memref<288x256xf32, #tpu.memory_space<vmem>>, vector<8x256xf32>
    tpu.vector_store %arg9[%c0_265, %c0_266], %451 {strides = array<i32>} : memref<288x256xf32, #tpu.memory_space<vmem>>, vector<8x256xf32>,
    %453 = vector.extract_strided_slice %8 {offsets = [1, 0], sizes = [1, 256], strides = [1, 1]} : vector<9x256xf32> to vector<1x256xf32>
    %c80_i32 = arith.constant 80 : i32
    %454 = tpu.dynamic_rotate %396 by %c80_i32 dim 1 : vector<8x256xf32>, i32 -> vector<8x256xf32>
    %455 = vector.broadcast %453 : vector<1x256xf32> to vector<8x256xf32>
    %456 = arith.mulf %454, %455 : vector<8x256xf32>
    %c8_267 = arith.constant 8 : index
    %c0_268 = arith.constant 0 : index
    %457 = vector.load %arg9[%c8_267, %c0_268] : memref<288x256xf32, #tpu.memory_space<vmem>>, vector<8x256xf32>
    tpu.vector_store %arg9[%c8_267, %c0_268], %456 {strides = array<i32>} : memref<288x256xf32, #tpu.memory_space<vmem>>, vector<8x256xf32>,
    %458 = vector.extract_strided_slice %8 {offsets = [2, 0], sizes = [1, 256], strides = [1, 1]} : vector<9x256xf32> to vector<1x256xf32>
    %c75_i32 = arith.constant 75 : i32
    %459 = tpu.dynamic_rotate %396 by %c75_i32 dim 1 : vector<8x256xf32>, i32 -> vector<8x256xf32>
    %460 = vector.broadcast %458 : vector<1x256xf32> to vector<8x256xf32>
    %461 = arith.mulf %459, %460 : vector<8x256xf32>
    %c16_269 = arith.constant 16 : index
    %c0_270 = arith.constant 0 : index
    %462 = vector.load %arg9[%c16_269, %c0_270] : memref<288x256xf32, #tpu.memory_space<vmem>>, vector<8x256xf32>
    tpu.vector_store %arg9[%c16_269, %c0_270], %461 {strides = array<i32>} : memref<288x256xf32, #tpu.memory_space<vmem>>, vector<8x256xf32>,
    %463 = vector.extract_strided_slice %8 {offsets = [3, 0], sizes = [1, 256], strides = [1, 1]} : vector<9x256xf32> to vector<1x256xf32>
    %c5_i32 = arith.constant 5 : i32
    %464 = tpu.dynamic_rotate %396 by %c5_i32 dim 1 : vector<8x256xf32>, i32 -> vector<8x256xf32>
    %465 = vector.broadcast %463 : vector<1x256xf32> to vector<8x256xf32>
    %466 = arith.mulf %464, %465 : vector<8x256xf32>
    %c24_271 = arith.constant 24 : index
    %c0_272 = arith.constant 0 : index
    %467 = vector.load %arg9[%c24_271, %c0_272] : memref<288x256xf32, #tpu.memory_space<vmem>>, vector<8x256xf32>
    tpu.vector_store %arg9[%c24_271, %c0_272], %466 {strides = array<i32>} : memref<288x256xf32, #tpu.memory_space<vmem>>, vector<8x256xf32>,
    %468 = vector.extract_strided_slice %8 {offsets = [4, 0], sizes = [1, 256], strides = [1, 1]} : vector<9x256xf32> to vector<1x256xf32>
    %469 = vector.broadcast %468 : vector<1x256xf32> to vector<8x256xf32>
    %470 = arith.mulf %396, %469 : vector<8x256xf32>
    %c32_273 = arith.constant 32 : index
    %c0_274 = arith.constant 0 : index
    %471 = vector.load %arg9[%c32_273, %c0_274] : memref<288x256xf32, #tpu.memory_space<vmem>>, vector<8x256xf32>
    tpu.vector_store %arg9[%c32_273, %c0_274], %470 {strides = array<i32>} : memref<288x256xf32, #tpu.memory_space<vmem>>, vector<8x256xf32>,
    %472 = vector.extract_strided_slice %8 {offsets = [5, 0], sizes = [1, 256], strides = [1, 1]} : vector<9x256xf32> to vector<1x256xf32>
    %c251_i32 = arith.constant 251 : i32
    %473 = tpu.dynamic_rotate %396 by %c251_i32 dim 1 : vector<8x256xf32>, i32 -> vector<8x256xf32>
    %474 = vector.broadcast %472 : vector<1x256xf32> to vector<8x256xf32>
    %475 = arith.mulf %473, %474 : vector<8x256xf32>
    %c40_275 = arith.constant 40 : index
    %c0_276 = arith.constant 0 : index
    %476 = vector.load %arg9[%c40_275, %c0_276] : memref<288x256xf32, #tpu.memory_space<vmem>>, vector<8x256xf32>
    tpu.vector_store %arg9[%c40_275, %c0_276], %475 {strides = array<i32>} : memref<288x256xf32, #tpu.memory_space<vmem>>, vector<8x256xf32>,
    %477 = vector.extract_strided_slice %8 {offsets = [6, 0], sizes = [1, 256], strides = [1, 1]} : vector<9x256xf32> to vector<1x256xf32>
    %c181_i32 = arith.constant 181 : i32
    %478 = tpu.dynamic_rotate %396 by %c181_i32 dim 1 : vector<8x256xf32>, i32 -> vector<8x256xf32>
    %479 = vector.broadcast %477 : vector<1x256xf32> to vector<8x256xf32>
    %480 = arith.mulf %478, %479 : vector<8x256xf32>
    %c48_277 = arith.constant 48 : index
    %c0_278 = arith.constant 0 : index
    %481 = vector.load %arg9[%c48_277, %c0_278] : memref<288x256xf32, #tpu.memory_space<vmem>>, vector<8x256xf32>
    tpu.vector_store %arg9[%c48_277, %c0_278], %480 {strides = array<i32>} : memref<288x256xf32, #tpu.memory_space<vmem>>, vector<8x256xf32>,
    %482 = vector.extract_strided_slice %8 {offsets = [7, 0], sizes = [1, 256], strides = [1, 1]} : vector<9x256xf32> to vector<1x256xf32>
    %c176_i32 = arith.constant 176 : i32
    %483 = tpu.dynamic_rotate %396 by %c176_i32 dim 1 : vector<8x256xf32>, i32 -> vector<8x256xf32>
    %484 = vector.broadcast %482 : vector<1x256xf32> to vector<8x256xf32>
    %485 = arith.mulf %483, %484 : vector<8x256xf32>
    %c56_279 = arith.constant 56 : index
    %c0_280 = arith.constant 0 : index
    %486 = vector.load %arg9[%c56_279, %c0_280] : memref<288x256xf32, #tpu.memory_space<vmem>>, vector<8x256xf32>
    tpu.vector_store %arg9[%c56_279, %c0_280], %485 {strides = array<i32>} : memref<288x256xf32, #tpu.memory_space<vmem>>, vector<8x256xf32>,
    %487 = vector.extract_strided_slice %8 {offsets = [8, 0], sizes = [1, 256], strides = [1, 1]} : vector<9x256xf32> to vector<1x256xf32>
    %c171_i32 = arith.constant 171 : i32
    %488 = tpu.dynamic_rotate %396 by %c171_i32 dim 1 : vector<8x256xf32>, i32 -> vector<8x256xf32>
    %489 = vector.broadcast %487 : vector<1x256xf32> to vector<8x256xf32>
    %490 = arith.mulf %488, %489 : vector<8x256xf32>
    %c64_281 = arith.constant 64 : index
    %c0_282 = arith.constant 0 : index
    %491 = vector.load %arg9[%c64_281, %c0_282] : memref<288x256xf32, #tpu.memory_space<vmem>>, vector<8x256xf32>
    tpu.vector_store %arg9[%c64_281, %c0_282], %490 {strides = array<i32>} : memref<288x256xf32, #tpu.memory_space<vmem>>, vector<8x256xf32>,
    %c0_283 = arith.constant 0 : index
    %c0_284 = arith.constant 0 : index
    %492 = vector.load %arg9[%c0_283, %c0_284] : memref<288x256xf32, #tpu.memory_space<vmem>>, vector<72x256xf32>
    %493 = arith.truncf %492 : vector<72x256xf32> to vector<72x256xbf16>
    %cst_285 = arith.constant dense<0.000000e+00> : vector<8x256xf32>
    %494 = tpu.matmul %447, %493, %cst_285 {dimension_numbers = #tpu.dot_dimension_numbers<[1], [0], [0], [1], [0, 0, 1, 1], [], []>} : vector<8x72xbf16>, vector<72x256xbf16>, vector<8x256xf32> -> vector<8x256xf32>
    %c8_286 = arith.constant 8 : index
    %c0_287 = arith.constant 0 : index
    %c0_288 = arith.constant 0 : index
    %495 = vector.load %arg3[%c8_286, %c0_287, %c0_288] : memref<9x8x72xbf16, #tpu.memory_space<vmem>>, vector<1x8x72xbf16>
    %496 = vector.shape_cast %495 : vector<1x8x72xbf16> to vector<8x72xbf16>
    %497 = vector.extract_strided_slice %10 {offsets = [0, 0], sizes = [1, 256], strides = [1, 1]} : vector<9x256xf32> to vector<1x256xf32>
    %c119_i32 = arith.constant 119 : i32
    %498 = tpu.dynamic_rotate %396 by %c119_i32 dim 1 : vector<8x256xf32>, i32 -> vector<8x256xf32>
    %499 = vector.broadcast %497 : vector<1x256xf32> to vector<8x256xf32>
    %500 = arith.mulf %498, %499 : vector<8x256xf32>
    %c0_289 = arith.constant 0 : index
    %c0_290 = arith.constant 0 : index
    %501 = vector.load %arg9[%c0_289, %c0_290] : memref<288x256xf32, #tpu.memory_space<vmem>>, vector<8x256xf32>
    tpu.vector_store %arg9[%c0_289, %c0_290], %500 {strides = array<i32>} : memref<288x256xf32, #tpu.memory_space<vmem>>, vector<8x256xf32>,
    %502 = vector.extract_strided_slice %10 {offsets = [1, 0], sizes = [1, 256], strides = [1, 1]} : vector<9x256xf32> to vector<1x256xf32>
    %c112_i32 = arith.constant 112 : i32
    %503 = tpu.dynamic_rotate %396 by %c112_i32 dim 1 : vector<8x256xf32>, i32 -> vector<8x256xf32>
    %504 = vector.broadcast %502 : vector<1x256xf32> to vector<8x256xf32>
    %505 = arith.mulf %503, %504 : vector<8x256xf32>
    %c8_291 = arith.constant 8 : index
    %c0_292 = arith.constant 0 : index
    %506 = vector.load %arg9[%c8_291, %c0_292] : memref<288x256xf32, #tpu.memory_space<vmem>>, vector<8x256xf32>
    tpu.vector_store %arg9[%c8_291, %c0_292], %505 {strides = array<i32>} : memref<288x256xf32, #tpu.memory_space<vmem>>, vector<8x256xf32>,
    %507 = vector.extract_strided_slice %10 {offsets = [2, 0], sizes = [1, 256], strides = [1, 1]} : vector<9x256xf32> to vector<1x256xf32>
    %c105_i32 = arith.constant 105 : i32
    %508 = tpu.dynamic_rotate %396 by %c105_i32 dim 1 : vector<8x256xf32>, i32 -> vector<8x256xf32>
    %509 = vector.broadcast %507 : vector<1x256xf32> to vector<8x256xf32>
    %510 = arith.mulf %508, %509 : vector<8x256xf32>
    %c16_293 = arith.constant 16 : index
    %c0_294 = arith.constant 0 : index
    %511 = vector.load %arg9[%c16_293, %c0_294] : memref<288x256xf32, #tpu.memory_space<vmem>>, vector<8x256xf32>
    tpu.vector_store %arg9[%c16_293, %c0_294], %510 {strides = array<i32>} : memref<288x256xf32, #tpu.memory_space<vmem>>, vector<8x256xf32>,
    %512 = vector.extract_strided_slice %10 {offsets = [3, 0], sizes = [1, 256], strides = [1, 1]} : vector<9x256xf32> to vector<1x256xf32>
    %c7_i32 = arith.constant 7 : i32
    %513 = tpu.dynamic_rotate %396 by %c7_i32 dim 1 : vector<8x256xf32>, i32 -> vector<8x256xf32>
    %514 = vector.broadcast %512 : vector<1x256xf32> to vector<8x256xf32>
    %515 = arith.mulf %513, %514 : vector<8x256xf32>
    %c24_295 = arith.constant 24 : index
    %c0_296 = arith.constant 0 : index
    %516 = vector.load %arg9[%c24_295, %c0_296] : memref<288x256xf32, #tpu.memory_space<vmem>>, vector<8x256xf32>
    tpu.vector_store %arg9[%c24_295, %c0_296], %515 {strides = array<i32>} : memref<288x256xf32, #tpu.memory_space<vmem>>, vector<8x256xf32>,
    %517 = vector.extract_strided_slice %10 {offsets = [4, 0], sizes = [1, 256], strides = [1, 1]} : vector<9x256xf32> to vector<1x256xf32>
    %518 = vector.broadcast %517 : vector<1x256xf32> to vector<8x256xf32>
    %519 = arith.mulf %396, %518 : vector<8x256xf32>
    %c32_297 = arith.constant 32 : index
    %c0_298 = arith.constant 0 : index
    %520 = vector.load %arg9[%c32_297, %c0_298] : memref<288x256xf32, #tpu.memory_space<vmem>>, vector<8x256xf32>
    tpu.vector_store %arg9[%c32_297, %c0_298], %519 {strides = array<i32>} : memref<288x256xf32, #tpu.memory_space<vmem>>, vector<8x256xf32>,
    %521 = vector.extract_strided_slice %10 {offsets = [5, 0], sizes = [1, 256], strides = [1, 1]} : vector<9x256xf32> to vector<1x256xf32>
    %c249_i32 = arith.constant 249 : i32
    %522 = tpu.dynamic_rotate %396 by %c249_i32 dim 1 : vector<8x256xf32>, i32 -> vector<8x256xf32>
    %523 = vector.broadcast %521 : vector<1x256xf32> to vector<8x256xf32>
    %524 = arith.mulf %522, %523 : vector<8x256xf32>
    %c40_299 = arith.constant 40 : index
    %c0_300 = arith.constant 0 : index
    %525 = vector.load %arg9[%c40_299, %c0_300] : memref<288x256xf32, #tpu.memory_space<vmem>>, vector<8x256xf32>
    tpu.vector_store %arg9[%c40_299, %c0_300], %524 {strides = array<i32>} : memref<288x256xf32, #tpu.memory_space<vmem>>, vector<8x256xf32>,
    %526 = vector.extract_strided_slice %10 {offsets = [6, 0], sizes = [1, 256], strides = [1, 1]} : vector<9x256xf32> to vector<1x256xf32>
    %c151_i32 = arith.constant 151 : i32
    %527 = tpu.dynamic_rotate %396 by %c151_i32 dim 1 : vector<8x256xf32>, i32 -> vector<8x256xf32>
    %528 = vector.broadcast %526 : vector<1x256xf32> to vector<8x256xf32>
    %529 = arith.mulf %527, %528 : vector<8x256xf32>
    %c48_301 = arith.constant 48 : index
    %c0_302 = arith.constant 0 : index
    %530 = vector.load %arg9[%c48_301, %c0_302] : memref<288x256xf32, #tpu.memory_space<vmem>>, vector<8x256xf32>
    tpu.vector_store %arg9[%c48_301, %c0_302], %529 {strides = array<i32>} : memref<288x256xf32, #tpu.memory_space<vmem>>, vector<8x256xf32>,
    %531 = vector.extract_strided_slice %10 {offsets = [7, 0], sizes = [1, 256], strides = [1, 1]} : vector<9x256xf32> to vector<1x256xf32>
    %c144_i32 = arith.constant 144 : i32
    %532 = tpu.dynamic_rotate %396 by %c144_i32 dim 1 : vector<8x256xf32>, i32 -> vector<8x256xf32>
    %533 = vector.broadcast %531 : vector<1x256xf32> to vector<8x256xf32>
    %534 = arith.mulf %532, %533 : vector<8x256xf32>
    %c56_303 = arith.constant 56 : index
    %c0_304 = arith.constant 0 : index
    %535 = vector.load %arg9[%c56_303, %c0_304] : memref<288x256xf32, #tpu.memory_space<vmem>>, vector<8x256xf32>
    tpu.vector_store %arg9[%c56_303, %c0_304], %534 {strides = array<i32>} : memref<288x256xf32, #tpu.memory_space<vmem>>, vector<8x256xf32>,
    %536 = vector.extract_strided_slice %10 {offsets = [8, 0], sizes = [1, 256], strides = [1, 1]} : vector<9x256xf32> to vector<1x256xf32>
    %c137_i32 = arith.constant 137 : i32
    %537 = tpu.dynamic_rotate %396 by %c137_i32 dim 1 : vector<8x256xf32>, i32 -> vector<8x256xf32>
    %538 = vector.broadcast %536 : vector<1x256xf32> to vector<8x256xf32>
    %539 = arith.mulf %537, %538 : vector<8x256xf32>
    %c64_305 = arith.constant 64 : index
    %c0_306 = arith.constant 0 : index
    %540 = vector.load %arg9[%c64_305, %c0_306] : memref<288x256xf32, #tpu.memory_space<vmem>>, vector<8x256xf32>
    tpu.vector_store %arg9[%c64_305, %c0_306], %539 {strides = array<i32>} : memref<288x256xf32, #tpu.memory_space<vmem>>, vector<8x256xf32>,
    %c0_307 = arith.constant 0 : index
    %c0_308 = arith.constant 0 : index
    %541 = vector.load %arg9[%c0_307, %c0_308] : memref<288x256xf32, #tpu.memory_space<vmem>>, vector<72x256xf32>
    %542 = arith.truncf %541 : vector<72x256xf32> to vector<72x256xbf16>
    %cst_309 = arith.constant dense<0.000000e+00> : vector<8x256xf32>
    %543 = tpu.matmul %496, %542, %cst_309 {dimension_numbers = #tpu.dot_dimension_numbers<[1], [0], [0], [1], [0, 0, 1, 1], [], []>} : vector<8x72xbf16>, vector<72x256xbf16>, vector<8x256xf32> -> vector<8x256xf32>
    %c0_310 = arith.constant 0 : index
    %c0_311 = arith.constant 0 : index
    %544 = vector.load %arg6[%c0_310, %c0_311] : memref<1x288xbf16, #tpu.memory_space<vmem>>, vector<1x288xbf16>
    %545 = vector.extract_strided_slice %4 {offsets = [0, 0], sizes = [1, 256], strides = [1, 1]} : vector<9x256xf32> to vector<1x256xf32>
    %c17_i32_312 = arith.constant 17 : i32
    %546 = tpu.dynamic_rotate %396 by %c17_i32_312 dim 1 : vector<8x256xf32>, i32 -> vector<8x256xf32>
    %547 = vector.broadcast %545 : vector<1x256xf32> to vector<8x256xf32>
    %548 = arith.mulf %546, %547 : vector<8x256xf32>
    %c0_313 = arith.constant 0 : index
    %c0_314 = arith.constant 0 : index
    %549 = vector.load %arg9[%c0_313, %c0_314] : memref<288x256xf32, #tpu.memory_space<vmem>>, vector<8x256xf32>
    tpu.vector_store %arg9[%c0_313, %c0_314], %548 {strides = array<i32>} : memref<288x256xf32, #tpu.memory_space<vmem>>, vector<8x256xf32>,
    %c17_i32_315 = arith.constant 17 : i32
    %550 = tpu.dynamic_rotate %445 by %c17_i32_315 dim 1 : vector<8x256xf32>, i32 -> vector<8x256xf32>
    %551 = vector.broadcast %545 : vector<1x256xf32> to vector<8x256xf32>
    %552 = arith.mulf %550, %551 : vector<8x256xf32>
    %c8_316 = arith.constant 8 : index
    %c0_317 = arith.constant 0 : index
    %553 = vector.load %arg9[%c8_316, %c0_317] : memref<288x256xf32, #tpu.memory_space<vmem>>, vector<8x256xf32>
    tpu.vector_store %arg9[%c8_316, %c0_317], %552 {strides = array<i32>} : memref<288x256xf32, #tpu.memory_space<vmem>>, vector<8x256xf32>,
    %c17_i32_318 = arith.constant 17 : i32
    %554 = tpu.dynamic_rotate %494 by %c17_i32_318 dim 1 : vector<8x256xf32>, i32 -> vector<8x256xf32>
    %555 = vector.broadcast %545 : vector<1x256xf32> to vector<8x256xf32>
    %556 = arith.mulf %554, %555 : vector<8x256xf32>
    %c16_319 = arith.constant 16 : index
    %c0_320 = arith.constant 0 : index
    %557 = vector.load %arg9[%c16_319, %c0_320] : memref<288x256xf32, #tpu.memory_space<vmem>>, vector<8x256xf32>
    tpu.vector_store %arg9[%c16_319, %c0_320], %556 {strides = array<i32>} : memref<288x256xf32, #tpu.memory_space<vmem>>, vector<8x256xf32>,
    %c17_i32_321 = arith.constant 17 : i32
    %558 = tpu.dynamic_rotate %543 by %c17_i32_321 dim 1 : vector<8x256xf32>, i32 -> vector<8x256xf32>
    %559 = vector.broadcast %545 : vector<1x256xf32> to vector<8x256xf32>
    %560 = arith.mulf %558, %559 : vector<8x256xf32>
    %c24_322 = arith.constant 24 : index
    %c0_323 = arith.constant 0 : index
    %561 = vector.load %arg9[%c24_322, %c0_323] : memref<288x256xf32, #tpu.memory_space<vmem>>, vector<8x256xf32>
    tpu.vector_store %arg9[%c24_322, %c0_323], %560 {strides = array<i32>} : memref<288x256xf32, #tpu.memory_space<vmem>>, vector<8x256xf32>,
    %562 = vector.extract_strided_slice %4 {offsets = [1, 0], sizes = [1, 256], strides = [1, 1]} : vector<9x256xf32> to vector<1x256xf32>
    %c16_i32_324 = arith.constant 16 : i32
    %563 = tpu.dynamic_rotate %396 by %c16_i32_324 dim 1 : vector<8x256xf32>, i32 -> vector<8x256xf32>
    %564 = vector.broadcast %562 : vector<1x256xf32> to vector<8x256xf32>
    %565 = arith.mulf %563, %564 : vector<8x256xf32>
    %c32_325 = arith.constant 32 : index
    %c0_326 = arith.constant 0 : index
    %566 = vector.load %arg9[%c32_325, %c0_326] : memref<288x256xf32, #tpu.memory_space<vmem>>, vector<8x256xf32>
    tpu.vector_store %arg9[%c32_325, %c0_326], %565 {strides = array<i32>} : memref<288x256xf32, #tpu.memory_space<vmem>>, vector<8x256xf32>,
    %c16_i32_327 = arith.constant 16 : i32
    %567 = tpu.dynamic_rotate %445 by %c16_i32_327 dim 1 : vector<8x256xf32>, i32 -> vector<8x256xf32>
    %568 = vector.broadcast %562 : vector<1x256xf32> to vector<8x256xf32>
    %569 = arith.mulf %567, %568 : vector<8x256xf32>
    %c40_328 = arith.constant 40 : index
    %c0_329 = arith.constant 0 : index
    %570 = vector.load %arg9[%c40_328, %c0_329] : memref<288x256xf32, #tpu.memory_space<vmem>>, vector<8x256xf32>
    tpu.vector_store %arg9[%c40_328, %c0_329], %569 {strides = array<i32>} : memref<288x256xf32, #tpu.memory_space<vmem>>, vector<8x256xf32>,
    %c16_i32_330 = arith.constant 16 : i32
    %571 = tpu.dynamic_rotate %494 by %c16_i32_330 dim 1 : vector<8x256xf32>, i32 -> vector<8x256xf32>
    %572 = vector.broadcast %562 : vector<1x256xf32> to vector<8x256xf32>
    %573 = arith.mulf %571, %572 : vector<8x256xf32>
    %c48_331 = arith.constant 48 : index
    %c0_332 = arith.constant 0 : index
    %574 = vector.load %arg9[%c48_331, %c0_332] : memref<288x256xf32, #tpu.memory_space<vmem>>, vector<8x256xf32>
    tpu.vector_store %arg9[%c48_331, %c0_332], %573 {strides = array<i32>} : memref<288x256xf32, #tpu.memory_space<vmem>>, vector<8x256xf32>,
    %c16_i32_333 = arith.constant 16 : i32
    %575 = tpu.dynamic_rotate %543 by %c16_i32_333 dim 1 : vector<8x256xf32>, i32 -> vector<8x256xf32>
    %576 = vector.broadcast %562 : vector<1x256xf32> to vector<8x256xf32>
    %577 = arith.mulf %575, %576 : vector<8x256xf32>
    %c56_334 = arith.constant 56 : index
    %c0_335 = arith.constant 0 : index
    %578 = vector.load %arg9[%c56_334, %c0_335] : memref<288x256xf32, #tpu.memory_space<vmem>>, vector<8x256xf32>
    tpu.vector_store %arg9[%c56_334, %c0_335], %577 {strides = array<i32>} : memref<288x256xf32, #tpu.memory_space<vmem>>, vector<8x256xf32>,
    %579 = vector.extract_strided_slice %4 {offsets = [2, 0], sizes = [1, 256], strides = [1, 1]} : vector<9x256xf32> to vector<1x256xf32>
    %c15_i32_336 = arith.constant 15 : i32
    %580 = tpu.dynamic_rotate %396 by %c15_i32_336 dim 1 : vector<8x256xf32>, i32 -> vector<8x256xf32>
    %581 = vector.broadcast %579 : vector<1x256xf32> to vector<8x256xf32>
    %582 = arith.mulf %580, %581 : vector<8x256xf32>
    %c64_337 = arith.constant 64 : index
    %c0_338 = arith.constant 0 : index
    %583 = vector.load %arg9[%c64_337, %c0_338] : memref<288x256xf32, #tpu.memory_space<vmem>>, vector<8x256xf32>
    tpu.vector_store %arg9[%c64_337, %c0_338], %582 {strides = array<i32>} : memref<288x256xf32, #tpu.memory_space<vmem>>, vector<8x256xf32>,
    %c15_i32_339 = arith.constant 15 : i32
    %584 = tpu.dynamic_rotate %445 by %c15_i32_339 dim 1 : vector<8x256xf32>, i32 -> vector<8x256xf32>
    %585 = vector.broadcast %579 : vector<1x256xf32> to vector<8x256xf32>
    %586 = arith.mulf %584, %585 : vector<8x256xf32>
    %c72 = arith.constant 72 : index
    %c0_340 = arith.constant 0 : index
    %587 = vector.load %arg9[%c72, %c0_340] : memref<288x256xf32, #tpu.memory_space<vmem>>, vector<8x256xf32>
    tpu.vector_store %arg9[%c72, %c0_340], %586 {strides = array<i32>} : memref<288x256xf32, #tpu.memory_space<vmem>>, vector<8x256xf32>,
    %c15_i32_341 = arith.constant 15 : i32
    %588 = tpu.dynamic_rotate %494 by %c15_i32_341 dim 1 : vector<8x256xf32>, i32 -> vector<8x256xf32>
    %589 = vector.broadcast %579 : vector<1x256xf32> to vector<8x256xf32>
    %590 = arith.mulf %588, %589 : vector<8x256xf32>
    %c80 = arith.constant 80 : index
    %c0_342 = arith.constant 0 : index
    %591 = vector.load %arg9[%c80, %c0_342] : memref<288x256xf32, #tpu.memory_space<vmem>>, vector<8x256xf32>
    tpu.vector_store %arg9[%c80, %c0_342], %590 {strides = array<i32>} : memref<288x256xf32, #tpu.memory_space<vmem>>, vector<8x256xf32>,
    %c15_i32_343 = arith.constant 15 : i32
    %592 = tpu.dynamic_rotate %543 by %c15_i32_343 dim 1 : vector<8x256xf32>, i32 -> vector<8x256xf32>
    %593 = vector.broadcast %579 : vector<1x256xf32> to vector<8x256xf32>
    %594 = arith.mulf %592, %593 : vector<8x256xf32>
    %c88 = arith.constant 88 : index
    %c0_344 = arith.constant 0 : index
    %595 = vector.load %arg9[%c88, %c0_344] : memref<288x256xf32, #tpu.memory_space<vmem>>, vector<8x256xf32>
    tpu.vector_store %arg9[%c88, %c0_344], %594 {strides = array<i32>} : memref<288x256xf32, #tpu.memory_space<vmem>>, vector<8x256xf32>,
    %596 = vector.extract_strided_slice %4 {offsets = [3, 0], sizes = [1, 256], strides = [1, 1]} : vector<9x256xf32> to vector<1x256xf32>
    %c1_i32_345 = arith.constant 1 : i32
    %597 = tpu.dynamic_rotate %396 by %c1_i32_345 dim 1 : vector<8x256xf32>, i32 -> vector<8x256xf32>
    %598 = vector.broadcast %596 : vector<1x256xf32> to vector<8x256xf32>
    %599 = arith.mulf %597, %598 : vector<8x256xf32>
    %c96 = arith.constant 96 : index
    %c0_346 = arith.constant 0 : index
    %600 = vector.load %arg9[%c96, %c0_346] : memref<288x256xf32, #tpu.memory_space<vmem>>, vector<8x256xf32>
    tpu.vector_store %arg9[%c96, %c0_346], %599 {strides = array<i32>} : memref<288x256xf32, #tpu.memory_space<vmem>>, vector<8x256xf32>,
    %c1_i32_347 = arith.constant 1 : i32
    %601 = tpu.dynamic_rotate %445 by %c1_i32_347 dim 1 : vector<8x256xf32>, i32 -> vector<8x256xf32>
    %602 = vector.broadcast %596 : vector<1x256xf32> to vector<8x256xf32>
    %603 = arith.mulf %601, %602 : vector<8x256xf32>
    %c104 = arith.constant 104 : index
    %c0_348 = arith.constant 0 : index
    %604 = vector.load %arg9[%c104, %c0_348] : memref<288x256xf32, #tpu.memory_space<vmem>>, vector<8x256xf32>
    tpu.vector_store %arg9[%c104, %c0_348], %603 {strides = array<i32>} : memref<288x256xf32, #tpu.memory_space<vmem>>, vector<8x256xf32>,
    %c1_i32_349 = arith.constant 1 : i32
    %605 = tpu.dynamic_rotate %494 by %c1_i32_349 dim 1 : vector<8x256xf32>, i32 -> vector<8x256xf32>
    %606 = vector.broadcast %596 : vector<1x256xf32> to vector<8x256xf32>
    %607 = arith.mulf %605, %606 : vector<8x256xf32>
    %c112 = arith.constant 112 : index
    %c0_350 = arith.constant 0 : index
    %608 = vector.load %arg9[%c112, %c0_350] : memref<288x256xf32, #tpu.memory_space<vmem>>, vector<8x256xf32>
    tpu.vector_store %arg9[%c112, %c0_350], %607 {strides = array<i32>} : memref<288x256xf32, #tpu.memory_space<vmem>>, vector<8x256xf32>,
    %c1_i32_351 = arith.constant 1 : i32
    %609 = tpu.dynamic_rotate %543 by %c1_i32_351 dim 1 : vector<8x256xf32>, i32 -> vector<8x256xf32>
    %610 = vector.broadcast %596 : vector<1x256xf32> to vector<8x256xf32>
    %611 = arith.mulf %609, %610 : vector<8x256xf32>
    %c120 = arith.constant 120 : index
    %c0_352 = arith.constant 0 : index
    %612 = vector.load %arg9[%c120, %c0_352] : memref<288x256xf32, #tpu.memory_space<vmem>>, vector<8x256xf32>
    tpu.vector_store %arg9[%c120, %c0_352], %611 {strides = array<i32>} : memref<288x256xf32, #tpu.memory_space<vmem>>, vector<8x256xf32>,
    %613 = vector.extract_strided_slice %4 {offsets = [4, 0], sizes = [1, 256], strides = [1, 1]} : vector<9x256xf32> to vector<1x256xf32>
    %614 = vector.broadcast %613 : vector<1x256xf32> to vector<8x256xf32>
    %615 = arith.mulf %396, %614 : vector<8x256xf32>
    %c128 = arith.constant 128 : index
    %c0_353 = arith.constant 0 : index
    %616 = vector.load %arg9[%c128, %c0_353] : memref<288x256xf32, #tpu.memory_space<vmem>>, vector<8x256xf32>
    tpu.vector_store %arg9[%c128, %c0_353], %615 {strides = array<i32>} : memref<288x256xf32, #tpu.memory_space<vmem>>, vector<8x256xf32>,
    %617 = vector.broadcast %613 : vector<1x256xf32> to vector<8x256xf32>
    %618 = arith.mulf %445, %617 : vector<8x256xf32>
    %c136 = arith.constant 136 : index
    %c0_354 = arith.constant 0 : index
    %619 = vector.load %arg9[%c136, %c0_354] : memref<288x256xf32, #tpu.memory_space<vmem>>, vector<8x256xf32>
    tpu.vector_store %arg9[%c136, %c0_354], %618 {strides = array<i32>} : memref<288x256xf32, #tpu.memory_space<vmem>>, vector<8x256xf32>,
    %620 = vector.broadcast %613 : vector<1x256xf32> to vector<8x256xf32>
    %621 = arith.mulf %494, %620 : vector<8x256xf32>
    %c144 = arith.constant 144 : index
    %c0_355 = arith.constant 0 : index
    %622 = vector.load %arg9[%c144, %c0_355] : memref<288x256xf32, #tpu.memory_space<vmem>>, vector<8x256xf32>
    tpu.vector_store %arg9[%c144, %c0_355], %621 {strides = array<i32>} : memref<288x256xf32, #tpu.memory_space<vmem>>, vector<8x256xf32>,
    %623 = vector.broadcast %613 : vector<1x256xf32> to vector<8x256xf32>
    %624 = arith.mulf %543, %623 : vector<8x256xf32>
    %c152 = arith.constant 152 : index
    %c0_356 = arith.constant 0 : index
    %625 = vector.load %arg9[%c152, %c0_356] : memref<288x256xf32, #tpu.memory_space<vmem>>, vector<8x256xf32>
    tpu.vector_store %arg9[%c152, %c0_356], %624 {strides = array<i32>} : memref<288x256xf32, #tpu.memory_space<vmem>>, vector<8x256xf32>,
    %626 = vector.extract_strided_slice %4 {offsets = [5, 0], sizes = [1, 256], strides = [1, 1]} : vector<9x256xf32> to vector<1x256xf32>
    %c255_i32_357 = arith.constant 255 : i32
    %627 = tpu.dynamic_rotate %396 by %c255_i32_357 dim 1 : vector<8x256xf32>, i32 -> vector<8x256xf32>
    %628 = vector.broadcast %626 : vector<1x256xf32> to vector<8x256xf32>
    %629 = arith.mulf %627, %628 : vector<8x256xf32>
    %c160 = arith.constant 160 : index
    %c0_358 = arith.constant 0 : index
    %630 = vector.load %arg9[%c160, %c0_358] : memref<288x256xf32, #tpu.memory_space<vmem>>, vector<8x256xf32>
    tpu.vector_store %arg9[%c160, %c0_358], %629 {strides = array<i32>} : memref<288x256xf32, #tpu.memory_space<vmem>>, vector<8x256xf32>,
    %c255_i32_359 = arith.constant 255 : i32
    %631 = tpu.dynamic_rotate %445 by %c255_i32_359 dim 1 : vector<8x256xf32>, i32 -> vector<8x256xf32>
    %632 = vector.broadcast %626 : vector<1x256xf32> to vector<8x256xf32>
    %633 = arith.mulf %631, %632 : vector<8x256xf32>
    %c168 = arith.constant 168 : index
    %c0_360 = arith.constant 0 : index
    %634 = vector.load %arg9[%c168, %c0_360] : memref<288x256xf32, #tpu.memory_space<vmem>>, vector<8x256xf32>
    tpu.vector_store %arg9[%c168, %c0_360], %633 {strides = array<i32>} : memref<288x256xf32, #tpu.memory_space<vmem>>, vector<8x256xf32>,
    %c255_i32_361 = arith.constant 255 : i32
    %635 = tpu.dynamic_rotate %494 by %c255_i32_361 dim 1 : vector<8x256xf32>, i32 -> vector<8x256xf32>
    %636 = vector.broadcast %626 : vector<1x256xf32> to vector<8x256xf32>
    %637 = arith.mulf %635, %636 : vector<8x256xf32>
    %c176 = arith.constant 176 : index
    %c0_362 = arith.constant 0 : index
    %638 = vector.load %arg9[%c176, %c0_362] : memref<288x256xf32, #tpu.memory_space<vmem>>, vector<8x256xf32>
    tpu.vector_store %arg9[%c176, %c0_362], %637 {strides = array<i32>} : memref<288x256xf32, #tpu.memory_space<vmem>>, vector<8x256xf32>,
    %c255_i32_363 = arith.constant 255 : i32
    %639 = tpu.dynamic_rotate %543 by %c255_i32_363 dim 1 : vector<8x256xf32>, i32 -> vector<8x256xf32>
    %640 = vector.broadcast %626 : vector<1x256xf32> to vector<8x256xf32>
    %641 = arith.mulf %639, %640 : vector<8x256xf32>
    %c184 = arith.constant 184 : index
    %c0_364 = arith.constant 0 : index
    %642 = vector.load %arg9[%c184, %c0_364] : memref<288x256xf32, #tpu.memory_space<vmem>>, vector<8x256xf32>
    tpu.vector_store %arg9[%c184, %c0_364], %641 {strides = array<i32>} : memref<288x256xf32, #tpu.memory_space<vmem>>, vector<8x256xf32>,
    %643 = vector.extract_strided_slice %4 {offsets = [6, 0], sizes = [1, 256], strides = [1, 1]} : vector<9x256xf32> to vector<1x256xf32>
    %c241_i32_365 = arith.constant 241 : i32
    %644 = tpu.dynamic_rotate %396 by %c241_i32_365 dim 1 : vector<8x256xf32>, i32 -> vector<8x256xf32>
    %645 = vector.broadcast %643 : vector<1x256xf32> to vector<8x256xf32>
    %646 = arith.mulf %644, %645 : vector<8x256xf32>
    %c192 = arith.constant 192 : index
    %c0_366 = arith.constant 0 : index
    %647 = vector.load %arg9[%c192, %c0_366] : memref<288x256xf32, #tpu.memory_space<vmem>>, vector<8x256xf32>
    tpu.vector_store %arg9[%c192, %c0_366], %646 {strides = array<i32>} : memref<288x256xf32, #tpu.memory_space<vmem>>, vector<8x256xf32>,
    %c241_i32_367 = arith.constant 241 : i32
    %648 = tpu.dynamic_rotate %445 by %c241_i32_367 dim 1 : vector<8x256xf32>, i32 -> vector<8x256xf32>
    %649 = vector.broadcast %643 : vector<1x256xf32> to vector<8x256xf32>
    %650 = arith.mulf %648, %649 : vector<8x256xf32>
    %c200 = arith.constant 200 : index
    %c0_368 = arith.constant 0 : index
    %651 = vector.load %arg9[%c200, %c0_368] : memref<288x256xf32, #tpu.memory_space<vmem>>, vector<8x256xf32>
    tpu.vector_store %arg9[%c200, %c0_368], %650 {strides = array<i32>} : memref<288x256xf32, #tpu.memory_space<vmem>>, vector<8x256xf32>,
    %c241_i32_369 = arith.constant 241 : i32
    %652 = tpu.dynamic_rotate %494 by %c241_i32_369 dim 1 : vector<8x256xf32>, i32 -> vector<8x256xf32>
    %653 = vector.broadcast %643 : vector<1x256xf32> to vector<8x256xf32>
    %654 = arith.mulf %652, %653 : vector<8x256xf32>
    %c208 = arith.constant 208 : index
    %c0_370 = arith.constant 0 : index
    %655 = vector.load %arg9[%c208, %c0_370] : memref<288x256xf32, #tpu.memory_space<vmem>>, vector<8x256xf32>
    tpu.vector_store %arg9[%c208, %c0_370], %654 {strides = array<i32>} : memref<288x256xf32, #tpu.memory_space<vmem>>, vector<8x256xf32>,
    %c241_i32_371 = arith.constant 241 : i32
    %656 = tpu.dynamic_rotate %543 by %c241_i32_371 dim 1 : vector<8x256xf32>, i32 -> vector<8x256xf32>
    %657 = vector.broadcast %643 : vector<1x256xf32> to vector<8x256xf32>
    %658 = arith.mulf %656, %657 : vector<8x256xf32>
    %c216 = arith.constant 216 : index
    %c0_372 = arith.constant 0 : index
    %659 = vector.load %arg9[%c216, %c0_372] : memref<288x256xf32, #tpu.memory_space<vmem>>, vector<8x256xf32>
    tpu.vector_store %arg9[%c216, %c0_372], %658 {strides = array<i32>} : memref<288x256xf32, #tpu.memory_space<vmem>>, vector<8x256xf32>,
    %660 = vector.extract_strided_slice %4 {offsets = [7, 0], sizes = [1, 256], strides = [1, 1]} : vector<9x256xf32> to vector<1x256xf32>
    %c240_i32_373 = arith.constant 240 : i32
    %661 = tpu.dynamic_rotate %396 by %c240_i32_373 dim 1 : vector<8x256xf32>, i32 -> vector<8x256xf32>
    %662 = vector.broadcast %660 : vector<1x256xf32> to vector<8x256xf32>
    %663 = arith.mulf %661, %662 : vector<8x256xf32>
    %c224 = arith.constant 224 : index
    %c0_374 = arith.constant 0 : index
    %664 = vector.load %arg9[%c224, %c0_374] : memref<288x256xf32, #tpu.memory_space<vmem>>, vector<8x256xf32>
    tpu.vector_store %arg9[%c224, %c0_374], %663 {strides = array<i32>} : memref<288x256xf32, #tpu.memory_space<vmem>>, vector<8x256xf32>,
    %c240_i32_375 = arith.constant 240 : i32
    %665 = tpu.dynamic_rotate %445 by %c240_i32_375 dim 1 : vector<8x256xf32>, i32 -> vector<8x256xf32>
    %666 = vector.broadcast %660 : vector<1x256xf32> to vector<8x256xf32>
    %667 = arith.mulf %665, %666 : vector<8x256xf32>
    %c232 = arith.constant 232 : index
    %c0_376 = arith.constant 0 : index
    %668 = vector.load %arg9[%c232, %c0_376] : memref<288x256xf32, #tpu.memory_space<vmem>>, vector<8x256xf32>
    tpu.vector_store %arg9[%c232, %c0_376], %667 {strides = array<i32>} : memref<288x256xf32, #tpu.memory_space<vmem>>, vector<8x256xf32>,
    %c240_i32_377 = arith.constant 240 : i32
    %669 = tpu.dynamic_rotate %494 by %c240_i32_377 dim 1 : vector<8x256xf32>, i32 -> vector<8x256xf32>
    %670 = vector.broadcast %660 : vector<1x256xf32> to vector<8x256xf32>
    %671 = arith.mulf %669, %670 : vector<8x256xf32>
    %c240 = arith.constant 240 : index
    %c0_378 = arith.constant 0 : index
    %672 = vector.load %arg9[%c240, %c0_378] : memref<288x256xf32, #tpu.memory_space<vmem>>, vector<8x256xf32>
    tpu.vector_store %arg9[%c240, %c0_378], %671 {strides = array<i32>} : memref<288x256xf32, #tpu.memory_space<vmem>>, vector<8x256xf32>,
    %c240_i32_379 = arith.constant 240 : i32
    %673 = tpu.dynamic_rotate %543 by %c240_i32_379 dim 1 : vector<8x256xf32>, i32 -> vector<8x256xf32>
    %674 = vector.broadcast %660 : vector<1x256xf32> to vector<8x256xf32>
    %675 = arith.mulf %673, %674 : vector<8x256xf32>
    %c248 = arith.constant 248 : index
    %c0_380 = arith.constant 0 : index
    %676 = vector.load %arg9[%c248, %c0_380] : memref<288x256xf32, #tpu.memory_space<vmem>>, vector<8x256xf32>
    tpu.vector_store %arg9[%c248, %c0_380], %675 {strides = array<i32>} : memref<288x256xf32, #tpu.memory_space<vmem>>, vector<8x256xf32>,
    %677 = vector.extract_strided_slice %4 {offsets = [8, 0], sizes = [1, 256], strides = [1, 1]} : vector<9x256xf32> to vector<1x256xf32>
    %c239_i32_381 = arith.constant 239 : i32
    %678 = tpu.dynamic_rotate %396 by %c239_i32_381 dim 1 : vector<8x256xf32>, i32 -> vector<8x256xf32>
    %679 = vector.broadcast %677 : vector<1x256xf32> to vector<8x256xf32>
    %680 = arith.mulf %678, %679 : vector<8x256xf32>
    %c256 = arith.constant 256 : index
    %c0_382 = arith.constant 0 : index
    %681 = vector.load %arg9[%c256, %c0_382] : memref<288x256xf32, #tpu.memory_space<vmem>>, vector<8x256xf32>
    tpu.vector_store %arg9[%c256, %c0_382], %680 {strides = array<i32>} : memref<288x256xf32, #tpu.memory_space<vmem>>, vector<8x256xf32>,
    %c239_i32_383 = arith.constant 239 : i32
    %682 = tpu.dynamic_rotate %445 by %c239_i32_383 dim 1 : vector<8x256xf32>, i32 -> vector<8x256xf32>
    %683 = vector.broadcast %677 : vector<1x256xf32> to vector<8x256xf32>
    %684 = arith.mulf %682, %683 : vector<8x256xf32>
    %c264 = arith.constant 264 : index
    %c0_384 = arith.constant 0 : index
    %685 = vector.load %arg9[%c264, %c0_384] : memref<288x256xf32, #tpu.memory_space<vmem>>, vector<8x256xf32>
    tpu.vector_store %arg9[%c264, %c0_384], %684 {strides = array<i32>} : memref<288x256xf32, #tpu.memory_space<vmem>>, vector<8x256xf32>,
    %c239_i32_385 = arith.constant 239 : i32
    %686 = tpu.dynamic_rotate %494 by %c239_i32_385 dim 1 : vector<8x256xf32>, i32 -> vector<8x256xf32>
    %687 = vector.broadcast %677 : vector<1x256xf32> to vector<8x256xf32>
    %688 = arith.mulf %686, %687 : vector<8x256xf32>
    %c272 = arith.constant 272 : index
    %c0_386 = arith.constant 0 : index
    %689 = vector.load %arg9[%c272, %c0_386] : memref<288x256xf32, #tpu.memory_space<vmem>>, vector<8x256xf32>
    tpu.vector_store %arg9[%c272, %c0_386], %688 {strides = array<i32>} : memref<288x256xf32, #tpu.memory_space<vmem>>, vector<8x256xf32>,
    %c239_i32_387 = arith.constant 239 : i32
    %690 = tpu.dynamic_rotate %543 by %c239_i32_387 dim 1 : vector<8x256xf32>, i32 -> vector<8x256xf32>
    %691 = vector.broadcast %677 : vector<1x256xf32> to vector<8x256xf32>
    %692 = arith.mulf %690, %691 : vector<8x256xf32>
    %c280 = arith.constant 280 : index
    %c0_388 = arith.constant 0 : index
    %693 = vector.load %arg9[%c280, %c0_388] : memref<288x256xf32, #tpu.memory_space<vmem>>, vector<8x256xf32>
    tpu.vector_store %arg9[%c280, %c0_388], %692 {strides = array<i32>} : memref<288x256xf32, #tpu.memory_space<vmem>>, vector<8x256xf32>,
    %c0_389 = arith.constant 0 : index
    %c0_390 = arith.constant 0 : index
    %694 = vector.load %arg9[%c0_389, %c0_390] : memref<288x256xf32, #tpu.memory_space<vmem>>, vector<288x256xf32>
    %695 = arith.truncf %694 : vector<288x256xf32> to vector<288x256xbf16>
    %cst_391 = arith.constant dense<0.000000e+00> : vector<1x256xf32>
    %696 = tpu.matmul %544, %695, %cst_391 {dimension_numbers = #tpu.dot_dimension_numbers<[1], [0], [0], [1], [0, 0, 1, 1], [], []>} : vector<1x288xbf16>, vector<288x256xbf16>, vector<1x256xf32> -> vector<1x256xf32>
    %cst_392 = arith.constant 0.000000e+00 : f32
    %697 = vector.broadcast %cst_392 : f32 to vector<1x256xf32>
    %698 = arith.maximumf %696, %697 : vector<1x256xf32>
    %c9 = arith.constant 9 : index
    %c0_393 = arith.constant 0 : index
    %c0_394 = arith.constant 0 : index
    %699 = vector.load %arg7[%c9, %c0_393, %c0_394] : memref<10x8x1xf32, #tpu.memory_space<vmem>>, vector<1x8x1xf32>
    %700 = vector.shape_cast %699 : vector<1x8x1xf32> to vector<8x1xf32>
    %701 = vector.extract_strided_slice %700 {offsets = [0, 0], sizes = [1, 1], strides = [1, 1]} : vector<8x1xf32> to vector<1x1xf32>
    %702 = vector.broadcast %701 : vector<1x1xf32> to vector<1x256xf32>
    %703 = arith.mulf %698, %702 : vector<1x256xf32>
    %704 = arith.negf %703 : vector<1x256xf32>
    %705 = math.exp %704 : vector<1x256xf32>
    %cst_395 = arith.constant 1.000000e+00 : f32
    %706 = vector.broadcast %cst_395 : f32 to vector<1x256xf32>
    %707 = arith.addf %706, %705 : vector<1x256xf32>
    %708 = arith.divf %706, %707 : vector<1x256xf32>
    %709 = vector.broadcast %708 : vector<1x256xf32> to vector<8x256xf32>
    %710 = arith.mulf %709, %283 : vector<8x256xf32>
    %711 = arith.addf %710, %2 : vector<8x256xf32>
    %712 = vector.shape_cast %711 : vector<8x256xf32> to vector<1x8x256xf32>
    %713 = arith.truncf %712 : vector<1x8x256xf32> to vector<1x8x256xbf16>
    %c0_396 = arith.constant 0 : index
    %c0_397 = arith.constant 0 : index
    %c0_398 = arith.constant 0 : index
    %714 = vector.load %arg8[%c0_396, %c0_397, %c0_398] : memref<1x8x256xbf16, #tpu.memory_space<vmem>>, vector<1x8x256xbf16>
    tpu.vector_store %arg8[%c0_396, %c0_397, %c0_398], %713 {strides = array<i32>} : memref<1x8x256xbf16, #tpu.memory_space<vmem>>, vector<1x8x256xbf16>,
    return
  }
  func.func @transform_0(%arg0: i32) -> (i32, i32, i32) {
    %c0_i32 = arith.constant 0 : i32
    %c0_i32_0 = arith.constant 0 : i32
    %c0_i32_1 = arith.constant 0 : i32
    return %arg0, %c0_i32, %c0_i32_0 : i32, i32, i32
  }
  func.func @transform_1(%arg0: i32) -> (i32, i32, i32) {
    %c0_i32 = arith.constant 0 : i32
    %c0_i32_0 = arith.constant 0 : i32
    %c0_i32_1 = arith.constant 0 : i32
    %c0_i32_2 = arith.constant 0 : i32
    return %c0_i32, %c0_i32_0, %c0_i32_1 : i32, i32, i32
  }
  func.func @transform_2(%arg0: i32) -> (i32, i32, i32) {
    %c0_i32 = arith.constant 0 : i32
    %c0_i32_0 = arith.constant 0 : i32
    %c0_i32_1 = arith.constant 0 : i32
    %c0_i32_2 = arith.constant 0 : i32
    return %c0_i32, %c0_i32_0, %c0_i32_1 : i32, i32, i32
  }
  func.func @transform_3(%arg0: i32) -> (i32, i32) {
    %c0_i32 = arith.constant 0 : i32
    %c0_i32_0 = arith.constant 0 : i32
    %c0_i32_1 = arith.constant 0 : i32
    return %c0_i32, %c0_i32_0 : i32, i32
  }
  func.func @transform_4(%arg0: i32) -> (i32, i32) {
    %c0_i32 = arith.constant 0 : i32
    %c0_i32_0 = arith.constant 0 : i32
    %c0_i32_1 = arith.constant 0 : i32
    return %c0_i32, %c0_i32_0 : i32, i32
  }
  func.func @transform_5(%arg0: i32) -> (i32, i32) {
    %c0_i32 = arith.constant 0 : i32
    %c0_i32_0 = arith.constant 0 : i32
    %c0_i32_1 = arith.constant 0 : i32
    return %c0_i32, %c0_i32_0 : i32, i32
  }
  func.func @transform_6(%arg0: i32) -> (i32, i32, i32) {
    %c0_i32 = arith.constant 0 : i32
    %c0_i32_0 = arith.constant 0 : i32
    %c0_i32_1 = arith.constant 0 : i32
    %c0_i32_2 = arith.constant 0 : i32
    return %c0_i32, %c0_i32_0, %c0_i32_1 : i32, i32, i32
  }
  func.func @transform_7(%arg0: i32) -> (i32, i32, i32) {
    %c0_i32 = arith.constant 0 : i32
    %c0_i32_0 = arith.constant 0 : i32
    %c0_i32_1 = arith.constant 0 : i32
    return %arg0, %c0_i32, %c0_i32_0 : i32, i32, i32
  }
}

</mosaic_0001>

<llo_original>
// kernel: group_forward.5
$region0: #{group_forward.5}
  #allocation0 [shape = 'u32[]', space=smem, size = 0x4, offset = 0x4, fixed_abs, tag = 'smem constant byte address 0x4 - core index']
  #allocation1 [shape = 'u32[72,128]{1,0:T(1,128)}', space=vmem, size = 0x9000, scoped, tag = 'internal scratch']
  #allocation2 [shape = 'f32[72,256]{1,0:T(8,128)}', space=vmem, size = 0x12000, scoped, tag = 'scratch operand']
  %s0 = inlined_call_operand.vmem [shape: bf16[2,8,256], index: 0, kind: input, shape index: {}]
  %s1 = inlined_call_operand.vmem [shape: bf16[2,8,256], index: 1, kind: input, shape index: {}]
  %s2 = inlined_call_operand.vmem [shape: bf16[8,72], index: 2, kind: input, shape index: {}]
  %s3 = inlined_call_operand.vmem [shape: f32[8,1], index: 3, kind: input, shape index: {}]
  %s4 = inlined_call_operand.vmem [shape: f32[9,256], index: 4, kind: input, shape index: {}]
  %s5 = inlined_call_operand.vmem [shape: bf16[2,8,256], index: 5, kind: output, shape index: {}]
  %s6 = sld [smem:[#allocation0]]
  $region53: #{group_forward.5} parent=0
    _
  %s8 = ssub.s32 1, %s6
  %s9 = scalar_select 0, %s8, %s6
  loop: start=0, step=1, limit=4
  $region2: #{group_forward.5} parent=0 // loop_pre_header
    _
  $region3: #{group_forward.5} parent=0 // loop_header
    %s11 = sphi 0, %s15
    %p12 = scmp.ge.s32.totalorder %s11, 4
    %s21 = sphi 0, %s23
    %s24 = sphi 0, %s21
    %s25 = sphi 0, %s24
    %s41 = sphi 0, %s25
    %s47 = sphi 0, %s49
    %s50 = sphi 0, %s47
    %s51 = sphi 0, %s50
    %s67 = sphi 0, %s51
    %s71 = sphi 0, %s71
    %s73 = sphi 0, %s71
    %s74 = sphi 0, %s73
    %s88 = sphi 0, %s74
    %s92 = sphi 0, %s92
    %s94 = sphi 0, %s92
    %s95 = sphi 0, %s94
    %s109 = sphi 0, %s95
    %s113 = sphi 0, %s113
    %s115 = sphi 0, %s113
    %s116 = sphi 0, %s115
    %s130 = sphi 0, %s116
    %s136 = sphi 0, %s138
    %s139 = sphi 0, %s136
    %s140 = sphi 0, %s139
    %s156 = sphi 0, %s140
  $region4: #{group_forward.5} parent=0 // loop_header_branch
    %14 = sbr.rel (%p12) target = $region8
  $region5: #{group_forward.5} parent=0 // loop_body
    %s16 = ssub.s32 %s11, 1
    %s17 = ssub.s32 %s11, 2
    %s18 = sadd.s32 %s11, 1
    %s19 = ssub.s32 %s11, %s18
    %p20 = scmp.eq.s32.totalorder %s19, 0
    %s22 = sadd.s32 %s21, 1
    %s23 = scalar_select %p20, %s21, %s22
    %p26 = pneg %p20
    %p27 = scmp.eq.s32.totalorder %s11, 1
    %p28 = por %p26, %p27
    %p29 = scmp.ne.s32.totalorder %s21, %s24
    %p30 = scmp.eq.s32.totalorder %s11, 0
    %p31 = por %p29, %p30
    %p32 = scmp.ne.s32.totalorder %s21, %s24
    %p33 = scmp.eq.s32.totalorder %s16, 1
    %p34 = por %p32, %p33
    %p35 = scmp.ne.s32.totalorder %s24, %s25
    %p36 = scmp.eq.s32.totalorder %s16, 0
    %p37 = por %p35, %p36
    %p38 = scmp.ne.s32.totalorder %s24, %s25
    %p39 = scmp.eq.s32.totalorder %s17, 1
    %p40 = por %p38, %p39
    %p42 = scmp.ne.s32.totalorder %s25, %s41
    %p43 = scmp.eq.s32.totalorder %s17, 0
    %p44 = por %p42, %p43
    %s45 = ssub.s32 %s11, %s18
    %p46 = scmp.eq.s32.totalorder %s45, 0
    %s48 = sadd.s32 %s47, 1
    %s49 = scalar_select %p46, %s47, %s48
    %p52 = pneg %p46
    %p53 = scmp.eq.s32.totalorder %s11, 1
    %p54 = por %p52, %p53
    %p55 = scmp.ne.s32.totalorder %s47, %s50
    %p56 = scmp.eq.s32.totalorder %s11, 0
    %p57 = por %p55, %p56
    %p58 = scmp.ne.s32.totalorder %s47, %s50
    %p59 = scmp.eq.s32.totalorder %s16, 1
    %p60 = por %p58, %p59
    %p61 = scmp.ne.s32.totalorder %s50, %s51
    %p62 = scmp.eq.s32.totalorder %s16, 0
    %p63 = por %p61, %p62
    %p64 = scmp.ne.s32.totalorder %s50, %s51
    %p65 = scmp.eq.s32.totalorder %s17, 1
    %p66 = por %p64, %p65
    %p68 = scmp.ne.s32.totalorder %s51, %s67
    %p69 = scmp.eq.s32.totalorder %s17, 0
    %p70 = por %p68, %p69
    %s72 = sadd.s32 %s71, 1
    %p75 = scmp.eq.s32.totalorder %s11, 1
    %p76 = scmp.ne.s32.totalorder %s71, %s73
    %p77 = scmp.eq.s32.totalorder %s11, 0
    %p78 = por %p76, %p77
    %p79 = scmp.ne.s32.totalorder %s71, %s73
    %p80 = scmp.eq.s32.totalorder %s16, 1
    %p81 = por %p79, %p80
    %p82 = scmp.ne.s32.totalorder %s73, %s74
    %p83 = scmp.eq.s32.totalorder %s16, 0
    %p84 = por %p82, %p83
    %p85 = scmp.ne.s32.totalorder %s73, %s74
    %p86 = scmp.eq.s32.totalorder %s17, 1
    %p87 = por %p85, %p86
    %p89 = scmp.ne.s32.totalorder %s74, %s88
    %p90 = scmp.eq.s32.totalorder %s17, 0
    %p91 = por %p89, %p90
    %s93 = sadd.s32 %s92, 1
    %p96 = scmp.eq.s32.totalorder %s11, 1
    %p97 = scmp.ne.s32.totalorder %s92, %s94
    %p98 = scmp.eq.s32.totalorder %s11, 0
    %p99 = por %p97, %p98
    %p100 = scmp.ne.s32.totalorder %s92, %s94
    %p101 = scmp.eq.s32.totalorder %s16, 1
    %p102 = por %p100, %p101
    %p103 = scmp.ne.s32.totalorder %s94, %s95
    %p104 = scmp.eq.s32.totalorder %s16, 0
    %p105 = por %p103, %p104
    %p106 = scmp.ne.s32.totalorder %s94, %s95
    %p107 = scmp.eq.s32.totalorder %s17, 1
    %p108 = por %p106, %p107
    %p110 = scmp.ne.s32.totalorder %s95, %s109
    %p111 = scmp.eq.s32.totalorder %s17, 0
    %p112 = por %p110, %p111
    %s114 = sadd.s32 %s113, 1
    %p117 = scmp.eq.s32.totalorder %s11, 1
    %p118 = scmp.ne.s32.totalorder %s113, %s115
    %p119 = scmp.eq.s32.totalorder %s11, 0
    %p120 = por %p118, %p119
    %p121 = scmp.ne.s32.totalorder %s113, %s115
    %p122 = scmp.eq.s32.totalorder %s16, 1
    %p123 = por %p121, %p122
    %p124 = scmp.ne.s32.totalorder %s115, %s116
    %p125 = scmp.eq.s32.totalorder %s16, 0
    %p126 = por %p124, %p125
    %p127 = scmp.ne.s32.totalorder %s115, %s116
    %p128 = scmp.eq.s32.totalorder %s17, 1
    %p129 = por %p127, %p128
    %p131 = scmp.ne.s32.totalorder %s116, %s130
    %p132 = scmp.eq.s32.totalorder %s17, 0
    %p133 = por %p131, %p132
    %s134 = ssub.s32 %s11, %s18
    %p135 = scmp.eq.s32.totalorder %s134, 0
    %s137 = sadd.s32 %s136, 1
    %s138 = scalar_select %p135, %s136, %s137
    %p141 = pneg %p135
    %p142 = scmp.eq.s32.totalorder %s11, 1
    %p143 = por %p141, %p142
    %p144 = scmp.ne.s32.totalorder %s136, %s139
    %p145 = scmp.eq.s32.totalorder %s11, 0
    %p146 = por %p144, %p145
    %p147 = scmp.ne.s32.totalorder %s136, %s139
    %p148 = scmp.eq.s32.totalorder %s16, 1
    %p149 = por %p147, %p148
    %p150 = scmp.ne.s32.totalorder %s139, %s140
    %p151 = scmp.eq.s32.totalorder %s16, 0
    %p152 = por %p150, %p151
    %p153 = scmp.ne.s32.totalorder %s139, %s140
    %p154 = scmp.eq.s32.totalorder %s17, 1
    %p155 = por %p153, %p154
    %p157 = scmp.ne.s32.totalorder %s140, %s156
    %p158 = scmp.eq.s32.totalorder %s17, 0
    %p159 = por %p157, %p158
    %p160 = scmp.le.s32.totalorder 1, %s11
    %p161 = scmp.lt.s32.totalorder %s11, 3
    %p162 = pnand %p160, %p161
    %p163 = pneg %p162
    // Predicated region
    $region9: #{group_forward.5} parent=5 // pred_check
      _
    $region10: #{group_forward.5} parent=5 // pred_check_branch
      %165 = sbr.rel (%p162) target = $region12
    $region11: #{group_forward.5} parent=5 // pred_region
      %s166 = ssub.s32 %s11, 1
      // Predicated region
      $region13: #{group_forward.5} parent=11 // pred_check
        %p167 = pneg %p84
      $region14: #{group_forward.5} parent=11 // pred_check_branch
        %169 = sbr.rel (%p167) target = $region16
      $region15: #{group_forward.5} parent=11 // pred_region
        _
      $region16: #{group_forward.5} parent=11 // pred_fallthru
        _
      // Predicated region
      $region17: #{group_forward.5} parent=11 // pred_check
        %p170 = pneg %p105
      $region18: #{group_forward.5} parent=11 // pred_check_branch
        %172 = sbr.rel (%p170) target = $region20
      $region19: #{group_forward.5} parent=11 // pred_region
        _
      $region20: #{group_forward.5} parent=11 // pred_fallthru
        _
      // Predicated region
      $region21: #{group_forward.5} parent=11 // pred_check
        %p173 = pneg %p126
      $region22: #{group_forward.5} parent=11 // pred_check_branch
        %175 = sbr.rel (%p173) target = $region24
      $region23: #{group_forward.5} parent=11 // pred_region
        _
      $region24: #{group_forward.5} parent=11 // pred_fallthru
        _
    $region12: #{group_forward.5} parent=5 // pred_fallthru
      _
    %p176 = scmp.lt.s32.totalorder %s11, 2
    // Predicated region
    $region25: #{group_forward.5} parent=5 // pred_check
      %p177 = pneg %p176
    $region26: #{group_forward.5} parent=5 // pred_check_branch
      %179 = sbr.rel (%p177) target = $region28
    $region27: #{group_forward.5} parent=5 // pred_region
      // Predicated region
      $region29: #{group_forward.5} parent=27 // pred_check
        %p180 = pneg %p31
      $region30: #{group_forward.5} parent=27 // pred_check_branch
        %182 = sbr.rel (%p180) target = $region32
      $region31: #{group_forward.5} parent=27 // pred_region
        %p183 = scmp.lt.s32.totalorder %s11, 1
        %s184 = scalar_select %p183, %s11, 1
        %s185 = smul.addr %s184, 2
        %s186 = smul.addr %s185, 4
        %s187 = scalar_lea.vmem %s0, %s186
      $region32: #{group_forward.5} parent=27 // pred_fallthru
        _
      // Predicated region
      $region33: #{group_forward.5} parent=27 // pred_check
        %p188 = pneg %p57
      $region34: #{group_forward.5} parent=27 // pred_check_branch
        %190 = sbr.rel (%p188) target = $region36
      $region35: #{group_forward.5} parent=27 // pred_region
        %p191 = scmp.lt.s32.totalorder %s11, 1
        %s192 = scalar_select %p191, %s11, 1
        %s193 = smul.addr %s192, 2
        %s194 = smul.addr %s193, 4
        %s195 = scalar_lea.vmem %s1, %s194
      $region36: #{group_forward.5} parent=27 // pred_fallthru
        _
    $region28: #{group_forward.5} parent=5 // pred_fallthru
      _
    %p196 = scmp.le.s32.totalorder 1, %s11
    %p197 = scmp.lt.s32.totalorder %s11, 3
    %p198 = pnand %p196, %p197
    %p199 = pneg %p198
    // Predicated region
    $region37: #{group_forward.5} parent=5 // pred_check
      _
    $region38: #{group_forward.5} parent=5 // pred_check_branch
      %201 = sbr.rel (%p198) target = $region40
    $region39: #{group_forward.5} parent=5 // pred_region
      %s202 = ssub.s32 %s11, 1
      %p203 = scmp.lt.s32.totalorder %s16, 1
      %s204 = scalar_select %p203, %s16, 1
      %s205 = smul.addr %s204, 2
      %s206 = smul.addr %s205, 4
      %s207 = scalar_lea.vmem %s0, %s206
      %p208 = pneg %p37
      %p209 = pneg %p34
      %p210 = scmp.lt.s32.totalorder %s16, 1
      %s211 = scalar_select %p210, %s16, 1
      %s212 = smul.addr %s211, 2
      %s213 = smul.addr %s212, 4
      %s214 = scalar_lea.vmem %s1, %s213
      %p215 = pneg %p63
      %p216 = pneg %p60
      %p217 = pneg %p84
      %p218 = pneg %p81
      %p219 = pneg %p105
      %p220 = pneg %p102
      %p221 = pneg %p126
      %p222 = pneg %p123
      %p223 = pneg %p152
      %p224 = pneg %p149
      %p225 = scmp.lt.s32.totalorder %s16, 1
      %s226 = scalar_select %p225, %s16, 1
      %s227 = smul.addr %s226, 2
      %s228 = smul.addr %s227, 4
      %s229 = scalar_lea.vmem %s5, %s228
      %p230 = scmp.lt.s32.totalorder %s16, 1
      %s231 = scalar_select %p230, %s16, 1
      %s232 = smul.addr %s231, 2
      %s233 = smul.addr %s232, 4
      %s234 = scalar_lea.vmem %s0, %s233
      %p235 = scmp.lt.s32.totalorder %s16, 1
      %s236 = scalar_select %p235, %s16, 1
      %s237 = smul.addr %s236, 2
      %s238 = smul.addr %s237, 4
      %s239 = scalar_lea.vmem %s1, %s238
      %p240 = scmp.lt.s32.totalorder %s16, 1
      %s241 = scalar_select %p240, %s16, 1
      %s242 = smul.addr %s241, 2
      %s243 = smul.addr %s242, 4
      %s244 = scalar_lea.vmem %s5, %s243
      %v246 = vld [vmem:[%s234] sm:$0xff]
      %v247 = vunpack.c.l.bf16 %v246
      %v248 = vunpack.c.h.bf16 %v246
      %v249 = vld [vmem:[%s4] sm:$0xff]
      %v250 = vld [vmem:[%s4 + $0x8] sm:$0xff]
      %v251 = vld [vmem:[%s4 + $0x10] sm:$0x1]
      %v252 = vld [vmem:[%s4 + $0x18] sm:$0x1]
      %253 = vrot.lane.b32.xlu0 %v247, 17
      %v254 = vpop.permute.xlu0 %253
      %255 = vrot.lane.b32.xlu0 %v248, 17
      %v256 = vpop.permute.xlu0 %255
      %v257 = vlaneseq
      %v258 = vand.u32 %v257, 127
      %vm259 = vcmp.lt.s32.totalorder %v258, 17
      %v260 = vsel %vm259, %v254, %v256
      %v261 = vsel %vm259, %v256, %v254
      %v262 = vperm.slane %v249, 0
      %v263 = vperm.slane %v250, 0
      %v264 = vmul.f32 %v261, %v262
      %v265 = vmul.f32 %v260, %v263
      %266 = vst [vmem:[#allocation2] sm:$0xff] %v264
      %267 = vst [vmem:[#allocation2 + $0x8] sm:$0xff] %v265
      %268 = vrot.lane.b32.xlu0 %v247, 16
      %v269 = vpop.permute.xlu0 %268
      %270 = vrot.lane.b32.xlu0 %v248, 16
      %v271 = vpop.permute.xlu0 %270
      %vm272 = vcmp.lt.s32.totalorder %v258, 16
      %v273 = vsel %vm272, %v269, %v271
      %v274 = vsel %vm272, %v271, %v269
      %v275 = vperm.slane %v249, 1
      %v276 = vperm.slane %v250, 1
      %v277 = vmul.f32 %v274, %v275
      %v278 = vmul.f32 %v273, %v276
      %279 = vst [vmem:[#allocation2 + $0x10] sm:$0xff] %v277
      %280 = vst [vmem:[#allocation2 + $0x18] sm:$0xff] %v278
      %281 = vrot.lane.b32.xlu0 %v247, 15
      %v282 = vpop.permute.xlu0 %281
      %283 = vrot.lane.b32.xlu0 %v248, 15
      %v284 = vpop.permute.xlu0 %283
      %vm285 = vcmp.lt.s32.totalorder %v258, 15
      %v286 = vsel %vm285, %v282, %v284
      %v287 = vsel %vm285, %v284, %v282
      %v288 = vperm.slane %v249, 2
      %v289 = vperm.slane %v250, 2
      %v290 = vmul.f32 %v287, %v288
      %v291 = vmul.f32 %v286, %v289
      %292 = vst [vmem:[#allocation2 + $0x20] sm:$0xff] %v290
      %293 = vst [vmem:[#allocation2 + $0x28] sm:$0xff] %v291
      %294 = vrot.lane.b32.xlu0 %v247, 1
      %v295 = vpop.permute.xlu0 %294
      %296 = vrot.lane.b32.xlu0 %v248, 1
      %v297 = vpop.permute.xlu0 %296
      %vm298 = vcmp.lt.s32.totalorder %v258, 1
      %v299 = vsel %vm298, %v295, %v297
      %v300 = vsel %vm298, %v297, %v295
      %v301 = vperm.slane %v249, 3
      %v302 = vperm.slane %v250, 3
      %v303 = vmul.f32 %v300, %v301
      %v304 = vmul.f32 %v299, %v302
      %305 = vst [vmem:[#allocation2 + $0x30] sm:$0xff] %v303
      %306 = vst [vmem:[#allocation2 + $0x38] sm:$0xff] %v304
      %v307 = vperm.slane %v249, 4
      %v308 = vperm.slane %v250, 4
      %v309 = vmul.f32 %v247, %v307
      %v310 = vmul.f32 %v248, %v308
      %311 = vst [vmem:[#allocation2 + $0x40] sm:$0xff] %v309
      %312 = vst [vmem:[#allocation2 + $0x48] sm:$0xff] %v310
      %313 = vrot.lane.b32.xlu0 %v247, 127
      %v314 = vpop.permute.xlu0 %313
      %315 = vrot.lane.b32.xlu0 %v248, 127
      %v316 = vpop.permute.xlu0 %315
      %vm317 = vcmp.lt.s32.totalorder %v258, 127
      %v318 = vsel %vm317, %v314, %v316
      %v319 = vsel %vm317, %v316, %v314
      %v320 = vperm.slane %v249, 5
      %v321 = vperm.slane %v250, 5
      %v322 = vmul.f32 %v318, %v320
      %v323 = vmul.f32 %v319, %v321
      %324 = vst [vmem:[#allocation2 + $0x50] sm:$0xff] %v322
      %325 = vst [vmem:[#allocation2 + $0x58] sm:$0xff] %v323
      %326 = vrot.lane.b32.xlu0 %v247, 113
      %v327 = vpop.permute.xlu0 %326
      %328 = vrot.lane.b32.xlu0 %v248, 113
      %v329 = vpop.permute.xlu0 %328
      %vm330 = vcmp.lt.s32.totalorder %v258, 113
      %v331 = vsel %vm330, %v327, %v329
      %v332 = vsel %vm330, %v329, %v327
      %v333 = vperm.slane %v249, 6
      %v334 = vperm.slane %v250, 6
      %v335 = vmul.f32 %v331, %v333
      %v336 = vmul.f32 %v332, %v334
      %337 = vst [vmem:[#allocation2 + $0x60] sm:$0xff] %v335
      %338 = vst [vmem:[#allocation2 + $0x68] sm:$0xff] %v336
      %339 = vrot.lane.b32.xlu0 %v247, 112
      %v340 = vpop.permute.xlu0 %339
      %341 = vrot.lane.b32.xlu0 %v248, 112
      %v342 = vpop.permute.xlu0 %341
      %vm343 = vcmp.lt.s32.totalorder %v258, 112
      %v344 = vsel %vm343, %v340, %v342
      %v345 = vsel %vm343, %v342, %v340
      %v346 = vperm.slane %v249, 7
      %v347 = vperm.slane %v250, 7
      %v348 = vmul.f32 %v344, %v346
      %v349 = vmul.f32 %v345, %v347
      %350 = vst [vmem:[#allocation2 + $0x70] sm:$0xff] %v348
      %351 = vst [vmem:[#allocation2 + $0x78] sm:$0xff] %v349
      %352 = vrot.lane.b32.xlu0 %v247, 111
      %v353 = vpop.permute.xlu0 %352
      %354 = vrot.lane.b32.xlu0 %v248, 111
      %v355 = vpop.permute.xlu0 %354
      %vm356 = vcmp.lt.s32.totalorder %v258, 111
      %v357 = vsel %vm356, %v353, %v355
      %v358 = vsel %vm356, %v355, %v353
      %v359 = vperm.slane %v251, 0
      %v360 = vperm.slane %v252, 0
      %v361 = vmul.f32 %v357, %v359
      %v362 = vmul.f32 %v358, %v360
      %363 = vst [vmem:[#allocation2 + $0x80] sm:$0xff] %v361
      %364 = vst [vmem:[#allocation2 + $0x88] sm:$0xff] %v362
      %v365 = vld [vmem:[%s2] sm:$0xf]
      %v366 = vld [vmem:[#allocation2] sm:$0xff]
      %v367 = vld [vmem:[#allocation2 + $0x8] sm:$0xff]
      %v368 = vld [vmem:[#allocation2 + $0x10] sm:$0xff]
      %v369 = vld [vmem:[#allocation2 + $0x18] sm:$0xff]
      %v370 = vld [vmem:[#allocation2 + $0x20] sm:$0xff]
      %v371 = vld [vmem:[#allocation2 + $0x28] sm:$0xff]
      %v372 = vld [vmem:[#allocation2 + $0x30] sm:$0xff]
      %v373 = vld [vmem:[#allocation2 + $0x38] sm:$0xff]
      %v374 = vld [vmem:[#allocation2 + $0x40] sm:$0xff]
      %v375 = vld [vmem:[#allocation2 + $0x48] sm:$0xff]
      %v376 = vld [vmem:[#allocation2 + $0x50] sm:$0xff]
      %v377 = vld [vmem:[#allocation2 + $0x58] sm:$0xff]
      %v378 = vld [vmem:[#allocation2 + $0x60] sm:$0xff]
      %v379 = vld [vmem:[#allocation2 + $0x68] sm:$0xff]
      %v380 = vld [vmem:[#allocation2 + $0x70] sm:$0xff]
      %v381 = vld [vmem:[#allocation2 + $0x78] sm:$0xff]
      %v382 = vld [vmem:[#allocation2 + $0x80] sm:$0xff]
      %v383 = vld [vmem:[#allocation2 + $0x88] sm:$0xff]
      %v384 = vpack.c.bf16 %v368, %v366
      %v385 = vpack.c.bf16 %v369, %v367
      %v386 = vpack.c.bf16 %v372, %v370
      %v387 = vpack.c.bf16 %v373, %v371
      %v388 = vpack.c.bf16 %v376, %v374
      %v389 = vpack.c.bf16 %v377, %v375
      %v390 = vpack.c.bf16 %v380, %v378
      %v391 = vpack.c.bf16 %v381, %v379
      %v392 = vpack.c.bf16 %v382, %v382
      %v393 = vpack.c.bf16 %v383, %v383
      %v394 = vld [vmem:[%s3] sm:$0xff]
      %396 = vset.pattern.permute.xlu0 0
      %397 = vperm.xlu0 %396, %v394
      %v398 = vpop.permute.xlu0 %397
      %vm400 = vcmask 588800
      %v402 = vsel %vm400, %v365, 0
      %vm404 = vcmask 1043456
      %v406 = vsel %vm404, %v392, 0
      %v409 = vsel %vm404, %v393, 0
      %411 = vmatpush.bf16.msra.mxu0 0
      %412 = vmatpush.bf16.msra.mxu0 0
      %413 = vmatpush.bf16.msra.mxu0 0
      %414 = vmatpush.bf16.msra.mxu0 %v406
      %415 = vmatpush.bf16.msra.mxu0 %v390
      %416 = vmatpush.bf16.msra.mxu0 %v388
      %417 = vmatpush.bf16.msra.mxu0 %v386
      %418 = vmatpush.bf16.msra.mxu0 %v384
      %419 = vmatmul.bf16.gmra.mxu0 %v402
      %v420 = vpop.f32.mrf.mxu0
      %v421 = vadd.f32 %v398, %v420
      %v422 = vpop.f32.mrf.mxu0
      %423 = vdwg.mxu0
      %424 = vmatpush.bf16.msra.mxu0 0
      %425 = vmatpush.bf16.msra.mxu0 0
      %426 = vmatpush.bf16.msra.mxu0 0
      %427 = vmatpush.bf16.msra.mxu0 %v409
      %428 = vmatpush.bf16.msra.mxu0 %v391
      %429 = vmatpush.bf16.msra.mxu0 %v389
      %430 = vmatpush.bf16.msra.mxu0 %v387
      %431 = vmatpush.bf16.msra.mxu0 %v385
      %432 = vmatmul.bf16.gmra.mxu0 %v402
      %v433 = vpop.f32.mrf.mxu0
      %v434 = vadd.f32 %v398, %v433
      %v435 = vpop.f32.mrf.mxu0
      %436 = vdwg.mxu0
      %v437 = vld [vmem:[%s239] sm:$0xff]
      %v438 = vunpack.c.l.bf16 %v437
      %v439 = vunpack.c.h.bf16 %v437
      %v440 = vadd.f32 %v421, %v438
      %v441 = vadd.f32 %v434, %v439
      %v442 = vpack.c.bf16 %v441, %v440
      %443 = vst [vmem:[%s244] sm:$0xff] %v442
      %p444 = scmp.lt.s32.totalorder %s16, 1
      %s445 = scalar_select %p444, %s16, 1
      %s446 = smul.addr %s445, 2
      %s447 = smul.addr %s446, 4
      %s448 = scalar_lea.vmem %s5, %s447
      // Predicated region
      $region41: #{group_forward.5} parent=39 // pred_check
        %p449 = pneg %p149
      $region42: #{group_forward.5} parent=39 // pred_check_branch
        %451 = sbr.rel (%p449) target = $region44
      $region43: #{group_forward.5} parent=39 // pred_region
        _
      $region44: #{group_forward.5} parent=39 // pred_fallthru
        _
    $region40: #{group_forward.5} parent=5 // pred_fallthru
      _
    %p452 = scmp.le.s32.totalorder 2, %s11
    // Predicated region
    $region45: #{group_forward.5} parent=5 // pred_check
      %p453 = pneg %p452
    $region46: #{group_forward.5} parent=5 // pred_check_branch
      %455 = sbr.rel (%p453) target = $region48
    $region47: #{group_forward.5} parent=5 // pred_region
      %s456 = ssub.s32 %s11, 2
      // Predicated region
      $region49: #{group_forward.5} parent=47 // pred_check
        %p457 = pneg %p155
      $region50: #{group_forward.5} parent=47 // pred_check_branch
        %459 = sbr.rel (%p457) target = $region52
      $region51: #{group_forward.5} parent=47 // pred_region
        %p460 = scmp.lt.s32.totalorder %s17, 1
        %s461 = scalar_select %p460, %s17, 1
        %s462 = smul.addr %s461, 2
        %s463 = smul.addr %s462, 4
        %s464 = scalar_lea.vmem %s5, %s463
      $region52: #{group_forward.5} parent=47 // pred_fallthru
        _
    $region48: #{group_forward.5} parent=5 // pred_fallthru
      _
  $region6: #{group_forward.5} parent=0 // loop_footer
    %s15 = sadd.s32 1, %s11
  $region7: #{group_forward.5} parent=0 // loop_footer_branch
    %10 = sbr.rel target = $region3
  $region8: #{group_forward.5} parent=0 // loop_exit
    _

// kernel: group_forward.3
$region0: #{group_forward.3}
  #allocation0 [shape = 'u32[]', space=smem, size = 0x4, offset = 0x4, fixed_abs, tag = 'smem constant byte address 0x4 - core index']
  #allocation1 [shape = 'u32[72,128]{1,0:T(1,128)}', space=vmem, size = 0x9000, scoped, tag = 'internal scratch']
  #allocation2 [shape = 'f32[288,256]{1,0:T(8,128)}', space=vmem, size = 0x48000, scoped, tag = 'scratch operand']
  %s0 = inlined_call_operand.vmem [shape: bf16[2,8,256], index: 0, kind: input, shape index: {}]
  %s1 = inlined_call_operand.vmem [shape: f32[4,9,256], index: 1, kind: input, shape index: {}]
  %s2 = inlined_call_operand.vmem [shape: bf16[9,8,72], index: 2, kind: input, shape index: {}]
  %s3 = inlined_call_operand.vmem [shape: f32[16,8], index: 3, kind: input, shape index: {}]
  %s4 = inlined_call_operand.vmem [shape: bf16[8,16], index: 4, kind: input, shape index: {}]
  %s5 = inlined_call_operand.vmem [shape: bf16[1,288], index: 5, kind: input, shape index: {}]
  %s6 = inlined_call_operand.vmem [shape: f32[10,8,1], index: 6, kind: input, shape index: {}]
  %s7 = inlined_call_operand.vmem [shape: bf16[2,8,256], index: 7, kind: output, shape index: {}]
  %s8 = sld [smem:[#allocation0]]
  $region61: #{group_forward.3} parent=0
    _
  %s10 = ssub.s32 1, %s8
  %s11 = scalar_select 0, %s10, %s8
  loop: start=0, step=1, limit=4
  $region2: #{group_forward.3} parent=0 // loop_pre_header
    _
  $region3: #{group_forward.3} parent=0 // loop_header
    %s13 = sphi 0, %s17
    %p14 = scmp.ge.s32.totalorder %s13, 4
    %s23 = sphi 0, %s25
    %s26 = sphi 0, %s23
    %s27 = sphi 0, %s26
    %s43 = sphi 0, %s27
    %s47 = sphi 0, %s47
    %s49 = sphi 0, %s47
    %s50 = sphi 0, %s49
    %s64 = sphi 0, %s50
    %s68 = sphi 0, %s68
    %s70 = sphi 0, %s68
    %s71 = sphi 0, %s70
    %s85 = sphi 0, %s71
    %s89 = sphi 0, %s89
    %s91 = sphi 0, %s89
    %s92 = sphi 0, %s91
    %s106 = sphi 0, %s92
    %s110 = sphi 0, %s110
    %s112 = sphi 0, %s110
    %s113 = sphi 0, %s112
    %s127 = sphi 0, %s113
    %s131 = sphi 0, %s131
    %s133 = sphi 0, %s131
    %s134 = sphi 0, %s133
    %s148 = sphi 0, %s134
    %s152 = sphi 0, %s152
    %s154 = sphi 0, %s152
    %s155 = sphi 0, %s154
    %s169 = sphi 0, %s155
    %s175 = sphi 0, %s177
    %s178 = sphi 0, %s175
    %s179 = sphi 0, %s178
    %s195 = sphi 0, %s179
  $region4: #{group_forward.3} parent=0 // loop_header_branch
    %16 = sbr.rel (%p14) target = $region8
  $region5: #{group_forward.3} parent=0 // loop_body
    %s18 = ssub.s32 %s13, 1
    %s19 = ssub.s32 %s13, 2
    %s20 = sadd.s32 %s13, 1
    %s21 = ssub.s32 %s13, %s20
    %p22 = scmp.eq.s32.totalorder %s21, 0
    %s24 = sadd.s32 %s23, 1
    %s25 = scalar_select %p22, %s23, %s24
    %p28 = pneg %p22
    %p29 = scmp.eq.s32.totalorder %s13, 1
    %p30 = por %p28, %p29
    %p31 = scmp.ne.s32.totalorder %s23, %s26
    %p32 = scmp.eq.s32.totalorder %s13, 0
    %p33 = por %p31, %p32
    %p34 = scmp.ne.s32.totalorder %s23, %s26
    %p35 = scmp.eq.s32.totalorder %s18, 1
    %p36 = por %p34, %p35
    %p37 = scmp.ne.s32.totalorder %s26, %s27
    %p38 = scmp.eq.s32.totalorder %s18, 0
    %p39 = por %p37, %p38
    %p40 = scmp.ne.s32.totalorder %s26, %s27
    %p41 = scmp.eq.s32.totalorder %s19, 1
    %p42 = por %p40, %p41
    %p44 = scmp.ne.s32.totalorder %s27, %s43
    %p45 = scmp.eq.s32.totalorder %s19, 0
    %p46 = por %p44, %p45
    %s48 = sadd.s32 %s47, 1
    %p51 = scmp.eq.s32.totalorder %s13, 1
    %p52 = scmp.ne.s32.totalorder %s47, %s49
    %p53 = scmp.eq.s32.totalorder %s13, 0
    %p54 = por %p52, %p53
    %p55 = scmp.ne.s32.totalorder %s47, %s49
    %p56 = scmp.eq.s32.totalorder %s18, 1
    %p57 = por %p55, %p56
    %p58 = scmp.ne.s32.totalorder %s49, %s50
    %p59 = scmp.eq.s32.totalorder %s18, 0
    %p60 = por %p58, %p59
    %p61 = scmp.ne.s32.totalorder %s49, %s50
    %p62 = scmp.eq.s32.totalorder %s19, 1
    %p63 = por %p61, %p62
    %p65 = scmp.ne.s32.totalorder %s50, %s64
    %p66 = scmp.eq.s32.totalorder %s19, 0
    %p67 = por %p65, %p66
    %s69 = sadd.s32 %s68, 1
    %p72 = scmp.eq.s32.totalorder %s13, 1
    %p73 = scmp.ne.s32.totalorder %s68, %s70
    %p74 = scmp.eq.s32.totalorder %s13, 0
    %p75 = por %p73, %p74
    %p76 = scmp.ne.s32.totalorder %s68, %s70
    %p77 = scmp.eq.s32.totalorder %s18, 1
    %p78 = por %p76, %p77
    %p79 = scmp.ne.s32.totalorder %s70, %s71
    %p80 = scmp.eq.s32.totalorder %s18, 0
    %p81 = por %p79, %p80
    %p82 = scmp.ne.s32.totalorder %s70, %s71
    %p83 = scmp.eq.s32.totalorder %s19, 1
    %p84 = por %p82, %p83
    %p86 = scmp.ne.s32.totalorder %s71, %s85
    %p87 = scmp.eq.s32.totalorder %s19, 0
    %p88 = por %p86, %p87
    %s90 = sadd.s32 %s89, 1
    %p93 = scmp.eq.s32.totalorder %s13, 1
    %p94 = scmp.ne.s32.totalorder %s89, %s91
    %p95 = scmp.eq.s32.totalorder %s13, 0
    %p96 = por %p94, %p95
    %p97 = scmp.ne.s32.totalorder %s89, %s91
    %p98 = scmp.eq.s32.totalorder %s18, 1
    %p99 = por %p97, %p98
    %p100 = scmp.ne.s32.totalorder %s91, %s92
    %p101 = scmp.eq.s32.totalorder %s18, 0
    %p102 = por %p100, %p101
    %p103 = scmp.ne.s32.totalorder %s91, %s92
    %p104 = scmp.eq.s32.totalorder %s19, 1
    %p105 = por %p103, %p104
    %p107 = scmp.ne.s32.totalorder %s92, %s106
    %p108 = scmp.eq.s32.totalorder %s19, 0
    %p109 = por %p107, %p108
    %s111 = sadd.s32 %s110, 1
    %p114 = scmp.eq.s32.totalorder %s13, 1
    %p115 = scmp.ne.s32.totalorder %s110, %s112
    %p116 = scmp.eq.s32.totalorder %s13, 0
    %p117 = por %p115, %p116
    %p118 = scmp.ne.s32.totalorder %s110, %s112
    %p119 = scmp.eq.s32.totalorder %s18, 1
    %p120 = por %p118, %p119
    %p121 = scmp.ne.s32.totalorder %s112, %s113
    %p122 = scmp.eq.s32.totalorder %s18, 0
    %p123 = por %p121, %p122
    %p124 = scmp.ne.s32.totalorder %s112, %s113
    %p125 = scmp.eq.s32.totalorder %s19, 1
    %p126 = por %p124, %p125
    %p128 = scmp.ne.s32.totalorder %s113, %s127
    %p129 = scmp.eq.s32.totalorder %s19, 0
    %p130 = por %p128, %p129
    %s132 = sadd.s32 %s131, 1
    %p135 = scmp.eq.s32.totalorder %s13, 1
    %p136 = scmp.ne.s32.totalorder %s131, %s133
    %p137 = scmp.eq.s32.totalorder %s13, 0
    %p138 = por %p136, %p137
    %p139 = scmp.ne.s32.totalorder %s131, %s133
    %p140 = scmp.eq.s32.totalorder %s18, 1
    %p141 = por %p139, %p140
    %p142 = scmp.ne.s32.totalorder %s133, %s134
    %p143 = scmp.eq.s32.totalorder %s18, 0
    %p144 = por %p142, %p143
    %p145 = scmp.ne.s32.totalorder %s133, %s134
    %p146 = scmp.eq.s32.totalorder %s19, 1
    %p147 = por %p145, %p146
    %p149 = scmp.ne.s32.totalorder %s134, %s148
    %p150 = scmp.eq.s32.totalorder %s19, 0
    %p151 = por %p149, %p150
    %s153 = sadd.s32 %s152, 1
    %p156 = scmp.eq.s32.totalorder %s13, 1
    %p157 = scmp.ne.s32.totalorder %s152, %s154
    %p158 = scmp.eq.s32.totalorder %s13, 0
    %p159 = por %p157, %p158
    %p160 = scmp.ne.s32.totalorder %s152, %s154
    %p161 = scmp.eq.s32.totalorder %s18, 1
    %p162 = por %p160, %p161
    %p163 = scmp.ne.s32.totalorder %s154, %s155
    %p164 = scmp.eq.s32.totalorder %s18, 0
    %p165 = por %p163, %p164
    %p166 = scmp.ne.s32.totalorder %s154, %s155
    %p167 = scmp.eq.s32.totalorder %s19, 1
    %p168 = por %p166, %p167
    %p170 = scmp.ne.s32.totalorder %s155, %s169
    %p171 = scmp.eq.s32.totalorder %s19, 0
    %p172 = por %p170, %p171
    %s173 = ssub.s32 %s13, %s20
    %p174 = scmp.eq.s32.totalorder %s173, 0
    %s176 = sadd.s32 %s175, 1
    %s177 = scalar_select %p174, %s175, %s176
    %p180 = pneg %p174
    %p181 = scmp.eq.s32.totalorder %s13, 1
    %p182 = por %p180, %p181
    %p183 = scmp.ne.s32.totalorder %s175, %s178
    %p184 = scmp.eq.s32.totalorder %s13, 0
    %p185 = por %p183, %p184
    %p186 = scmp.ne.s32.totalorder %s175, %s178
    %p187 = scmp.eq.s32.totalorder %s18, 1
    %p188 = por %p186, %p187
    %p189 = scmp.ne.s32.totalorder %s178, %s179
    %p190 = scmp.eq.s32.totalorder %s18, 0
    %p191 = por %p189, %p190
    %p192 = scmp.ne.s32.totalorder %s178, %s179
    %p193 = scmp.eq.s32.totalorder %s19, 1
    %p194 = por %p192, %p193
    %p196 = scmp.ne.s32.totalorder %s179, %s195
    %p197 = scmp.eq.s32.totalorder %s19, 0
    %p198 = por %p196, %p197
    %p199 = scmp.le.s32.totalorder 1, %s13
    %p200 = scmp.lt.s32.totalorder %s13, 3
    %p201 = pnand %p199, %p200
    %p202 = pneg %p201
    // Predicated region
    $region9: #{group_forward.3} parent=5 // pred_check
      _
    $region10: #{group_forward.3} parent=5 // pred_check_branch
      %204 = sbr.rel (%p201) target = $region12
    $region11: #{group_forward.3} parent=5 // pred_region
      %s205 = ssub.s32 %s13, 1
      // Predicated region
      $region13: #{group_forward.3} parent=11 // pred_check
        %p206 = pneg %p60
      $region14: #{group_forward.3} parent=11 // pred_check_branch
        %208 = sbr.rel (%p206) target = $region16
      $region15: #{group_forward.3} parent=11 // pred_region
        _
      $region16: #{group_forward.3} parent=11 // pred_fallthru
        _
      // Predicated region
      $region17: #{group_forward.3} parent=11 // pred_check
        %p209 = pneg %p81
      $region18: #{group_forward.3} parent=11 // pred_check_branch
        %211 = sbr.rel (%p209) target = $region20
      $region19: #{group_forward.3} parent=11 // pred_region
        _
      $region20: #{group_forward.3} parent=11 // pred_fallthru
        _
      // Predicated region
      $region21: #{group_forward.3} parent=11 // pred_check
        %p212 = pneg %p102
      $region22: #{group_forward.3} parent=11 // pred_check_branch
        %214 = sbr.rel (%p212) target = $region24
      $region23: #{group_forward.3} parent=11 // pred_region
        _
      $region24: #{group_forward.3} parent=11 // pred_fallthru
        _
      // Predicated region
      $region25: #{group_forward.3} parent=11 // pred_check
        %p215 = pneg %p123
      $region26: #{group_forward.3} parent=11 // pred_check_branch
        %217 = sbr.rel (%p215) target = $region28
      $region27: #{group_forward.3} parent=11 // pred_region
        _
      $region28: #{group_forward.3} parent=11 // pred_fallthru
        _
      // Predicated region
      $region29: #{group_forward.3} parent=11 // pred_check
        %p218 = pneg %p144
      $region30: #{group_forward.3} parent=11 // pred_check_branch
        %220 = sbr.rel (%p218) target = $region32
      $region31: #{group_forward.3} parent=11 // pred_region
        _
      $region32: #{group_forward.3} parent=11 // pred_fallthru
        _
      // Predicated region
      $region33: #{group_forward.3} parent=11 // pred_check
        %p221 = pneg %p165
      $region34: #{group_forward.3} parent=11 // pred_check_branch
        %223 = sbr.rel (%p221) target = $region36
      $region35: #{group_forward.3} parent=11 // pred_region
        _
      $region36: #{group_forward.3} parent=11 // pred_fallthru
        _
    $region12: #{group_forward.3} parent=5 // pred_fallthru
      _
    %p224 = scmp.lt.s32.totalorder %s13, 2
    // Predicated region
    $region37: #{group_forward.3} parent=5 // pred_check
      %p225 = pneg %p224
    $region38: #{group_forward.3} parent=5 // pred_check_branch
      %227 = sbr.rel (%p225) target = $region40
    $region39: #{group_forward.3} parent=5 // pred_region
      // Predicated region
      $region41: #{group_forward.3} parent=39 // pred_check
        %p228 = pneg %p33
      $region42: #{group_forward.3} parent=39 // pred_check_branch
        %230 = sbr.rel (%p228) target = $region44
      $region43: #{group_forward.3} parent=39 // pred_region
        %p231 = scmp.lt.s32.totalorder %s13, 1
        %s232 = scalar_select %p231, %s13, 1
        %s233 = smul.addr %s232, 2
        %s234 = smul.addr %s233, 4
        %s235 = scalar_lea.vmem %s0, %s234
      $region44: #{group_forward.3} parent=39 // pred_fallthru
        _
    $region40: #{group_forward.3} parent=5 // pred_fallthru
      _
    %p236 = scmp.le.s32.totalorder 1, %s13
    %p237 = scmp.lt.s32.totalorder %s13, 3
    %p238 = pnand %p236, %p237
    %p239 = pneg %p238
    // Predicated region
    $region45: #{group_forward.3} parent=5 // pred_check
      _
    $region46: #{group_forward.3} parent=5 // pred_check_branch
      %241 = sbr.rel (%p238) target = $region48
    $region47: #{group_forward.3} parent=5 // pred_region
      %s242 = ssub.s32 %s13, 1
      %p243 = scmp.lt.s32.totalorder %s18, 1
      %s244 = scalar_select %p243, %s18, 1
      %s245 = smul.addr %s244, 2
      %s246 = smul.addr %s245, 4
      %s247 = scalar_lea.vmem %s0, %s246
      %p248 = pneg %p39
      %p249 = pneg %p36
      %p250 = pneg %p60
      %p251 = pneg %p57
      %p252 = pneg %p81
      %p253 = pneg %p78
      %p254 = pneg %p102
      %p255 = pneg %p99
      %p256 = pneg %p123
      %p257 = pneg %p120
      %p258 = pneg %p144
      %p259 = pneg %p141
      %p260 = pneg %p165
      %p261 = pneg %p162
      %p262 = pneg %p191
      %p263 = pneg %p188
      %p264 = scmp.lt.s32.totalorder %s18, 1
      %s265 = scalar_select %p264, %s18, 1
      %s266 = smul.addr %s265, 2
      %s267 = smul.addr %s266, 4
      %s268 = scalar_lea.vmem %s7, %s267
      %p269 = scmp.lt.s32.totalorder %s18, 1
      %s270 = scalar_select %p269, %s18, 1
      %s271 = smul.addr %s270, 2
      %s272 = smul.addr %s271, 4
      %s273 = scalar_lea.vmem %s0, %s272
      %p274 = scmp.lt.s32.totalorder %s18, 1
      %s275 = scalar_select %p274, %s18, 1
      %s276 = smul.addr %s275, 2
      %s277 = smul.addr %s276, 4
      %s278 = scalar_lea.vmem %s7, %s277
      %v280 = vld [vmem:[%s273] sm:$0xff]
      %v281 = vunpack.c.l.bf16 %v280
      %v282 = vunpack.c.h.bf16 %v280
      %v283 = vld [vmem:[%s1] sm:$0xff]
      %v284 = vld [vmem:[%s1 + $0x8] sm:$0xff]
      %v285 = vld [vmem:[%s1 + $0x10] sm:$0x1]
      %v286 = vld [vmem:[%s1 + $0x18] sm:$0x1]
      %s287 = scalar_lea.vmem %s1, 32
      %v288 = vld [vmem:[%s287] sm:$0xff]
      %v289 = vld [vmem:[%s287 + $0x8] sm:$0xff]
      %v290 = vld [vmem:[%s287 + $0x10] sm:$0x1]
      %v291 = vld [vmem:[%s287 + $0x18] sm:$0x1]
      %s292 = scalar_lea.vmem %s1, 64
      %v293 = vld [vmem:[%s292] sm:$0xff]
      %v294 = vld [vmem:[%s292 + $0x8] sm:$0xff]
      %v295 = vld [vmem:[%s292 + $0x10] sm:$0x1]
      %v296 = vld [vmem:[%s292 + $0x18] sm:$0x1]
      %s297 = scalar_lea.vmem %s1, 96
      %v298 = vld [vmem:[%s297] sm:$0xff]
      %v299 = vld [vmem:[%s297 + $0x8] sm:$0xff]
      %v300 = vld [vmem:[%s297 + $0x10] sm:$0x1]
      %v301 = vld [vmem:[%s297 + $0x18] sm:$0x1]
      %v302 = vld [vmem:[%s2] sm:$0xf]
      %303 = vrot.lane.b32.xlu0 %v281, 17
      %v304 = vpop.permute.xlu0 %303
      %305 = vrot.lane.b32.xlu0 %v282, 17
      %v306 = vpop.permute.xlu0 %305
      %v307 = vlaneseq
      %v308 = vand.u32 %v307, 127
      %vm309 = vcmp.lt.s32.totalorder %v308, 17
      %v310 = vsel %vm309, %v304, %v306
      %v311 = vsel %vm309, %v306, %v304
      %v312 = vperm.slane %v283, 0
      %v313 = vperm.slane %v284, 0
      %v314 = vmul.f32 %v311, %v312
      %v315 = vmul.f32 %v310, %v313
      %316 = vst [vmem:[#allocation2] sm:$0xff] %v314
      %317 = vst [vmem:[#allocation2 + $0x8] sm:$0xff] %v315
      %318 = vrot.lane.b32.xlu0 %v281, 16
      %v319 = vpop.permute.xlu0 %318
      %320 = vrot.lane.b32.xlu0 %v282, 16
      %v321 = vpop.permute.xlu0 %320
      %vm322 = vcmp.lt.s32.totalorder %v308, 16
      %v323 = vsel %vm322, %v319, %v321
      %v324 = vsel %vm322, %v321, %v319
      %v325 = vperm.slane %v283, 1
      %v326 = vperm.slane %v284, 1
      %v327 = vmul.f32 %v324, %v325
      %v328 = vmul.f32 %v323, %v326
      %329 = vst [vmem:[#allocation2 + $0x10] sm:$0xff] %v327
      %330 = vst [vmem:[#allocation2 + $0x18] sm:$0xff] %v328
      %331 = vrot.lane.b32.xlu0 %v281, 15
      %v332 = vpop.permute.xlu0 %331
      %333 = vrot.lane.b32.xlu0 %v282, 15
      %v334 = vpop.permute.xlu0 %333
      %vm335 = vcmp.lt.s32.totalorder %v308, 15
      %v336 = vsel %vm335, %v332, %v334
      %v337 = vsel %vm335, %v334, %v332
      %v338 = vperm.slane %v283, 2
      %v339 = vperm.slane %v284, 2
      %v340 = vmul.f32 %v337, %v338
      %v341 = vmul.f32 %v336, %v339
      %342 = vst [vmem:[#allocation2 + $0x20] sm:$0xff] %v340
      %343 = vst [vmem:[#allocation2 + $0x28] sm:$0xff] %v341
      %344 = vrot.lane.b32.xlu0 %v281, 1
      %v345 = vpop.permute.xlu0 %344
      %346 = vrot.lane.b32.xlu0 %v282, 1
      %v347 = vpop.permute.xlu0 %346
      %vm348 = vcmp.lt.s32.totalorder %v308, 1
      %v349 = vsel %vm348, %v345, %v347
      %v350 = vsel %vm348, %v347, %v345
      %v351 = vperm.slane %v283, 3
      %v352 = vperm.slane %v284, 3
      %v353 = vmul.f32 %v350, %v351
      %v354 = vmul.f32 %v349, %v352
      %355 = vst [vmem:[#allocation2 + $0x30] sm:$0xff] %v353
      %356 = vst [vmem:[#allocation2 + $0x38] sm:$0xff] %v354
      %v357 = vperm.slane %v283, 4
      %v358 = vperm.slane %v284, 4
      %v359 = vmul.f32 %v281, %v357
      %v360 = vmul.f32 %v282, %v358
      %361 = vst [vmem:[#allocation2 + $0x40] sm:$0xff] %v359
      %362 = vst [vmem:[#allocation2 + $0x48] sm:$0xff] %v360
      %363 = vrot.lane.b32.xlu0 %v281, 127
      %v364 = vpop.permute.xlu0 %363
      %365 = vrot.lane.b32.xlu0 %v282, 127
      %v366 = vpop.permute.xlu0 %365
      %vm367 = vcmp.lt.s32.totalorder %v308, 127
      %v368 = vsel %vm367, %v364, %v366
      %v369 = vsel %vm367, %v366, %v364
      %v370 = vperm.slane %v283, 5
      %v371 = vperm.slane %v284, 5
      %v372 = vmul.f32 %v368, %v370
      %v373 = vmul.f32 %v369, %v371
      %374 = vst [vmem:[#allocation2 + $0x50] sm:$0xff] %v372
      %375 = vst [vmem:[#allocation2 + $0x58] sm:$0xff] %v373
      %376 = vrot.lane.b32.xlu0 %v281, 113
      %v377 = vpop.permute.xlu0 %376
      %378 = vrot.lane.b32.xlu0 %v282, 113
      %v379 = vpop.permute.xlu0 %378
      %vm380 = vcmp.lt.s32.totalorder %v308, 113
      %v381 = vsel %vm380, %v377, %v379
      %v382 = vsel %vm380, %v379, %v377
      %v383 = vperm.slane %v283, 6
      %v384 = vperm.slane %v284, 6
      %v385 = vmul.f32 %v381, %v383
      %v386 = vmul.f32 %v382, %v384
      %387 = vst [vmem:[#allocation2 + $0x60] sm:$0xff] %v385
      %388 = vst [vmem:[#allocation2 + $0x68] sm:$0xff] %v386
      %389 = vrot.lane.b32.xlu0 %v281, 112
      %v390 = vpop.permute.xlu0 %389
      %391 = vrot.lane.b32.xlu0 %v282, 112
      %v392 = vpop.permute.xlu0 %391
      %vm393 = vcmp.lt.s32.totalorder %v308, 112
      %v394 = vsel %vm393, %v390, %v392
      %v395 = vsel %vm393, %v392, %v390
      %v396 = vperm.slane %v283, 7
      %v397 = vperm.slane %v284, 7
      %v398 = vmul.f32 %v394, %v396
      %v399 = vmul.f32 %v395, %v397
      %400 = vst [vmem:[#allocation2 + $0x70] sm:$0xff] %v398
      %401 = vst [vmem:[#allocation2 + $0x78] sm:$0xff] %v399
      %402 = vrot.lane.b32.xlu0 %v281, 111
      %v403 = vpop.permute.xlu0 %402
      %404 = vrot.lane.b32.xlu0 %v282, 111
      %v405 = vpop.permute.xlu0 %404
      %vm406 = vcmp.lt.s32.totalorder %v308, 111
      %v407 = vsel %vm406, %v403, %v405
      %v408 = vsel %vm406, %v405, %v403
      %v409 = vperm.slane %v285, 0
      %v410 = vperm.slane %v286, 0
      %v411 = vmul.f32 %v407, %v409
      %v412 = vmul.f32 %v408, %v410
      %413 = vst [vmem:[#allocation2 + $0x80] sm:$0xff] %v411
      %414 = vst [vmem:[#allocation2 + $0x88] sm:$0xff] %v412
      %v415 = vld [vmem:[#allocation2] sm:$0xff]
      %v416 = vld [vmem:[#allocation2 + $0x8] sm:$0xff]
      %v417 = vld [vmem:[#allocation2 + $0x10] sm:$0xff]
      %v418 = vld [vmem:[#allocation2 + $0x18] sm:$0xff]
      %v419 = vld [vmem:[#allocation2 + $0x20] sm:$0xff]
      %v420 = vld [vmem:[#allocation2 + $0x28] sm:$0xff]
      %v421 = vld [vmem:[#allocation2 + $0x30] sm:$0xff]
      %v422 = vld [vmem:[#allocation2 + $0x38] sm:$0xff]
      %v423 = vld [vmem:[#allocation2 + $0x40] sm:$0xff]
      %v424 = vld [vmem:[#allocation2 + $0x48] sm:$0xff]
      %v425 = vld [vmem:[#allocation2 + $0x50] sm:$0xff]
      %v426 = vld [vmem:[#allocation2 + $0x58] sm:$0xff]
      %v427 = vld [vmem:[#allocation2 + $0x60] sm:$0xff]
      %v428 = vld [vmem:[#allocation2 + $0x68] sm:$0xff]
      %v429 = vld [vmem:[#allocation2 + $0x70] sm:$0xff]
      %v430 = vld [vmem:[#allocation2 + $0x78] sm:$0xff]
      %v431 = vld [vmem:[#allocation2 + $0x80] sm:$0xff]
      %v432 = vld [vmem:[#allocation2 + $0x88] sm:$0xff]
      %v433 = vpack.c.bf16 %v417, %v415
      %v434 = vpack.c.bf16 %v418, %v416
      %v435 = vpack.c.bf16 %v421, %v419
      %v436 = vpack.c.bf16 %v422, %v420
      %v437 = vpack.c.bf16 %v425, %v423
      %v438 = vpack.c.bf16 %v426, %v424
      %v439 = vpack.c.bf16 %v429, %v427
      %v440 = vpack.c.bf16 %v430, %v428
      %v441 = vpack.c.bf16 %v431, %v431
      %v442 = vpack.c.bf16 %v432, %v432
      %v443 = vld [vmem:[%s6] sm:$0xff]
      %445 = vset.pattern.permute.xlu0 0
      %446 = vperm.xlu0 %445, %v443
      %v447 = vpop.permute.xlu0 %446
      %vm449 = vcmask 588800
      %v451 = vsel %vm449, %v302, 0
      %vm453 = vcmask 1043456
      %v455 = vsel %vm453, %v441, 0
      %v458 = vsel %vm453, %v442, 0
      %460 = vmatpush.bf16.msra.mxu0 0
      %461 = vmatpush.bf16.msra.mxu0 0
      %462 = vmatpush.bf16.msra.mxu0 0
      %463 = vmatpush.bf16.msra.mxu0 %v455
      %464 = vmatpush.bf16.msra.mxu0 %v439
      %465 = vmatpush.bf16.msra.mxu0 %v437
      %466 = vmatpush.bf16.msra.mxu0 %v435
      %467 = vmatpush.bf16.msra.mxu0 %v433
      %468 = vmatmul.bf16.gmra.mxu0 %v451
      %v469 = vpop.f32.mrf.mxu0
      %v470 = vadd.f32 %v447, %v469
      %v471 = vpop.f32.mrf.mxu0
      %472 = vdwg.mxu0
      %473 = vmatpush.bf16.msra.mxu0 0
      %474 = vmatpush.bf16.msra.mxu0 0
      %475 = vmatpush.bf16.msra.mxu0 0
      %476 = vmatpush.bf16.msra.mxu0 %v458
      %477 = vmatpush.bf16.msra.mxu0 %v440
      %478 = vmatpush.bf16.msra.mxu0 %v438
      %479 = vmatpush.bf16.msra.mxu0 %v436
      %480 = vmatpush.bf16.msra.mxu0 %v434
      %481 = vmatmul.bf16.gmra.mxu0 %v451
      %v482 = vpop.f32.mrf.mxu0
      %v483 = vadd.f32 %v447, %v482
      %v484 = vpop.f32.mrf.mxu0
      %485 = vdwg.mxu0
      %v486 = vmax.f32 %v470, 0.0
      %v487 = vmax.f32 %v483, 0.0
      %v488 = vadd.f32 %v486, %v281
      %v489 = vadd.f32 %v487, %v282
      %s490 = scalar_lea.vmem %s2, 4
      %v491 = vld [vmem:[%s490] sm:$0xf]
      %492 = vrot.lane.b32.xlu0 %v488, 17
      %v493 = vpop.permute.xlu0 %492
      %494 = vrot.lane.b32.xlu0 %v489, 17
      %v495 = vpop.permute.xlu0 %494
      %v496 = vsel %vm309, %v493, %v495
      %v497 = vsel %vm309, %v495, %v493
      %v498 = vmul.f32 %v497, %v312
      %v499 = vmul.f32 %v496, %v313
      %500 = vst [vmem:[#allocation2] sm:$0xff] %v498
      %501 = vst [vmem:[#allocation2 + $0x8] sm:$0xff] %v499
      %502 = vrot.lane.b32.xlu0 %v488, 16
      %v503 = vpop.permute.xlu0 %502
      %504 = vrot.lane.b32.xlu0 %v489, 16
      %v505 = vpop.permute.xlu0 %504
      %v506 = vsel %vm322, %v503, %v505
      %v507 = vsel %vm322, %v505, %v503
      %v508 = vmul.f32 %v507, %v325
      %v509 = vmul.f32 %v506, %v326
      %510 = vst [vmem:[#allocation2 + $0x10] sm:$0xff] %v508
      %511 = vst [vmem:[#allocation2 + $0x18] sm:$0xff] %v509
      %512 = vrot.lane.b32.xlu0 %v488, 15
      %v513 = vpop.permute.xlu0 %512
      %514 = vrot.lane.b32.xlu0 %v489, 15
      %v515 = vpop.permute.xlu0 %514
      %v516 = vsel %vm335, %v513, %v515
      %v517 = vsel %vm335, %v515, %v513
      %v518 = vmul.f32 %v517, %v338
      %v519 = vmul.f32 %v516, %v339
      %520 = vst [vmem:[#allocation2 + $0x20] sm:$0xff] %v518
      %521 = vst [vmem:[#allocation2 + $0x28] sm:$0xff] %v519
      %522 = vrot.lane.b32.xlu0 %v488, 1
      %v523 = vpop.permute.xlu0 %522
      %524 = vrot.lane.b32.xlu0 %v489, 1
      %v525 = vpop.permute.xlu0 %524
      %v526 = vsel %vm348, %v523, %v525
      %v527 = vsel %vm348, %v525, %v523
      %v528 = vmul.f32 %v527, %v351
      %v529 = vmul.f32 %v526, %v352
      %530 = vst [vmem:[#allocation2 + $0x30] sm:$0xff] %v528
      %531 = vst [vmem:[#allocation2 + $0x38] sm:$0xff] %v529
      %v532 = vmul.f32 %v488, %v357
      %v533 = vmul.f32 %v489, %v358
      %534 = vst [vmem:[#allocation2 + $0x40] sm:$0xff] %v532
      %535 = vst [vmem:[#allocation2 + $0x48] sm:$0xff] %v533
      %536 = vrot.lane.b32.xlu0 %v488, 127
      %v537 = vpop.permute.xlu0 %536
      %538 = vrot.lane.b32.xlu0 %v489, 127
      %v539 = vpop.permute.xlu0 %538
      %v540 = vsel %vm367, %v537, %v539
      %v541 = vsel %vm367, %v539, %v537
      %v542 = vmul.f32 %v540, %v370
      %v543 = vmul.f32 %v541, %v371
      %544 = vst [vmem:[#allocation2 + $0x50] sm:$0xff] %v542
      %545 = vst [vmem:[#allocation2 + $0x58] sm:$0xff] %v543
      %546 = vrot.lane.b32.xlu0 %v488, 113
      %v547 = vpop.permute.xlu0 %546
      %548 = vrot.lane.b32.xlu0 %v489, 113
      %v549 = vpop.permute.xlu0 %548
      %v550 = vsel %vm380, %v547, %v549
      %v551 = vsel %vm380, %v549, %v547
      %v552 = vmul.f32 %v550, %v383
      %v553 = vmul.f32 %v551, %v384
      %554 = vst [vmem:[#allocation2 + $0x60] sm:$0xff] %v552
      %555 = vst [vmem:[#allocation2 + $0x68] sm:$0xff] %v553
      %556 = vrot.lane.b32.xlu0 %v488, 112
      %v557 = vpop.permute.xlu0 %556
      %558 = vrot.lane.b32.xlu0 %v489, 112
      %v559 = vpop.permute.xlu0 %558
      %v560 = vsel %vm393, %v557, %v559
      %v561 = vsel %vm393, %v559, %v557
      %v562 = vmul.f32 %v560, %v396
      %v563 = vmul.f32 %v561, %v397
      %564 = vst [vmem:[#allocation2 + $0x70] sm:$0xff] %v562
      %565 = vst [vmem:[#allocation2 + $0x78] sm:$0xff] %v563
      %566 = vrot.lane.b32.xlu0 %v488, 111
      %v567 = vpop.permute.xlu0 %566
      %568 = vrot.lane.b32.xlu0 %v489, 111
      %v569 = vpop.permute.xlu0 %568
      %v570 = vsel %vm406, %v567, %v569
      %v571 = vsel %vm406, %v569, %v567
      %v572 = vmul.f32 %v570, %v409
      %v573 = vmul.f32 %v571, %v410
      %574 = vst [vmem:[#allocation2 + $0x80] sm:$0xff] %v572
      %575 = vst [vmem:[#allocation2 + $0x88] sm:$0xff] %v573
      %v576 = vld [vmem:[#allocation2] sm:$0xff]
      %v577 = vld [vmem:[#allocation2 + $0x8] sm:$0xff]
      %v578 = vld [vmem:[#allocation2 + $0x10] sm:$0xff]
      %v579 = vld [vmem:[#allocation2 + $0x18] sm:$0xff]
      %v580 = vld [vmem:[#allocation2 + $0x20] sm:$0xff]
      %v581 = vld [vmem:[#allocation2 + $0x28] sm:$0xff]
      %v582 = vld [vmem:[#allocation2 + $0x30] sm:$0xff]
      %v583 = vld [vmem:[#allocation2 + $0x38] sm:$0xff]
      %v584 = vld [vmem:[#allocation2 + $0x40] sm:$0xff]
      %v585 = vld [vmem:[#allocation2 + $0x48] sm:$0xff]
      %v586 = vld [vmem:[#allocation2 + $0x50] sm:$0xff]
      %v587 = vld [vmem:[#allocation2 + $0x58] sm:$0xff]
      %v588 = vld [vmem:[#allocation2 + $0x60] sm:$0xff]
      %v589 = vld [vmem:[#allocation2 + $0x68] sm:$0xff]
      %v590 = vld [vmem:[#allocation2 + $0x70] sm:$0xff]
      %v591 = vld [vmem:[#allocation2 + $0x78] sm:$0xff]
      %v592 = vld [vmem:[#allocation2 + $0x80] sm:$0xff]
      %v593 = vld [vmem:[#allocation2 + $0x88] sm:$0xff]
      %v594 = vpack.c.bf16 %v578, %v576
      %v595 = vpack.c.bf16 %v579, %v577
      %v596 = vpack.c.bf16 %v582, %v580
      %v597 = vpack.c.bf16 %v583, %v581
      %v598 = vpack.c.bf16 %v586, %v584
      %v599 = vpack.c.bf16 %v587, %v585
      %v600 = vpack.c.bf16 %v590, %v588
      %v601 = vpack.c.bf16 %v591, %v589
      %v602 = vpack.c.bf16 %v592, %v592
      %v603 = vpack.c.bf16 %v593, %v593
      %s604 = scalar_lea.vmem %s6, 8
      %v605 = vld [vmem:[%s604] sm:$0xff]
      %607 = vset.pattern.permute.xlu0 0
      %608 = vperm.xlu0 %607, %v605
      %v609 = vpop.permute.xlu0 %608
      %v612 = vsel %vm449, %v491, 0
      %v615 = vsel %vm453, %v602, 0
      %v618 = vsel %vm453, %v603, 0
      %620 = vmatpush.bf16.msra.mxu0 0
      %621 = vmatpush.bf16.msra.mxu0 0
      %622 = vmatpush.bf16.msra.mxu0 0
      %623 = vmatpush.bf16.msra.mxu0 %v615
      %624 = vmatpush.bf16.msra.mxu0 %v600
      %625 = vmatpush.bf16.msra.mxu0 %v598
      %626 = vmatpush.bf16.msra.mxu0 %v596
      %627 = vmatpush.bf16.msra.mxu0 %v594
      %628 = vmatmul.bf16.gmra.mxu0 %v612
      %v629 = vpop.f32.mrf.mxu0
      %v630 = vadd.f32 %v609, %v629
      %v631 = vpop.f32.mrf.mxu0
      %632 = vdwg.mxu0
      %633 = vmatpush.bf16.msra.mxu0 0
      %634 = vmatpush.bf16.msra.mxu0 0
      %635 = vmatpush.bf16.msra.mxu0 0
      %636 = vmatpush.bf16.msra.mxu0 %v618
      %637 = vmatpush.bf16.msra.mxu0 %v601
      %638 = vmatpush.bf16.msra.mxu0 %v599
      %639 = vmatpush.bf16.msra.mxu0 %v597
      %640 = vmatpush.bf16.msra.mxu0 %v595
      %641 = vmatmul.bf16.gmra.mxu0 %v612
      %v642 = vpop.f32.mrf.mxu0
      %v643 = vadd.f32 %v609, %v642
      %v644 = vpop.f32.mrf.mxu0
      %645 = vdwg.mxu0
      %s646 = scalar_lea.vmem %s2, 8
      %v647 = vld [vmem:[%s646] sm:$0xf]
      %648 = vrot.lane.b32.xlu0 %v630, 17
      %v649 = vpop.permute.xlu0 %648
      %650 = vrot.lane.b32.xlu0 %v643, 17
      %v651 = vpop.permute.xlu0 %650
      %v652 = vsel %vm309, %v649, %v651
      %v653 = vsel %vm309, %v651, %v649
      %v654 = vmul.f32 %v653, %v312
      %v655 = vmul.f32 %v652, %v313
      %656 = vst [vmem:[#allocation2] sm:$0xff] %v654
      %657 = vst [vmem:[#allocation2 + $0x8] sm:$0xff] %v655
      %658 = vrot.lane.b32.xlu0 %v630, 16
      %v659 = vpop.permute.xlu0 %658
      %660 = vrot.lane.b32.xlu0 %v643, 16
      %v661 = vpop.permute.xlu0 %660
      %v662 = vsel %vm322, %v659, %v661
      %v663 = vsel %vm322, %v661, %v659
      %v664 = vmul.f32 %v663, %v325
      %v665 = vmul.f32 %v662, %v326
      %666 = vst [vmem:[#allocation2 + $0x10] sm:$0xff] %v664
      %667 = vst [vmem:[#allocation2 + $0x18] sm:$0xff] %v665
      %668 = vrot.lane.b32.xlu0 %v630, 15
      %v669 = vpop.permute.xlu0 %668
      %670 = vrot.lane.b32.xlu0 %v643, 15
      %v671 = vpop.permute.xlu0 %670
      %v672 = vsel %vm335, %v669, %v671
      %v673 = vsel %vm335, %v671, %v669
      %v674 = vmul.f32 %v673, %v338
      %v675 = vmul.f32 %v672, %v339
      %676 = vst [vmem:[#allocation2 + $0x20] sm:$0xff] %v674
      %677 = vst [vmem:[#allocation2 + $0x28] sm:$0xff] %v675
      %678 = vrot.lane.b32.xlu0 %v630, 1
      %v679 = vpop.permute.xlu0 %678
      %680 = vrot.lane.b32.xlu0 %v643, 1
      %v681 = vpop.permute.xlu0 %680
      %v682 = vsel %vm348, %v679, %v681
      %v683 = vsel %vm348, %v681, %v679
      %v684 = vmul.f32 %v683, %v351
      %v685 = vmul.f32 %v682, %v352
      %686 = vst [vmem:[#allocation2 + $0x30] sm:$0xff] %v684
      %687 = vst [vmem:[#allocation2 + $0x38] sm:$0xff] %v685
      %v688 = vmul.f32 %v630, %v357
      %v689 = vmul.f32 %v643, %v358
      %690 = vst [vmem:[#allocation2 + $0x40] sm:$0xff] %v688
      %691 = vst [vmem:[#allocation2 + $0x48] sm:$0xff] %v689
      %692 = vrot.lane.b32.xlu0 %v630, 127
      %v693 = vpop.permute.xlu0 %692
      %694 = vrot.lane.b32.xlu0 %v643, 127
      %v695 = vpop.permute.xlu0 %694
      %v696 = vsel %vm367, %v693, %v695
      %v697 = vsel %vm367, %v695, %v693
      %v698 = vmul.f32 %v696, %v370
      %v699 = vmul.f32 %v697, %v371
      %700 = vst [vmem:[#allocation2 + $0x50] sm:$0xff] %v698
      %701 = vst [vmem:[#allocation2 + $0x58] sm:$0xff] %v699
      %702 = vrot.lane.b32.xlu0 %v630, 113
      %v703 = vpop.permute.xlu0 %702
      %704 = vrot.lane.b32.xlu0 %v643, 113
      %v705 = vpop.permute.xlu0 %704
      %v706 = vsel %vm380, %v703, %v705
      %v707 = vsel %vm380, %v705, %v703
      %v708 = vmul.f32 %v706, %v383
      %v709 = vmul.f32 %v707, %v384
      %710 = vst [vmem:[#allocation2 + $0x60] sm:$0xff] %v708
      %711 = vst [vmem:[#allocation2 + $0x68] sm:$0xff] %v709
      %712 = vrot.lane.b32.xlu0 %v630, 112
      %v713 = vpop.permute.xlu0 %712
      %714 = vrot.lane.b32.xlu0 %v643, 112
      %v715 = vpop.permute.xlu0 %714
      %v716 = vsel %vm393, %v713, %v715
      %v717 = vsel %vm393, %v715, %v713
      %v718 = vmul.f32 %v716, %v396
      %v719 = vmul.f32 %v717, %v397
      %720 = vst [vmem:[#allocation2 + $0x70] sm:$0xff] %v718
      %721 = vst [vmem:[#allocation2 + $0x78] sm:$0xff] %v719
      %722 = vrot.lane.b32.xlu0 %v630, 111
      %v723 = vpop.permute.xlu0 %722
      %724 = vrot.lane.b32.xlu0 %v643, 111
      %v725 = vpop.permute.xlu0 %724
      %v726 = vsel %vm406, %v723, %v725
      %v727 = vsel %vm406, %v725, %v723
      %v728 = vmul.f32 %v726, %v409
      %v729 = vmul.f32 %v727, %v410
      %730 = vst [vmem:[#allocation2 + $0x80] sm:$0xff] %v728
      %731 = vst [vmem:[#allocation2 + $0x88] sm:$0xff] %v729
      %v732 = vld [vmem:[#allocation2] sm:$0xff]
      %v733 = vld [vmem:[#allocation2 + $0x8] sm:$0xff]
      %v734 = vld [vmem:[#allocation2 + $0x10] sm:$0xff]
      %v735 = vld [vmem:[#allocation2 + $0x18] sm:$0xff]
      %v736 = vld [vmem:[#allocation2 + $0x20] sm:$0xff]
      %v737 = vld [vmem:[#allocation2 + $0x28] sm:$0xff]
      %v738 = vld [vmem:[#allocation2 + $0x30] sm:$0xff]
      %v739 = vld [vmem:[#allocation2 + $0x38] sm:$0xff]
      %v740 = vld [vmem:[#allocation2 + $0x40] sm:$0xff]
      %v741 = vld [vmem:[#allocation2 + $0x48] sm:$0xff]
      %v742 = vld [vmem:[#allocation2 + $0x50] sm:$0xff]
      %v743 = vld [vmem:[#allocation2 + $0x58] sm:$0xff]
      %v744 = vld [vmem:[#allocation2 + $0x60] sm:$0xff]
      %v745 = vld [vmem:[#allocation2 + $0x68] sm:$0xff]
      %v746 = vld [vmem:[#allocation2 + $0x70] sm:$0xff]
      %v747 = vld [vmem:[#allocation2 + $0x78] sm:$0xff]
      %v748 = vld [vmem:[#allocation2 + $0x80] sm:$0xff]
      %v749 = vld [vmem:[#allocation2 + $0x88] sm:$0xff]
      %v750 = vpack.c.bf16 %v734, %v732
      %v751 = vpack.c.bf16 %v735, %v733
      %v752 = vpack.c.bf16 %v738, %v736
      %v753 = vpack.c.bf16 %v739, %v737
      %v754 = vpack.c.bf16 %v742, %v740
      %v755 = vpack.c.bf16 %v743, %v741
      %v756 = vpack.c.bf16 %v746, %v744
      %v757 = vpack.c.bf16 %v747, %v745
      %v758 = vpack.c.bf16 %v748, %v748
      %v759 = vpack.c.bf16 %v749, %v749
      %s760 = scalar_lea.vmem %s6, 16
      %v761 = vld [vmem:[%s760] sm:$0xff]
      %763 = vset.pattern.permute.xlu0 0
      %764 = vperm.xlu0 %763, %v761
      %v765 = vpop.permute.xlu0 %764
      %v768 = vsel %vm449, %v647, 0
      %v771 = vsel %vm453, %v758, 0
      %v774 = vsel %vm453, %v759, 0
      %776 = vmatpush.bf16.msra.mxu0 0
      %777 = vmatpush.bf16.msra.mxu0 0
      %778 = vmatpush.bf16.msra.mxu0 0
      %779 = vmatpush.bf16.msra.mxu0 %v771
      %780 = vmatpush.bf16.msra.mxu0 %v756
      %781 = vmatpush.bf16.msra.mxu0 %v754
      %782 = vmatpush.bf16.msra.mxu0 %v752
      %783 = vmatpush.bf16.msra.mxu0 %v750
      %784 = vmatmul.bf16.gmra.mxu0 %v768
      %v785 = vpop.f32.mrf.mxu0
      %v786 = vadd.f32 %v765, %v785
      %v787 = vpop.f32.mrf.mxu0
      %788 = vdwg.mxu0
      %789 = vmatpush.bf16.msra.mxu0 0
      %790 = vmatpush.bf16.msra.mxu0 0
      %791 = vmatpush.bf16.msra.mxu0 0
      %792 = vmatpush.bf16.msra.mxu0 %v774
      %793 = vmatpush.bf16.msra.mxu0 %v757
      %794 = vmatpush.bf16.msra.mxu0 %v755
      %795 = vmatpush.bf16.msra.mxu0 %v753
      %796 = vmatpush.bf16.msra.mxu0 %v751
      %797 = vmatmul.bf16.gmra.mxu0 %v768
      %v798 = vpop.f32.mrf.mxu0
      %v799 = vadd.f32 %v765, %v798
      %v800 = vpop.f32.mrf.mxu0
      %801 = vdwg.mxu0
      %vm802 = vcmp.ge.f32.partialorder %v786, 0.0
      %vm803 = vcmp.ge.f32.partialorder %v799, 0.0
      %s804 = scalar_lea.vmem %s6, 24
      %v805 = vld [vmem:[%s804] sm:$0xff]
      %807 = vset.pattern.permute.xlu0 0
      %808 = vperm.xlu0 %807, %v805
      %v809 = vpop.permute.xlu0 %808
      %v811 = vmul.f32 %v809, %v786
      %v812 = vmul.f32 %v809, %v799
      %v813 = vsel %vm802, %v786, %v811
      %v814 = vsel %vm803, %v799, %v812
      %s815 = scalar_lea.vmem %s2, 12
      %v816 = vld [vmem:[%s815] sm:$0xf]
      %817 = vrot.lane.b32.xlu0 %v813, 17
      %v818 = vpop.permute.xlu0 %817
      %819 = vrot.lane.b32.xlu0 %v814, 17
      %v820 = vpop.permute.xlu0 %819
      %v821 = vsel %vm309, %v818, %v820
      %v822 = vsel %vm309, %v820, %v818
      %v823 = vmul.f32 %v822, %v312
      %v824 = vmul.f32 %v821, %v313
      %825 = vst [vmem:[#allocation2] sm:$0xff] %v823
      %826 = vst [vmem:[#allocation2 + $0x8] sm:$0xff] %v824
      %827 = vrot.lane.b32.xlu0 %v813, 16
      %v828 = vpop.permute.xlu0 %827
      %829 = vrot.lane.b32.xlu0 %v814, 16
      %v830 = vpop.permute.xlu0 %829
      %v831 = vsel %vm322, %v828, %v830
      %v832 = vsel %vm322, %v830, %v828
      %v833 = vmul.f32 %v832, %v325
      %v834 = vmul.f32 %v831, %v326
      %835 = vst [vmem:[#allocation2 + $0x10] sm:$0xff] %v833
      %836 = vst [vmem:[#allocation2 + $0x18] sm:$0xff] %v834
      %837 = vrot.lane.b32.xlu0 %v813, 15
      %v838 = vpop.permute.xlu0 %837
      %839 = vrot.lane.b32.xlu0 %v814, 15
      %v840 = vpop.permute.xlu0 %839
      %v841 = vsel %vm335, %v838, %v840
      %v842 = vsel %vm335, %v840, %v838
      %v843 = vmul.f32 %v842, %v338
      %v844 = vmul.f32 %v841, %v339
      %845 = vst [vmem:[#allocation2 + $0x20] sm:$0xff] %v843
      %846 = vst [vmem:[#allocation2 + $0x28] sm:$0xff] %v844
      %847 = vrot.lane.b32.xlu0 %v813, 1
      %v848 = vpop.permute.xlu0 %847
      %849 = vrot.lane.b32.xlu0 %v814, 1
      %v850 = vpop.permute.xlu0 %849
      %v851 = vsel %vm348, %v848, %v850
      %v852 = vsel %vm348, %v850, %v848
      %v853 = vmul.f32 %v852, %v351
      %v854 = vmul.f32 %v851, %v352
      %855 = vst [vmem:[#allocation2 + $0x30] sm:$0xff] %v853
      %856 = vst [vmem:[#allocation2 + $0x38] sm:$0xff] %v854
      %v857 = vmul.f32 %v813, %v357
      %v858 = vmul.f32 %v814, %v358
      %859 = vst [vmem:[#allocation2 + $0x40] sm:$0xff] %v857
      %860 = vst [vmem:[#allocation2 + $0x48] sm:$0xff] %v858
      %861 = vrot.lane.b32.xlu0 %v813, 127
      %v862 = vpop.permute.xlu0 %861
      %863 = vrot.lane.b32.xlu0 %v814, 127
      %v864 = vpop.permute.xlu0 %863
      %v865 = vsel %vm367, %v862, %v864
      %v866 = vsel %vm367, %v864, %v862
      %v867 = vmul.f32 %v865, %v370
      %v868 = vmul.f32 %v866, %v371
      %869 = vst [vmem:[#allocation2 + $0x50] sm:$0xff] %v867
      %870 = vst [vmem:[#allocation2 + $0x58] sm:$0xff] %v868
      %871 = vrot.lane.b32.xlu0 %v813, 113
      %v872 = vpop.permute.xlu0 %871
      %873 = vrot.lane.b32.xlu0 %v814, 113
      %v874 = vpop.permute.xlu0 %873
      %v875 = vsel %vm380, %v872, %v874
      %v876 = vsel %vm380, %v874, %v872
      %v877 = vmul.f32 %v875, %v383
      %v878 = vmul.f32 %v876, %v384
      %879 = vst [vmem:[#allocation2 + $0x60] sm:$0xff] %v877
      %880 = vst [vmem:[#allocation2 + $0x68] sm:$0xff] %v878
      %881 = vrot.lane.b32.xlu0 %v813, 112
      %v882 = vpop.permute.xlu0 %881
      %883 = vrot.lane.b32.xlu0 %v814, 112
      %v884 = vpop.permute.xlu0 %883
      %v885 = vsel %vm393, %v882, %v884
      %v886 = vsel %vm393, %v884, %v882
      %v887 = vmul.f32 %v885, %v396
      %v888 = vmul.f32 %v886, %v397
      %889 = vst [vmem:[#allocation2 + $0x70] sm:$0xff] %v887
      %890 = vst [vmem:[#allocation2 + $0x78] sm:$0xff] %v888
      %891 = vrot.lane.b32.xlu0 %v813, 111
      %v892 = vpop.permute.xlu0 %891
      %893 = vrot.lane.b32.xlu0 %v814, 111
      %v894 = vpop.permute.xlu0 %893
      %v895 = vsel %vm406, %v892, %v894
      %v896 = vsel %vm406, %v894, %v892
      %v897 = vmul.f32 %v895, %v409
      %v898 = vmul.f32 %v896, %v410
      %899 = vst [vmem:[#allocation2 + $0x80] sm:$0xff] %v897
      %900 = vst [vmem:[#allocation2 + $0x88] sm:$0xff] %v898
      %v901 = vld [vmem:[#allocation2] sm:$0xff]
      %v902 = vld [vmem:[#allocation2 + $0x8] sm:$0xff]
      %v903 = vld [vmem:[#allocation2 + $0x10] sm:$0xff]
      %v904 = vld [vmem:[#allocation2 + $0x18] sm:$0xff]
      %v905 = vld [vmem:[#allocation2 + $0x20] sm:$0xff]
      %v906 = vld [vmem:[#allocation2 + $0x28] sm:$0xff]
      %v907 = vld [vmem:[#allocation2 + $0x30] sm:$0xff]
      %v908 = vld [vmem:[#allocation2 + $0x38] sm:$0xff]
      %v909 = vld [vmem:[#allocation2 + $0x40] sm:$0xff]
      %v910 = vld [vmem:[#allocation2 + $0x48] sm:$0xff]
      %v911 = vld [vmem:[#allocation2 + $0x50] sm:$0xff]
      %v912 = vld [vmem:[#allocation2 + $0x58] sm:$0xff]
      %v913 = vld [vmem:[#allocation2 + $0x60] sm:$0xff]
      %v914 = vld [vmem:[#allocation2 + $0x68] sm:$0xff]
      %v915 = vld [vmem:[#allocation2 + $0x70] sm:$0xff]
      %v916 = vld [vmem:[#allocation2 + $0x78] sm:$0xff]
      %v917 = vld [vmem:[#allocation2 + $0x80] sm:$0xff]
      %v918 = vld [vmem:[#allocation2 + $0x88] sm:$0xff]
      %v919 = vpack.c.bf16 %v903, %v901
      %v920 = vpack.c.bf16 %v904, %v902
      %v921 = vpack.c.bf16 %v907, %v905
      %v922 = vpack.c.bf16 %v908, %v906
      %v923 = vpack.c.bf16 %v911, %v909
      %v924 = vpack.c.bf16 %v912, %v910
      %v925 = vpack.c.bf16 %v915, %v913
      %v926 = vpack.c.bf16 %v916, %v914
      %v927 = vpack.c.bf16 %v917, %v917
      %v928 = vpack.c.bf16 %v918, %v918
      %s929 = scalar_lea.vmem %s6, 32
      %v930 = vld [vmem:[%s929] sm:$0xff]
      %932 = vset.pattern.permute.xlu0 0
      %933 = vperm.xlu0 %932, %v930
      %v934 = vpop.permute.xlu0 %933
      %v937 = vsel %vm449, %v816, 0
      %v940 = vsel %vm453, %v927, 0
      %v943 = vsel %vm453, %v928, 0
      %945 = vmatpush.bf16.msra.mxu0 0
      %946 = vmatpush.bf16.msra.mxu0 0
      %947 = vmatpush.bf16.msra.mxu0 0
      %948 = vmatpush.bf16.msra.mxu0 %v940
      %949 = vmatpush.bf16.msra.mxu0 %v925
      %950 = vmatpush.bf16.msra.mxu0 %v923
      %951 = vmatpush.bf16.msra.mxu0 %v921
      %952 = vmatpush.bf16.msra.mxu0 %v919
      %953 = vmatmul.bf16.gmra.mxu0 %v937
      %v954 = vpop.f32.mrf.mxu0
      %v955 = vadd.f32 %v934, %v954
      %v956 = vpop.f32.mrf.mxu0
      %957 = vdwg.mxu0
      %958 = vmatpush.bf16.msra.mxu0 0
      %959 = vmatpush.bf16.msra.mxu0 0
      %960 = vmatpush.bf16.msra.mxu0 0
      %961 = vmatpush.bf16.msra.mxu0 %v943
      %962 = vmatpush.bf16.msra.mxu0 %v926
      %963 = vmatpush.bf16.msra.mxu0 %v924
      %964 = vmatpush.bf16.msra.mxu0 %v922
      %965 = vmatpush.bf16.msra.mxu0 %v920
      %966 = vmatmul.bf16.gmra.mxu0 %v937
      %v967 = vpop.f32.mrf.mxu0
      %v968 = vadd.f32 %v934, %v967
      %v969 = vpop.f32.mrf.mxu0
      %970 = vdwg.mxu0
      %v971 = vadd.f32 %v955, %v968
      %972 = vadd.xlane.f32.xlu0 %v971
      %v973 = vpop.xlane.xlu0 %972
      %v974 = vrcp.pop 256.0
      %v975 = vmul.f32 256.0, %v974
      %v976 = vsub.f32 1.0, %v975
      %v977 = vmul.f32 %v974, %v976
      %v978 = vadd.f32 %v974, %v977
      %vm979 = vweird.f32 %v974
      %v980 = vsel %vm979, %v974, %v978
      %v981 = vmul.f32 %v973, %v980
      %v982 = vmax.f32 %v955, %v968
      %983 = vmax.xlane.f32.xlu0 %v982
      %v984 = vpop.xlane.xlu0 %983
      %vm985 = vcmp.eq.s32.totalorder %v308, 0
      %v986 = vsel %vm985, %v981, %v984
      %v987 = vld [vmem:[%s3] sm:$0xff]
      %v988 = vld [vmem:[%s3 + $0x8] sm:$0xff]
      %vm989 = vcmask 64512
      %v991 = vsel %vm989, %v987, 0
      %993 = vmatpush.msra.mxu0 0.0
      %994 = vmatpush.msra.mxu0 0.0
      %995 = vmatpush.msra.mxu0 0.0
      %996 = vmatpush.msra.mxu0 0.0
      %997 = vmatpush.msra.mxu0 0.0
      %998 = vmatpush.msra.mxu0 0.0
      %999 = vmatpush.msra.mxu0 0.0
      %1000 = vmatpush.msra.mxu0 0.0
      %1001 = vmatpush.msra.mxu0 0.0
      %1002 = vmatpush.msra.mxu0 0.0
      %1003 = vmatpush.msra.mxu0 0.0
      %1004 = vmatpush.msra.mxu0 0.0
      %1005 = vmatpush.msra.mxu0 0.0
      %1006 = vmatpush.msra.mxu0 0.0
      %1007 = vmatpush.msra.mxu0 0.0
      %1008 = vmatpush.msra.mxu0 %v986
      %1009 = vmatmul.f32.gmra.mxu0 %v991
      %v1010 = vpop.f32.mrf.mxu0
      %v1011 = vadd.f32 0.0, %v1010
      %1012 = vdwg.mxu0
      %v1013 = vmax.f32 %v1011, 0.0
      %v1015 = vsel %vm989, %v988, 0
      %1017 = vmatpush.msra.mxu0 0.0
      %1018 = vmatpush.msra.mxu0 0.0
      %1019 = vmatpush.msra.mxu0 0.0
      %1020 = vmatpush.msra.mxu0 0.0
      %1021 = vmatpush.msra.mxu0 0.0
      %1022 = vmatpush.msra.mxu0 0.0
      %1023 = vmatpush.msra.mxu0 0.0
      %1024 = vmatpush.msra.mxu0 0.0
      %1025 = vmatpush.msra.mxu0 0.0
      %1026 = vmatpush.msra.mxu0 0.0
      %1027 = vmatpush.msra.mxu0 0.0
      %1028 = vmatpush.msra.mxu0 0.0
      %1029 = vmatpush.msra.mxu0 0.0
      %1030 = vmatpush.msra.mxu0 0.0
      %1031 = vmatpush.msra.mxu0 0.0
      %1032 = vmatpush.msra.mxu0 %v1013
      %1033 = vmatmul.f32.gmra.mxu0 %v1015
      %v1034 = vpop.f32.mrf.mxu0
      %v1035 = vadd.f32 0.0, %v1034
      %1036 = vdwg.mxu0
      %v1037 = vxor.u32 %v1035, 2147483648
      %v1038 = vmul.f32 %v1037, 1.442695
      %v1039 = vpow.pop %v1038
      %v1040 = vadd.f32 %v1039, 1.0
      %v1041 = vrcp.pop %v1040
      %v1042 = vmul.f32 %v1040, %v1041
      %v1043 = vsub.f32 1.0, %v1042
      %v1044 = vmul.f32 %v1041, %v1043
      %v1045 = vadd.f32 %v1041, %v1044
      %vm1046 = vweird.f32 %v1040
      %vm1047 = vweird.f32 %v1041
      %vm1048 = vmor %vm1046, %vm1047
      %v1049 = vsel %vm1048, %v1041, %v1045
      %v1050 = vand.u32 2147483647, %v1040
      %vm1051 = vcmp.eq.f32.partialorder %v1050, 8.507059e+37
      %v1052 = vand.u32 %v1040, 2147483648
      %v1053 = vor.u32 1.1754944e-38, %v1052
      %v1054 = vsel %vm1051, %v1053, %v1049
      %v1055 = vmul.f32 1.0, %v1054
      %v1056 = vsel %vm985, %v1055, 0.0
      %vm1057 = vcmask 15360
      %v1058 = vsel %vm1057, %v1056, 0.0
      %1059 = vadd.xlane.f32.xlu0 %v1058
      %v1060 = vpop.xlane.xlu0 %1059
      %vm1061 = vcmp.eq.s32.totalorder %v308, 1
      %v1062 = vsel %vm1061, %v1055, 0.0
      %v1063 = vsel %vm1057, %v1062, 0.0
      %1064 = vadd.xlane.f32.xlu0 %v1063
      %v1065 = vpop.xlane.xlu0 %1064
      %v1066 = vmul.f32 %v1060, %v630
      %v1067 = vmul.f32 %v1060, %v643
      %1068 = vst [vmem:[#allocation2] sm:$0xff] %v1066
      %1069 = vst [vmem:[#allocation2 + $0x8] sm:$0xff] %v1067
      %v1070 = vmul.f32 %v1065, %v630
      %v1071 = vmul.f32 %v1065, %v643
      %1072 = vst [vmem:[#allocation2 + $0x10] sm:$0xff] %v1070
      %1073 = vst [vmem:[#allocation2 + $0x18] sm:$0xff] %v1071
      %v1074 = vld [vmem:[%s4] sm:$0xf]
      %v1075 = vld [vmem:[#allocation2] sm:$0xff]
      %v1076 = vld [vmem:[#allocation2 + $0x8] sm:$0xff]
      %v1077 = vld [vmem:[#allocation2 + $0x10] sm:$0xff]
      %v1078 = vld [vmem:[#allocation2 + $0x18] sm:$0xff]
      %v1079 = vpack.c.bf16 %v1077, %v1075
      %v1080 = vpack.c.bf16 %v1078, %v1076
      %s1081 = scalar_lea.vmem %s6, 40
      %v1082 = vld [vmem:[%s1081] sm:$0xff]
      %1084 = vset.pattern.permute.xlu0 0
      %1085 = vperm.xlu0 %1084, %v1082
      %v1086 = vpop.permute.xlu0 %1085
      %vm1088 = vcmask 130048
      %v1090 = vsel %vm1088, %v1074, 0
      %1092 = vmatpush.bf16.msra.mxu0 0
      %1093 = vmatpush.bf16.msra.mxu0 0
      %1094 = vmatpush.bf16.msra.mxu0 0
      %1095 = vmatpush.bf16.msra.mxu0 0
      %1096 = vmatpush.bf16.msra.mxu0 0
      %1097 = vmatpush.bf16.msra.mxu0 0
      %1098 = vmatpush.bf16.msra.mxu0 0
      %1099 = vmatpush.bf16.msra.mxu0 %v1079
      %1100 = vmatmul.bf16.gmra.mxu0 %v1090
      %v1101 = vpop.f32.mrf.mxu0
      %v1102 = vadd.f32 %v1086, %v1101
      %v1103 = vpop.f32.mrf.mxu0
      %1104 = vdwg.mxu0
      %1105 = vmatpush.bf16.msra.mxu0 0
      %1106 = vmatpush.bf16.msra.mxu0 0
      %1107 = vmatpush.bf16.msra.mxu0 0
      %1108 = vmatpush.bf16.msra.mxu0 0
      %1109 = vmatpush.bf16.msra.mxu0 0
      %1110 = vmatpush.bf16.msra.mxu0 0
      %1111 = vmatpush.bf16.msra.mxu0 0
      %1112 = vmatpush.bf16.msra.mxu0 %v1080
      %1113 = vmatmul.bf16.gmra.mxu0 %v1090
      %v1114 = vpop.f32.mrf.mxu0
      %v1115 = vadd.f32 %v1086, %v1114
      %v1116 = vpop.f32.mrf.mxu0
      %1117 = vdwg.mxu0
      %s1118 = scalar_lea.vmem %s2, 16
      %v1119 = vld [vmem:[%s1118] sm:$0xf]
      %1120 = vrot.lane.b32.xlu0 %v1102, 17
      %v1121 = vpop.permute.xlu0 %1120
      %1122 = vrot.lane.b32.xlu0 %v1115, 17
      %v1123 = vpop.permute.xlu0 %1122
      %v1124 = vsel %vm309, %v1121, %v1123
      %v1125 = vsel %vm309, %v1123, %v1121
      %v1126 = vmul.f32 %v1125, %v312
      %v1127 = vmul.f32 %v1124, %v313
      %1128 = vst [vmem:[#allocation2] sm:$0xff] %v1126
      %1129 = vst [vmem:[#allocation2 + $0x8] sm:$0xff] %v1127
      %1130 = vrot.lane.b32.xlu0 %v1102, 16
      %v1131 = vpop.permute.xlu0 %1130
      %1132 = vrot.lane.b32.xlu0 %v1115, 16
      %v1133 = vpop.permute.xlu0 %1132
      %v1134 = vsel %vm322, %v1131, %v1133
      %v1135 = vsel %vm322, %v1133, %v1131
      %v1136 = vmul.f32 %v1135, %v325
      %v1137 = vmul.f32 %v1134, %v326
      %1138 = vst [vmem:[#allocation2 + $0x10] sm:$0xff] %v1136
      %1139 = vst [vmem:[#allocation2 + $0x18] sm:$0xff] %v1137
      %1140 = vrot.lane.b32.xlu0 %v1102, 15
      %v1141 = vpop.permute.xlu0 %1140
      %1142 = vrot.lane.b32.xlu0 %v1115, 15
      %v1143 = vpop.permute.xlu0 %1142
      %v1144 = vsel %vm335, %v1141, %v1143
      %v1145 = vsel %vm335, %v1143, %v1141
      %v1146 = vmul.f32 %v1145, %v338
      %v1147 = vmul.f32 %v1144, %v339
      %1148 = vst [vmem:[#allocation2 + $0x20] sm:$0xff] %v1146
      %1149 = vst [vmem:[#allocation2 + $0x28] sm:$0xff] %v1147
      %1150 = vrot.lane.b32.xlu0 %v1102, 1
      %v1151 = vpop.permute.xlu0 %1150
      %1152 = vrot.lane.b32.xlu0 %v1115, 1
      %v1153 = vpop.permute.xlu0 %1152
      %v1154 = vsel %vm348, %v1151, %v1153
      %v1155 = vsel %vm348, %v1153, %v1151
      %v1156 = vmul.f32 %v1155, %v351
      %v1157 = vmul.f32 %v1154, %v352
      %1158 = vst [vmem:[#allocation2 + $0x30] sm:$0xff] %v1156
      %1159 = vst [vmem:[#allocation2 + $0x38] sm:$0xff] %v1157
      %v1160 = vmul.f32 %v1102, %v357
      %v1161 = vmul.f32 %v1115, %v358
      %1162 = vst [vmem:[#allocation2 + $0x40] sm:$0xff] %v1160
      %1163 = vst [vmem:[#allocation2 + $0x48] sm:$0xff] %v1161
      %1164 = vrot.lane.b32.xlu0 %v1102, 127
      %v1165 = vpop.permute.xlu0 %1164
      %1166 = vrot.lane.b32.xlu0 %v1115, 127
      %v1167 = vpop.permute.xlu0 %1166
      %v1168 = vsel %vm367, %v1165, %v1167
      %v1169 = vsel %vm367, %v1167, %v1165
      %v1170 = vmul.f32 %v1168, %v370
      %v1171 = vmul.f32 %v1169, %v371
      %1172 = vst [vmem:[#allocation2 + $0x50] sm:$0xff] %v1170
      %1173 = vst [vmem:[#allocation2 + $0x58] sm:$0xff] %v1171
      %1174 = vrot.lane.b32.xlu0 %v1102, 113
      %v1175 = vpop.permute.xlu0 %1174
      %1176 = vrot.lane.b32.xlu0 %v1115, 113
      %v1177 = vpop.permute.xlu0 %1176
      %v1178 = vsel %vm380, %v1175, %v1177
      %v1179 = vsel %vm380, %v1177, %v1175
      %v1180 = vmul.f32 %v1178, %v383
      %v1181 = vmul.f32 %v1179, %v384
      %1182 = vst [vmem:[#allocation2 + $0x60] sm:$0xff] %v1180
      %1183 = vst [vmem:[#allocation2 + $0x68] sm:$0xff] %v1181
      %1184 = vrot.lane.b32.xlu0 %v1102, 112
      %v1185 = vpop.permute.xlu0 %1184
      %1186 = vrot.lane.b32.xlu0 %v1115, 112
      %v1187 = vpop.permute.xlu0 %1186
      %v1188 = vsel %vm393, %v1185, %v1187
      %v1189 = vsel %vm393, %v1187, %v1185
      %v1190 = vmul.f32 %v1188, %v396
      %v1191 = vmul.f32 %v1189, %v397
      %1192 = vst [vmem:[#allocation2 + $0x70] sm:$0xff] %v1190
      %1193 = vst [vmem:[#allocation2 + $0x78] sm:$0xff] %v1191
      %1194 = vrot.lane.b32.xlu0 %v1102, 111
      %v1195 = vpop.permute.xlu0 %1194
      %1196 = vrot.lane.b32.xlu0 %v1115, 111
      %v1197 = vpop.permute.xlu0 %1196
      %v1198 = vsel %vm406, %v1195, %v1197
      %v1199 = vsel %vm406, %v1197, %v1195
      %v1200 = vmul.f32 %v1198, %v409
      %v1201 = vmul.f32 %v1199, %v410
      %1202 = vst [vmem:[#allocation2 + $0x80] sm:$0xff] %v1200
      %1203 = vst [vmem:[#allocation2 + $0x88] sm:$0xff] %v1201
      %v1204 = vld [vmem:[#allocation2] sm:$0xff]
      %v1205 = vld [vmem:[#allocation2 + $0x8] sm:$0xff]
      %v1206 = vld [vmem:[#allocation2 + $0x10] sm:$0xff]
      %v1207 = vld [vmem:[#allocation2 + $0x18] sm:$0xff]
      %v1208 = vld [vmem:[#allocation2 + $0x20] sm:$0xff]
      %v1209 = vld [vmem:[#allocation2 + $0x28] sm:$0xff]
      %v1210 = vld [vmem:[#allocation2 + $0x30] sm:$0xff]
      %v1211 = vld [vmem:[#allocation2 + $0x38] sm:$0xff]
      %v1212 = vld [vmem:[#allocation2 + $0x40] sm:$0xff]
      %v1213 = vld [vmem:[#allocation2 + $0x48] sm:$0xff]
      %v1214 = vld [vmem:[#allocation2 + $0x50] sm:$0xff]
      %v1215 = vld [vmem:[#allocation2 + $0x58] sm:$0xff]
      %v1216 = vld [vmem:[#allocation2 + $0x60] sm:$0xff]
      %v1217 = vld [vmem:[#allocation2 + $0x68] sm:$0xff]
      %v1218 = vld [vmem:[#allocation2 + $0x70] sm:$0xff]
      %v1219 = vld [vmem:[#allocation2 + $0x78] sm:$0xff]
      %v1220 = vld [vmem:[#allocation2 + $0x80] sm:$0xff]
      %v1221 = vld [vmem:[#allocation2 + $0x88] sm:$0xff]
      %v1222 = vpack.c.bf16 %v1206, %v1204
      %v1223 = vpack.c.bf16 %v1207, %v1205
      %v1224 = vpack.c.bf16 %v1210, %v1208
      %v1225 = vpack.c.bf16 %v1211, %v1209
      %v1226 = vpack.c.bf16 %v1214, %v1212
      %v1227 = vpack.c.bf16 %v1215, %v1213
      %v1228 = vpack.c.bf16 %v1218, %v1216
      %v1229 = vpack.c.bf16 %v1219, %v1217
      %v1230 = vpack.c.bf16 %v1220, %v1220
      %v1231 = vpack.c.bf16 %v1221, %v1221
      %s1232 = scalar_lea.vmem %s6, 48
      %v1233 = vld [vmem:[%s1232] sm:$0xff]
      %1235 = vset.pattern.permute.xlu0 0
      %1236 = vperm.xlu0 %1235, %v1233
      %v1237 = vpop.permute.xlu0 %1236
      %v1240 = vsel %vm449, %v1119, 0
      %v1243 = vsel %vm453, %v1230, 0
      %v1246 = vsel %vm453, %v1231, 0
      %1248 = vmatpush.bf16.msra.mxu0 0
      %1249 = vmatpush.bf16.msra.mxu0 0
      %1250 = vmatpush.bf16.msra.mxu0 0
      %1251 = vmatpush.bf16.msra.mxu0 %v1243
      %1252 = vmatpush.bf16.msra.mxu0 %v1228
      %1253 = vmatpush.bf16.msra.mxu0 %v1226
      %1254 = vmatpush.bf16.msra.mxu0 %v1224
      %1255 = vmatpush.bf16.msra.mxu0 %v1222
      %1256 = vmatmul.bf16.gmra.mxu0 %v1240
      %v1257 = vpop.f32.mrf.mxu0
      %v1258 = vadd.f32 %v1237, %v1257
      %v1259 = vpop.f32.mrf.mxu0
      %1260 = vdwg.mxu0
      %1261 = vmatpush.bf16.msra.mxu0 0
      %1262 = vmatpush.bf16.msra.mxu0 0
      %1263 = vmatpush.bf16.msra.mxu0 0
      %1264 = vmatpush.bf16.msra.mxu0 %v1246
      %1265 = vmatpush.bf16.msra.mxu0 %v1229
      %1266 = vmatpush.bf16.msra.mxu0 %v1227
      %1267 = vmatpush.bf16.msra.mxu0 %v1225
      %1268 = vmatpush.bf16.msra.mxu0 %v1223
      %1269 = vmatmul.bf16.gmra.mxu0 %v1240
      %v1270 = vpop.f32.mrf.mxu0
      %v1271 = vadd.f32 %v1237, %v1270
      %v1272 = vpop.f32.mrf.mxu0
      %1273 = vdwg.mxu0
      %vm1274 = vcmp.ge.f32.partialorder %v1258, 0.0
      %vm1275 = vcmp.ge.f32.partialorder %v1271, 0.0
      %s1276 = scalar_lea.vmem %s6, 56
      %v1277 = vld [vmem:[%s1276] sm:$0xff]
      %1279 = vset.pattern.permute.xlu0 0
      %1280 = vperm.xlu0 %1279, %v1277
      %v1281 = vpop.permute.xlu0 %1280
      %v1283 = vmul.f32 %v1281, %v1258
      %v1284 = vmul.f32 %v1281, %v1271
      %v1285 = vsel %vm1274, %v1258, %v1283
      %v1286 = vsel %vm1275, %v1271, %v1284
      %s1287 = scalar_lea.vmem %s2, 20
      %v1288 = vld [vmem:[%s1287] sm:$0xf]
      %1289 = vrot.lane.b32.xlu0 %v1285, 17
      %v1290 = vpop.permute.xlu0 %1289
      %1291 = vrot.lane.b32.xlu0 %v1286, 17
      %v1292 = vpop.permute.xlu0 %1291
      %v1293 = vsel %vm309, %v1290, %v1292
      %v1294 = vsel %vm309, %v1292, %v1290
      %v1295 = vmul.f32 %v1294, %v312
      %v1296 = vmul.f32 %v1293, %v313
      %1297 = vst [vmem:[#allocation2] sm:$0xff] %v1295
      %1298 = vst [vmem:[#allocation2 + $0x8] sm:$0xff] %v1296
      %1299 = vrot.lane.b32.xlu0 %v1285, 16
      %v1300 = vpop.permute.xlu0 %1299
      %1301 = vrot.lane.b32.xlu0 %v1286, 16
      %v1302 = vpop.permute.xlu0 %1301
      %v1303 = vsel %vm322, %v1300, %v1302
      %v1304 = vsel %vm322, %v1302, %v1300
      %v1305 = vmul.f32 %v1304, %v325
      %v1306 = vmul.f32 %v1303, %v326
      %1307 = vst [vmem:[#allocation2 + $0x10] sm:$0xff] %v1305
      %1308 = vst [vmem:[#allocation2 + $0x18] sm:$0xff] %v1306
      %1309 = vrot.lane.b32.xlu0 %v1285, 15
      %v1310 = vpop.permute.xlu0 %1309
      %1311 = vrot.lane.b32.xlu0 %v1286, 15
      %v1312 = vpop.permute.xlu0 %1311
      %v1313 = vsel %vm335, %v1310, %v1312
      %v1314 = vsel %vm335, %v1312, %v1310
      %v1315 = vmul.f32 %v1314, %v338
      %v1316 = vmul.f32 %v1313, %v339
      %1317 = vst [vmem:[#allocation2 + $0x20] sm:$0xff] %v1315
      %1318 = vst [vmem:[#allocation2 + $0x28] sm:$0xff] %v1316
      %1319 = vrot.lane.b32.xlu0 %v1285, 1
      %v1320 = vpop.permute.xlu0 %1319
      %1321 = vrot.lane.b32.xlu0 %v1286, 1
      %v1322 = vpop.permute.xlu0 %1321
      %v1323 = vsel %vm348, %v1320, %v1322
      %v1324 = vsel %vm348, %v1322, %v1320
      %v1325 = vmul.f32 %v1324, %v351
      %v1326 = vmul.f32 %v1323, %v352
      %1327 = vst [vmem:[#allocation2 + $0x30] sm:$0xff] %v1325
      %1328 = vst [vmem:[#allocation2 + $0x38] sm:$0xff] %v1326
      %v1329 = vmul.f32 %v1285, %v357
      %v1330 = vmul.f32 %v1286, %v358
      %1331 = vst [vmem:[#allocation2 + $0x40] sm:$0xff] %v1329
      %1332 = vst [vmem:[#allocation2 + $0x48] sm:$0xff] %v1330
      %1333 = vrot.lane.b32.xlu0 %v1285, 127
      %v1334 = vpop.permute.xlu0 %1333
      %1335 = vrot.lane.b32.xlu0 %v1286, 127
      %v1336 = vpop.permute.xlu0 %1335
      %v1337 = vsel %vm367, %v1334, %v1336
      %v1338 = vsel %vm367, %v1336, %v1334
      %v1339 = vmul.f32 %v1337, %v370
      %v1340 = vmul.f32 %v1338, %v371
      %1341 = vst [vmem:[#allocation2 + $0x50] sm:$0xff] %v1339
      %1342 = vst [vmem:[#allocation2 + $0x58] sm:$0xff] %v1340
      %1343 = vrot.lane.b32.xlu0 %v1285, 113
      %v1344 = vpop.permute.xlu0 %1343
      %1345 = vrot.lane.b32.xlu0 %v1286, 113
      %v1346 = vpop.permute.xlu0 %1345
      %v1347 = vsel %vm380, %v1344, %v1346
      %v1348 = vsel %vm380, %v1346, %v1344
      %v1349 = vmul.f32 %v1347, %v383
      %v1350 = vmul.f32 %v1348, %v384
      %1351 = vst [vmem:[#allocation2 + $0x60] sm:$0xff] %v1349
      %1352 = vst [vmem:[#allocation2 + $0x68] sm:$0xff] %v1350
      %1353 = vrot.lane.b32.xlu0 %v1285, 112
      %v1354 = vpop.permute.xlu0 %1353
      %1355 = vrot.lane.b32.xlu0 %v1286, 112
      %v1356 = vpop.permute.xlu0 %1355
      %v1357 = vsel %vm393, %v1354, %v1356
      %v1358 = vsel %vm393, %v1356, %v1354
      %v1359 = vmul.f32 %v1357, %v396
      %v1360 = vmul.f32 %v1358, %v397
      %1361 = vst [vmem:[#allocation2 + $0x70] sm:$0xff] %v1359
      %1362 = vst [vmem:[#allocation2 + $0x78] sm:$0xff] %v1360
      %1363 = vrot.lane.b32.xlu0 %v1285, 111
      %v1364 = vpop.permute.xlu0 %1363
      %1365 = vrot.lane.b32.xlu0 %v1286, 111
      %v1366 = vpop.permute.xlu0 %1365
      %v1367 = vsel %vm406, %v1364, %v1366
      %v1368 = vsel %vm406, %v1366, %v1364
      %v1369 = vmul.f32 %v1367, %v409
      %v1370 = vmul.f32 %v1368, %v410
      %1371 = vst [vmem:[#allocation2 + $0x80] sm:$0xff] %v1369
      %1372 = vst [vmem:[#allocation2 + $0x88] sm:$0xff] %v1370
      %v1373 = vld [vmem:[#allocation2] sm:$0xff]
      %v1374 = vld [vmem:[#allocation2 + $0x8] sm:$0xff]
      %v1375 = vld [vmem:[#allocation2 + $0x10] sm:$0xff]
      %v1376 = vld [vmem:[#allocation2 + $0x18] sm:$0xff]
      %v1377 = vld [vmem:[#allocation2 + $0x20] sm:$0xff]
      %v1378 = vld [vmem:[#allocation2 + $0x28] sm:$0xff]
      %v1379 = vld [vmem:[#allocation2 + $0x30] sm:$0xff]
      %v1380 = vld [vmem:[#allocation2 + $0x38] sm:$0xff]
      %v1381 = vld [vmem:[#allocation2 + $0x40] sm:$0xff]
      %v1382 = vld [vmem:[#allocation2 + $0x48] sm:$0xff]
      %v1383 = vld [vmem:[#allocation2 + $0x50] sm:$0xff]
      %v1384 = vld [vmem:[#allocation2 + $0x58] sm:$0xff]
      %v1385 = vld [vmem:[#allocation2 + $0x60] sm:$0xff]
      %v1386 = vld [vmem:[#allocation2 + $0x68] sm:$0xff]
      %v1387 = vld [vmem:[#allocation2 + $0x70] sm:$0xff]
      %v1388 = vld [vmem:[#allocation2 + $0x78] sm:$0xff]
      %v1389 = vld [vmem:[#allocation2 + $0x80] sm:$0xff]
      %v1390 = vld [vmem:[#allocation2 + $0x88] sm:$0xff]
      %v1391 = vpack.c.bf16 %v1375, %v1373
      %v1392 = vpack.c.bf16 %v1376, %v1374
      %v1393 = vpack.c.bf16 %v1379, %v1377
      %v1394 = vpack.c.bf16 %v1380, %v1378
      %v1395 = vpack.c.bf16 %v1383, %v1381
      %v1396 = vpack.c.bf16 %v1384, %v1382
      %v1397 = vpack.c.bf16 %v1387, %v1385
      %v1398 = vpack.c.bf16 %v1388, %v1386
      %v1399 = vpack.c.bf16 %v1389, %v1389
      %v1400 = vpack.c.bf16 %v1390, %v1390
      %s1401 = scalar_lea.vmem %s6, 64
      %v1402 = vld [vmem:[%s1401] sm:$0xff]
      %1404 = vset.pattern.permute.xlu0 0
      %1405 = vperm.xlu0 %1404, %v1402
      %v1406 = vpop.permute.xlu0 %1405
      %v1409 = vsel %vm449, %v1288, 0
      %v1412 = vsel %vm453, %v1399, 0
      %v1415 = vsel %vm453, %v1400, 0
      %1417 = vmatpush.bf16.msra.mxu0 0
      %1418 = vmatpush.bf16.msra.mxu0 0
      %1419 = vmatpush.bf16.msra.mxu0 0
      %1420 = vmatpush.bf16.msra.mxu0 %v1412
      %1421 = vmatpush.bf16.msra.mxu0 %v1397
      %1422 = vmatpush.bf16.msra.mxu0 %v1395
      %1423 = vmatpush.bf16.msra.mxu0 %v1393
      %1424 = vmatpush.bf16.msra.mxu0 %v1391
      %1425 = vmatmul.bf16.gmra.mxu0 %v1409
      %v1426 = vpop.f32.mrf.mxu0
      %v1427 = vadd.f32 %v1406, %v1426
      %v1428 = vpop.f32.mrf.mxu0
      %1429 = vdwg.mxu0
      %1430 = vmatpush.bf16.msra.mxu0 0
      %1431 = vmatpush.bf16.msra.mxu0 0
      %1432 = vmatpush.bf16.msra.mxu0 0
      %1433 = vmatpush.bf16.msra.mxu0 %v1415
      %1434 = vmatpush.bf16.msra.mxu0 %v1398
      %1435 = vmatpush.bf16.msra.mxu0 %v1396
      %1436 = vmatpush.bf16.msra.mxu0 %v1394
      %1437 = vmatpush.bf16.msra.mxu0 %v1392
      %1438 = vmatmul.bf16.gmra.mxu0 %v1409
      %v1439 = vpop.f32.mrf.mxu0
      %v1440 = vadd.f32 %v1406, %v1439
      %v1441 = vpop.f32.mrf.mxu0
      %1442 = vdwg.mxu0
      %s1443 = scalar_lea.vmem %s2, 24
      %v1444 = vld [vmem:[%s1443] sm:$0xf]
      %1445 = vrot.lane.b32.xlu0 %v1427, 51
      %v1446 = vpop.permute.xlu0 %1445
      %1447 = vrot.lane.b32.xlu0 %v1440, 51
      %v1448 = vpop.permute.xlu0 %1447
      %vm1449 = vcmp.lt.s32.totalorder %v308, 51
      %v1450 = vsel %vm1449, %v1446, %v1448
      %v1451 = vsel %vm1449, %v1448, %v1446
      %v1452 = vperm.slane %v288, 0
      %v1453 = vperm.slane %v289, 0
      %v1454 = vmul.f32 %v1451, %v1452
      %v1455 = vmul.f32 %v1450, %v1453
      %1456 = vst [vmem:[#allocation2] sm:$0xff] %v1454
      %1457 = vst [vmem:[#allocation2 + $0x8] sm:$0xff] %v1455
      %1458 = vrot.lane.b32.xlu0 %v1427, 48
      %v1459 = vpop.permute.xlu0 %1458
      %1460 = vrot.lane.b32.xlu0 %v1440, 48
      %v1461 = vpop.permute.xlu0 %1460
      %vm1462 = vcmp.lt.s32.totalorder %v308, 48
      %v1463 = vsel %vm1462, %v1459, %v1461
      %v1464 = vsel %vm1462, %v1461, %v1459
      %v1465 = vperm.slane %v288, 1
      %v1466 = vperm.slane %v289, 1
      %v1467 = vmul.f32 %v1464, %v1465
      %v1468 = vmul.f32 %v1463, %v1466
      %1469 = vst [vmem:[#allocation2 + $0x10] sm:$0xff] %v1467
      %1470 = vst [vmem:[#allocation2 + $0x18] sm:$0xff] %v1468
      %1471 = vrot.lane.b32.xlu0 %v1427, 45
      %v1472 = vpop.permute.xlu0 %1471
      %1473 = vrot.lane.b32.xlu0 %v1440, 45
      %v1474 = vpop.permute.xlu0 %1473
      %vm1475 = vcmp.lt.s32.totalorder %v308, 45
      %v1476 = vsel %vm1475, %v1472, %v1474
      %v1477 = vsel %vm1475, %v1474, %v1472
      %v1478 = vperm.slane %v288, 2
      %v1479 = vperm.slane %v289, 2
      %v1480 = vmul.f32 %v1477, %v1478
      %v1481 = vmul.f32 %v1476, %v1479
      %1482 = vst [vmem:[#allocation2 + $0x20] sm:$0xff] %v1480
      %1483 = vst [vmem:[#allocation2 + $0x28] sm:$0xff] %v1481
      %1484 = vrot.lane.b32.xlu0 %v1427, 3
      %v1485 = vpop.permute.xlu0 %1484
      %1486 = vrot.lane.b32.xlu0 %v1440, 3
      %v1487 = vpop.permute.xlu0 %1486
      %vm1488 = vcmp.lt.s32.totalorder %v308, 3
      %v1489 = vsel %vm1488, %v1485, %v1487
      %v1490 = vsel %vm1488, %v1487, %v1485
      %v1491 = vperm.slane %v288, 3
      %v1492 = vperm.slane %v289, 3
      %v1493 = vmul.f32 %v1490, %v1491
      %v1494 = vmul.f32 %v1489, %v1492
      %1495 = vst [vmem:[#allocation2 + $0x30] sm:$0xff] %v1493
      %1496 = vst [vmem:[#allocation2 + $0x38] sm:$0xff] %v1494
      %v1497 = vperm.slane %v288, 4
      %v1498 = vperm.slane %v289, 4
      %v1499 = vmul.f32 %v1427, %v1497
      %v1500 = vmul.f32 %v1440, %v1498
      %1501 = vst [vmem:[#allocation2 + $0x40] sm:$0xff] %v1499
      %1502 = vst [vmem:[#allocation2 + $0x48] sm:$0xff] %v1500
      %1503 = vrot.lane.b32.xlu0 %v1427, 125
      %v1504 = vpop.permute.xlu0 %1503
      %1505 = vrot.lane.b32.xlu0 %v1440, 125
      %v1506 = vpop.permute.xlu0 %1505
      %vm1507 = vcmp.lt.s32.totalorder %v308, 125
      %v1508 = vsel %vm1507, %v1504, %v1506
      %v1509 = vsel %vm1507, %v1506, %v1504
      %v1510 = vperm.slane %v288, 5
      %v1511 = vperm.slane %v289, 5
      %v1512 = vmul.f32 %v1508, %v1510
      %v1513 = vmul.f32 %v1509, %v1511
      %1514 = vst [vmem:[#allocation2 + $0x50] sm:$0xff] %v1512
      %1515 = vst [vmem:[#allocation2 + $0x58] sm:$0xff] %v1513
      %1516 = vrot.lane.b32.xlu0 %v1427, 83
      %v1517 = vpop.permute.xlu0 %1516
      %1518 = vrot.lane.b32.xlu0 %v1440, 83
      %v1519 = vpop.permute.xlu0 %1518
      %vm1520 = vcmp.lt.s32.totalorder %v308, 83
      %v1521 = vsel %vm1520, %v1517, %v1519
      %v1522 = vsel %vm1520, %v1519, %v1517
      %v1523 = vperm.slane %v288, 6
      %v1524 = vperm.slane %v289, 6
      %v1525 = vmul.f32 %v1521, %v1523
      %v1526 = vmul.f32 %v1522, %v1524
      %1527 = vst [vmem:[#allocation2 + $0x60] sm:$0xff] %v1525
      %1528 = vst [vmem:[#allocation2 + $0x68] sm:$0xff] %v1526
      %1529 = vrot.lane.b32.xlu0 %v1427, 80
      %v1530 = vpop.permute.xlu0 %1529
      %1531 = vrot.lane.b32.xlu0 %v1440, 80
      %v1532 = vpop.permute.xlu0 %1531
      %vm1533 = vcmp.lt.s32.totalorder %v308, 80
      %v1534 = vsel %vm1533, %v1530, %v1532
      %v1535 = vsel %vm1533, %v1532, %v1530
      %v1536 = vperm.slane %v288, 7
      %v1537 = vperm.slane %v289, 7
      %v1538 = vmul.f32 %v1534, %v1536
      %v1539 = vmul.f32 %v1535, %v1537
      %1540 = vst [vmem:[#allocation2 + $0x70] sm:$0xff] %v1538
      %1541 = vst [vmem:[#allocation2 + $0x78] sm:$0xff] %v1539
      %1542 = vrot.lane.b32.xlu0 %v1427, 77
      %v1543 = vpop.permute.xlu0 %1542
      %1544 = vrot.lane.b32.xlu0 %v1440, 77
      %v1545 = vpop.permute.xlu0 %1544
      %vm1546 = vcmp.lt.s32.totalorder %v308, 77
      %v1547 = vsel %vm1546, %v1543, %v1545
      %v1548 = vsel %vm1546, %v1545, %v1543
      %v1549 = vperm.slane %v290, 0
      %v1550 = vperm.slane %v291, 0
      %v1551 = vmul.f32 %v1547, %v1549
      %v1552 = vmul.f32 %v1548, %v1550
      %1553 = vst [vmem:[#allocation2 + $0x80] sm:$0xff] %v1551
      %1554 = vst [vmem:[#allocation2 + $0x88] sm:$0xff] %v1552
      %v1555 = vld [vmem:[#allocation2] sm:$0xff]
      %v1556 = vld [vmem:[#allocation2 + $0x8] sm:$0xff]
      %v1557 = vld [vmem:[#allocation2 + $0x10] sm:$0xff]
      %v1558 = vld [vmem:[#allocation2 + $0x18] sm:$0xff]
      %v1559 = vld [vmem:[#allocation2 + $0x20] sm:$0xff]
      %v1560 = vld [vmem:[#allocation2 + $0x28] sm:$0xff]
      %v1561 = vld [vmem:[#allocation2 + $0x30] sm:$0xff]
      %v1562 = vld [vmem:[#allocation2 + $0x38] sm:$0xff]
      %v1563 = vld [vmem:[#allocation2 + $0x40] sm:$0xff]
      %v1564 = vld [vmem:[#allocation2 + $0x48] sm:$0xff]
      %v1565 = vld [vmem:[#allocation2 + $0x50] sm:$0xff]
      %v1566 = vld [vmem:[#allocation2 + $0x58] sm:$0xff]
      %v1567 = vld [vmem:[#allocation2 + $0x60] sm:$0xff]
      %v1568 = vld [vmem:[#allocation2 + $0x68] sm:$0xff]
      %v1569 = vld [vmem:[#allocation2 + $0x70] sm:$0xff]
      %v1570 = vld [vmem:[#allocation2 + $0x78] sm:$0xff]
      %v1571 = vld [vmem:[#allocation2 + $0x80] sm:$0xff]
      %v1572 = vld [vmem:[#allocation2 + $0x88] sm:$0xff]
      %v1573 = vpack.c.bf16 %v1557, %v1555
      %v1574 = vpack.c.bf16 %v1558, %v1556
      %v1575 = vpack.c.bf16 %v1561, %v1559
      %v1576 = vpack.c.bf16 %v1562, %v1560
      %v1577 = vpack.c.bf16 %v1565, %v1563
      %v1578 = vpack.c.bf16 %v1566, %v1564
      %v1579 = vpack.c.bf16 %v1569, %v1567
      %v1580 = vpack.c.bf16 %v1570, %v1568
      %v1581 = vpack.c.bf16 %v1571, %v1571
      %v1582 = vpack.c.bf16 %v1572, %v1572
      %v1584 = vsel %vm449, %v1444, 0
      %v1587 = vsel %vm453, %v1581, 0
      %v1590 = vsel %vm453, %v1582, 0
      %1592 = vmatpush.bf16.msra.mxu0 0
      %1593 = vmatpush.bf16.msra.mxu0 0
      %1594 = vmatpush.bf16.msra.mxu0 0
      %1595 = vmatpush.bf16.msra.mxu0 %v1587
      %1596 = vmatpush.bf16.msra.mxu0 %v1579
      %1597 = vmatpush.bf16.msra.mxu0 %v1577
      %1598 = vmatpush.bf16.msra.mxu0 %v1575
      %1599 = vmatpush.bf16.msra.mxu0 %v1573
      %1600 = vmatmul.bf16.gmra.mxu0 %v1584
      %v1601 = vpop.f32.mrf.mxu0
      %v1602 = vadd.f32 0.0, %v1601
      %v1603 = vpop.f32.mrf.mxu0
      %1604 = vdwg.mxu0
      %1605 = vmatpush.bf16.msra.mxu0 0
      %1606 = vmatpush.bf16.msra.mxu0 0
      %1607 = vmatpush.bf16.msra.mxu0 0
      %1608 = vmatpush.bf16.msra.mxu0 %v1590
      %1609 = vmatpush.bf16.msra.mxu0 %v1580
      %1610 = vmatpush.bf16.msra.mxu0 %v1578
      %1611 = vmatpush.bf16.msra.mxu0 %v1576
      %1612 = vmatpush.bf16.msra.mxu0 %v1574
      %1613 = vmatmul.bf16.gmra.mxu0 %v1584
      %v1614 = vpop.f32.mrf.mxu0
      %v1615 = vadd.f32 0.0, %v1614
      %v1616 = vpop.f32.mrf.mxu0
      %1617 = vdwg.mxu0
      %s1618 = scalar_lea.vmem %s2, 28
      %v1619 = vld [vmem:[%s1618] sm:$0xf]
      %1620 = vrot.lane.b32.xlu0 %v1427, 85
      %v1621 = vpop.permute.xlu0 %1620
      %1622 = vrot.lane.b32.xlu0 %v1440, 85
      %v1623 = vpop.permute.xlu0 %1622
      %vm1624 = vcmp.lt.s32.totalorder %v308, 85
      %v1625 = vsel %vm1624, %v1621, %v1623
      %v1626 = vsel %vm1624, %v1623, %v1621
      %v1627 = vperm.slane %v293, 0
      %v1628 = vperm.slane %v294, 0
      %v1629 = vmul.f32 %v1626, %v1627
      %v1630 = vmul.f32 %v1625, %v1628
      %1631 = vst [vmem:[#allocation2] sm:$0xff] %v1629
      %1632 = vst [vmem:[#allocation2 + $0x8] sm:$0xff] %v1630
      %v1633 = vperm.slane %v293, 1
      %v1634 = vperm.slane %v294, 1
      %v1635 = vmul.f32 %v1535, %v1633
      %v1636 = vmul.f32 %v1534, %v1634
      %1637 = vst [vmem:[#allocation2 + $0x10] sm:$0xff] %v1635
      %1638 = vst [vmem:[#allocation2 + $0x18] sm:$0xff] %v1636
      %1639 = vrot.lane.b32.xlu0 %v1427, 75
      %v1640 = vpop.permute.xlu0 %1639
      %1641 = vrot.lane.b32.xlu0 %v1440, 75
      %v1642 = vpop.permute.xlu0 %1641
      %vm1643 = vcmp.lt.s32.totalorder %v308, 75
      %v1644 = vsel %vm1643, %v1640, %v1642
      %v1645 = vsel %vm1643, %v1642, %v1640
      %v1646 = vperm.slane %v293, 2
      %v1647 = vperm.slane %v294, 2
      %v1648 = vmul.f32 %v1645, %v1646
      %v1649 = vmul.f32 %v1644, %v1647
      %1650 = vst [vmem:[#allocation2 + $0x20] sm:$0xff] %v1648
      %1651 = vst [vmem:[#allocation2 + $0x28] sm:$0xff] %v1649
      %1652 = vrot.lane.b32.xlu0 %v1427, 5
      %v1653 = vpop.permute.xlu0 %1652
      %1654 = vrot.lane.b32.xlu0 %v1440, 5
      %v1655 = vpop.permute.xlu0 %1654
      %vm1656 = vcmp.lt.s32.totalorder %v308, 5
      %v1657 = vsel %vm1656, %v1653, %v1655
      %v1658 = vsel %vm1656, %v1655, %v1653
      %v1659 = vperm.slane %v293, 3
      %v1660 = vperm.slane %v294, 3
      %v1661 = vmul.f32 %v1658, %v1659
      %v1662 = vmul.f32 %v1657, %v1660
      %1663 = vst [vmem:[#allocation2 + $0x30] sm:$0xff] %v1661
      %1664 = vst [vmem:[#allocation2 + $0x38] sm:$0xff] %v1662
      %v1665 = vperm.slane %v293, 4
      %v1666 = vperm.slane %v294, 4
      %v1667 = vmul.f32 %v1427, %v1665
      %v1668 = vmul.f32 %v1440, %v1666
      %1669 = vst [vmem:[#allocation2 + $0x40] sm:$0xff] %v1667
      %1670 = vst [vmem:[#allocation2 + $0x48] sm:$0xff] %v1668
      %1671 = vrot.lane.b32.xlu0 %v1427, 123
      %v1672 = vpop.permute.xlu0 %1671
      %1673 = vrot.lane.b32.xlu0 %v1440, 123
      %v1674 = vpop.permute.xlu0 %1673
      %vm1675 = vcmp.lt.s32.totalorder %v308, 123
      %v1676 = vsel %vm1675, %v1672, %v1674
      %v1677 = vsel %vm1675, %v1674, %v1672
      %v1678 = vperm.slane %v293, 5
      %v1679 = vperm.slane %v294, 5
      %v1680 = vmul.f32 %v1676, %v1678
      %v1681 = vmul.f32 %v1677, %v1679
      %1682 = vst [vmem:[#allocation2 + $0x50] sm:$0xff] %v1680
      %1683 = vst [vmem:[#allocation2 + $0x58] sm:$0xff] %v1681
      %1684 = vrot.lane.b32.xlu0 %v1427, 53
      %v1685 = vpop.permute.xlu0 %1684
      %1686 = vrot.lane.b32.xlu0 %v1440, 53
      %v1687 = vpop.permute.xlu0 %1686
      %vm1688 = vcmp.lt.s32.totalorder %v308, 53
      %v1689 = vsel %vm1688, %v1685, %v1687
      %v1690 = vsel %vm1688, %v1687, %v1685
      %v1691 = vperm.slane %v293, 6
      %v1692 = vperm.slane %v294, 6
      %v1693 = vmul.f32 %v1689, %v1691
      %v1694 = vmul.f32 %v1690, %v1692
      %1695 = vst [vmem:[#allocation2 + $0x60] sm:$0xff] %v1693
      %1696 = vst [vmem:[#allocation2 + $0x68] sm:$0xff] %v1694
      %v1697 = vperm.slane %v293, 7
      %v1698 = vperm.slane %v294, 7
      %v1699 = vmul.f32 %v1463, %v1697
      %v1700 = vmul.f32 %v1464, %v1698
      %1701 = vst [vmem:[#allocation2 + $0x70] sm:$0xff] %v1699
      %1702 = vst [vmem:[#allocation2 + $0x78] sm:$0xff] %v1700
      %1703 = vrot.lane.b32.xlu0 %v1427, 43
      %v1704 = vpop.permute.xlu0 %1703
      %1705 = vrot.lane.b32.xlu0 %v1440, 43
      %v1706 = vpop.permute.xlu0 %1705
      %vm1707 = vcmp.lt.s32.totalorder %v308, 43
      %v1708 = vsel %vm1707, %v1704, %v1706
      %v1709 = vsel %vm1707, %v1706, %v1704
      %v1710 = vperm.slane %v295, 0
      %v1711 = vperm.slane %v296, 0
      %v1712 = vmul.f32 %v1708, %v1710
      %v1713 = vmul.f32 %v1709, %v1711
      %1714 = vst [vmem:[#allocation2 + $0x80] sm:$0xff] %v1712
      %1715 = vst [vmem:[#allocation2 + $0x88] sm:$0xff] %v1713
      %v1716 = vld [vmem:[#allocation2] sm:$0xff]
      %v1717 = vld [vmem:[#allocation2 + $0x8] sm:$0xff]
      %v1718 = vld [vmem:[#allocation2 + $0x10] sm:$0xff]
      %v1719 = vld [vmem:[#allocation2 + $0x18] sm:$0xff]
      %v1720 = vld [vmem:[#allocation2 + $0x20] sm:$0xff]
      %v1721 = vld [vmem:[#allocation2 + $0x28] sm:$0xff]
      %v1722 = vld [vmem:[#allocation2 + $0x30] sm:$0xff]
      %v1723 = vld [vmem:[#allocation2 + $0x38] sm:$0xff]
      %v1724 = vld [vmem:[#allocation2 + $0x40] sm:$0xff]
      %v1725 = vld [vmem:[#allocation2 + $0x48] sm:$0xff]
      %v1726 = vld [vmem:[#allocation2 + $0x50] sm:$0xff]
      %v1727 = vld [vmem:[#allocation2 + $0x58] sm:$0xff]
      %v1728 = vld [vmem:[#allocation2 + $0x60] sm:$0xff]
      %v1729 = vld [vmem:[#allocation2 + $0x68] sm:$0xff]
      %v1730 = vld [vmem:[#allocation2 + $0x70] sm:$0xff]
      %v1731 = vld [vmem:[#allocation2 + $0x78] sm:$0xff]
      %v1732 = vld [vmem:[#allocation2 + $0x80] sm:$0xff]
      %v1733 = vld [vmem:[#allocation2 + $0x88] sm:$0xff]
      %v1734 = vpack.c.bf16 %v1718, %v1716
      %v1735 = vpack.c.bf16 %v1719, %v1717
      %v1736 = vpack.c.bf16 %v1722, %v1720
      %v1737 = vpack.c.bf16 %v1723, %v1721
      %v1738 = vpack.c.bf16 %v1726, %v1724
      %v1739 = vpack.c.bf16 %v1727, %v1725
      %v1740 = vpack.c.bf16 %v1730, %v1728
      %v1741 = vpack.c.bf16 %v1731, %v1729
      %v1742 = vpack.c.bf16 %v1732, %v1732
      %v1743 = vpack.c.bf16 %v1733, %v1733
      %v1745 = vsel %vm449, %v1619, 0
      %v1748 = vsel %vm453, %v1742, 0
      %v1751 = vsel %vm453, %v1743, 0
      %1753 = vmatpush.bf16.msra.mxu0 0
      %1754 = vmatpush.bf16.msra.mxu0 0
      %1755 = vmatpush.bf16.msra.mxu0 0
      %1756 = vmatpush.bf16.msra.mxu0 %v1748
      %1757 = vmatpush.bf16.msra.mxu0 %v1740
      %1758 = vmatpush.bf16.msra.mxu0 %v1738
      %1759 = vmatpush.bf16.msra.mxu0 %v1736
      %1760 = vmatpush.bf16.msra.mxu0 %v1734
      %1761 = vmatmul.bf16.gmra.mxu0 %v1745
      %v1762 = vpop.f32.mrf.mxu0
      %v1763 = vadd.f32 0.0, %v1762
      %v1764 = vpop.f32.mrf.mxu0
      %1765 = vdwg.mxu0
      %1766 = vmatpush.bf16.msra.mxu0 0
      %1767 = vmatpush.bf16.msra.mxu0 0
      %1768 = vmatpush.bf16.msra.mxu0 0
      %1769 = vmatpush.bf16.msra.mxu0 %v1751
      %1770 = vmatpush.bf16.msra.mxu0 %v1741
      %1771 = vmatpush.bf16.msra.mxu0 %v1739
      %1772 = vmatpush.bf16.msra.mxu0 %v1737
      %1773 = vmatpush.bf16.msra.mxu0 %v1735
      %1774 = vmatmul.bf16.gmra.mxu0 %v1745
      %v1775 = vpop.f32.mrf.mxu0
      %v1776 = vadd.f32 0.0, %v1775
      %v1777 = vpop.f32.mrf.mxu0
      %1778 = vdwg.mxu0
      %s1779 = scalar_lea.vmem %s2, 32
      %v1780 = vld [vmem:[%s1779] sm:$0xf]
      %1781 = vrot.lane.b32.xlu0 %v1427, 119
      %v1782 = vpop.permute.xlu0 %1781
      %1783 = vrot.lane.b32.xlu0 %v1440, 119
      %v1784 = vpop.permute.xlu0 %1783
      %vm1785 = vcmp.lt.s32.totalorder %v308, 119
      %v1786 = vsel %vm1785, %v1782, %v1784
      %v1787 = vsel %vm1785, %v1784, %v1782
      %v1788 = vperm.slane %v298, 0
      %v1789 = vperm.slane %v299, 0
      %v1790 = vmul.f32 %v1787, %v1788
      %v1791 = vmul.f32 %v1786, %v1789
      %1792 = vst [vmem:[#allocation2] sm:$0xff] %v1790
      %1793 = vst [vmem:[#allocation2 + $0x8] sm:$0xff] %v1791
      %1794 = vrot.lane.b32.xlu0 %v1427, 112
      %v1795 = vpop.permute.xlu0 %1794
      %1796 = vrot.lane.b32.xlu0 %v1440, 112
      %v1797 = vpop.permute.xlu0 %1796
      %v1798 = vsel %vm393, %v1795, %v1797
      %v1799 = vsel %vm393, %v1797, %v1795
      %v1800 = vperm.slane %v298, 1
      %v1801 = vperm.slane %v299, 1
      %v1802 = vmul.f32 %v1799, %v1800
      %v1803 = vmul.f32 %v1798, %v1801
      %1804 = vst [vmem:[#allocation2 + $0x10] sm:$0xff] %v1802
      %1805 = vst [vmem:[#allocation2 + $0x18] sm:$0xff] %v1803
      %1806 = vrot.lane.b32.xlu0 %v1427, 105
      %v1807 = vpop.permute.xlu0 %1806
      %1808 = vrot.lane.b32.xlu0 %v1440, 105
      %v1809 = vpop.permute.xlu0 %1808
      %vm1810 = vcmp.lt.s32.totalorder %v308, 105
      %v1811 = vsel %vm1810, %v1807, %v1809
      %v1812 = vsel %vm1810, %v1809, %v1807
      %v1813 = vperm.slane %v298, 2
      %v1814 = vperm.slane %v299, 2
      %v1815 = vmul.f32 %v1812, %v1813
      %v1816 = vmul.f32 %v1811, %v1814
      %1817 = vst [vmem:[#allocation2 + $0x20] sm:$0xff] %v1815
      %1818 = vst [vmem:[#allocation2 + $0x28] sm:$0xff] %v1816
      %1819 = vrot.lane.b32.xlu0 %v1427, 7
      %v1820 = vpop.permute.xlu0 %1819
      %1821 = vrot.lane.b32.xlu0 %v1440, 7
      %v1822 = vpop.permute.xlu0 %1821
      %vm1823 = vcmp.lt.s32.totalorder %v308, 7
      %v1824 = vsel %vm1823, %v1820, %v1822
      %v1825 = vsel %vm1823, %v1822, %v1820
      %v1826 = vperm.slane %v298, 3
      %v1827 = vperm.slane %v299, 3
      %v1828 = vmul.f32 %v1825, %v1826
      %v1829 = vmul.f32 %v1824, %v1827
      %1830 = vst [vmem:[#allocation2 + $0x30] sm:$0xff] %v1828
      %1831 = vst [vmem:[#allocation2 + $0x38] sm:$0xff] %v1829
      %v1832 = vperm.slane %v298, 4
      %v1833 = vperm.slane %v299, 4
      %v1834 = vmul.f32 %v1427, %v1832
      %v1835 = vmul.f32 %v1440, %v1833
      %1836 = vst [vmem:[#allocation2 + $0x40] sm:$0xff] %v1834
      %1837 = vst [vmem:[#allocation2 + $0x48] sm:$0xff] %v1835
      %1838 = vrot.lane.b32.xlu0 %v1427, 121
      %v1839 = vpop.permute.xlu0 %1838
      %1840 = vrot.lane.b32.xlu0 %v1440, 121
      %v1841 = vpop.permute.xlu0 %1840
      %vm1842 = vcmp.lt.s32.totalorder %v308, 121
      %v1843 = vsel %vm1842, %v1839, %v1841
      %v1844 = vsel %vm1842, %v1841, %v1839
      %v1845 = vperm.slane %v298, 5
      %v1846 = vperm.slane %v299, 5
      %v1847 = vmul.f32 %v1843, %v1845
      %v1848 = vmul.f32 %v1844, %v1846
      %1849 = vst [vmem:[#allocation2 + $0x50] sm:$0xff] %v1847
      %1850 = vst [vmem:[#allocation2 + $0x58] sm:$0xff] %v1848
      %1851 = vrot.lane.b32.xlu0 %v1427, 23
      %v1852 = vpop.permute.xlu0 %1851
      %1853 = vrot.lane.b32.xlu0 %v1440, 23
      %v1854 = vpop.permute.xlu0 %1853
      %vm1855 = vcmp.lt.s32.totalorder %v308, 23
      %v1856 = vsel %vm1855, %v1852, %v1854
      %v1857 = vsel %vm1855, %v1854, %v1852
      %v1858 = vperm.slane %v298, 6
      %v1859 = vperm.slane %v299, 6
      %v1860 = vmul.f32 %v1856, %v1858
      %v1861 = vmul.f32 %v1857, %v1859
      %1862 = vst [vmem:[#allocation2 + $0x60] sm:$0xff] %v1860
      %1863 = vst [vmem:[#allocation2 + $0x68] sm:$0xff] %v1861
      %1864 = vrot.lane.b32.xlu0 %v1427, 16
      %v1865 = vpop.permute.xlu0 %1864
      %1866 = vrot.lane.b32.xlu0 %v1440, 16
      %v1867 = vpop.permute.xlu0 %1866
      %v1868 = vsel %vm322, %v1865, %v1867
      %v1869 = vsel %vm322, %v1867, %v1865
      %v1870 = vperm.slane %v298, 7
      %v1871 = vperm.slane %v299, 7
      %v1872 = vmul.f32 %v1868, %v1870
      %v1873 = vmul.f32 %v1869, %v1871
      %1874 = vst [vmem:[#allocation2 + $0x70] sm:$0xff] %v1872
      %1875 = vst [vmem:[#allocation2 + $0x78] sm:$0xff] %v1873
      %1876 = vrot.lane.b32.xlu0 %v1427, 9
      %v1877 = vpop.permute.xlu0 %1876
      %1878 = vrot.lane.b32.xlu0 %v1440, 9
      %v1879 = vpop.permute.xlu0 %1878
      %vm1880 = vcmp.lt.s32.totalorder %v308, 9
      %v1881 = vsel %vm1880, %v1877, %v1879
      %v1882 = vsel %vm1880, %v1879, %v1877
      %v1883 = vperm.slane %v300, 0
      %v1884 = vperm.slane %v301, 0
      %v1885 = vmul.f32 %v1881, %v1883
      %v1886 = vmul.f32 %v1882, %v1884
      %1887 = vst [vmem:[#allocation2 + $0x80] sm:$0xff] %v1885
      %1888 = vst [vmem:[#allocation2 + $0x88] sm:$0xff] %v1886
      %v1889 = vld [vmem:[#allocation2] sm:$0xff]
      %v1890 = vld [vmem:[#allocation2 + $0x8] sm:$0xff]
      %v1891 = vld [vmem:[#allocation2 + $0x10] sm:$0xff]
      %v1892 = vld [vmem:[#allocation2 + $0x18] sm:$0xff]
      %v1893 = vld [vmem:[#allocation2 + $0x20] sm:$0xff]
      %v1894 = vld [vmem:[#allocation2 + $0x28] sm:$0xff]
      %v1895 = vld [vmem:[#allocation2 + $0x30] sm:$0xff]
      %v1896 = vld [vmem:[#allocation2 + $0x38] sm:$0xff]
      %v1897 = vld [vmem:[#allocation2 + $0x40] sm:$0xff]
      %v1898 = vld [vmem:[#allocation2 + $0x48] sm:$0xff]
      %v1899 = vld [vmem:[#allocation2 + $0x50] sm:$0xff]
      %v1900 = vld [vmem:[#allocation2 + $0x58] sm:$0xff]
      %v1901 = vld [vmem:[#allocation2 + $0x60] sm:$0xff]
      %v1902 = vld [vmem:[#allocation2 + $0x68] sm:$0xff]
      %v1903 = vld [vmem:[#allocation2 + $0x70] sm:$0xff]
      %v1904 = vld [vmem:[#allocation2 + $0x78] sm:$0xff]
      %v1905 = vld [vmem:[#allocation2 + $0x80] sm:$0xff]
      %v1906 = vld [vmem:[#allocation2 + $0x88] sm:$0xff]
      %v1907 = vpack.c.bf16 %v1891, %v1889
      %v1908 = vpack.c.bf16 %v1892, %v1890
      %v1909 = vpack.c.bf16 %v1895, %v1893
      %v1910 = vpack.c.bf16 %v1896, %v1894
      %v1911 = vpack.c.bf16 %v1899, %v1897
      %v1912 = vpack.c.bf16 %v1900, %v1898
      %v1913 = vpack.c.bf16 %v1903, %v1901
      %v1914 = vpack.c.bf16 %v1904, %v1902
      %v1915 = vpack.c.bf16 %v1905, %v1905
      %v1916 = vpack.c.bf16 %v1906, %v1906
      %v1918 = vsel %vm449, %v1780, 0
      %v1921 = vsel %vm453, %v1915, 0
      %v1924 = vsel %vm453, %v1916, 0
      %1926 = vmatpush.bf16.msra.mxu0 0
      %1927 = vmatpush.bf16.msra.mxu0 0
      %1928 = vmatpush.bf16.msra.mxu0 0
      %1929 = vmatpush.bf16.msra.mxu0 %v1921
      %1930 = vmatpush.bf16.msra.mxu0 %v1913
      %1931 = vmatpush.bf16.msra.mxu0 %v1911
      %1932 = vmatpush.bf16.msra.mxu0 %v1909
      %1933 = vmatpush.bf16.msra.mxu0 %v1907
      %1934 = vmatmul.bf16.gmra.mxu0 %v1918
      %v1935 = vpop.f32.mrf.mxu0
      %v1936 = vadd.f32 0.0, %v1935
      %v1937 = vpop.f32.mrf.mxu0
      %1938 = vdwg.mxu0
      %1939 = vmatpush.bf16.msra.mxu0 0
      %1940 = vmatpush.bf16.msra.mxu0 0
      %1941 = vmatpush.bf16.msra.mxu0 0
      %1942 = vmatpush.bf16.msra.mxu0 %v1924
      %1943 = vmatpush.bf16.msra.mxu0 %v1914
      %1944 = vmatpush.bf16.msra.mxu0 %v1912
      %1945 = vmatpush.bf16.msra.mxu0 %v1910
      %1946 = vmatpush.bf16.msra.mxu0 %v1908
      %1947 = vmatmul.bf16.gmra.mxu0 %v1918
      %v1948 = vpop.f32.mrf.mxu0
      %v1949 = vadd.f32 0.0, %v1948
      %v1950 = vpop.f32.mrf.mxu0
      %1951 = vdwg.mxu0
      %v1952 = vld [vmem:[%s5] sm:$0x7]
      %1953 = vrot.lane.b32.xlu0 %v1427, 17
      %v1954 = vpop.permute.xlu0 %1953
      %1955 = vrot.lane.b32.xlu0 %v1440, 17
      %v1956 = vpop.permute.xlu0 %1955
      %v1957 = vsel %vm309, %v1954, %v1956
      %v1958 = vsel %vm309, %v1956, %v1954
      %v1959 = vmul.f32 %v1958, %v312
      %v1960 = vmul.f32 %v1957, %v313
      %1961 = vst [vmem:[#allocation2] sm:$0xff] %v1959
      %1962 = vst [vmem:[#allocation2 + $0x8] sm:$0xff] %v1960
      %1963 = vrot.lane.b32.xlu0 %v1602, 17
      %v1964 = vpop.permute.xlu0 %1963
      %1965 = vrot.lane.b32.xlu0 %v1615, 17
      %v1966 = vpop.permute.xlu0 %1965
      %v1967 = vsel %vm309, %v1964, %v1966
      %v1968 = vsel %vm309, %v1966, %v1964
      %v1969 = vmul.f32 %v1968, %v312
      %v1970 = vmul.f32 %v1967, %v313
      %1971 = vst [vmem:[#allocation2 + $0x10] sm:$0xff] %v1969
      %1972 = vst [vmem:[#allocation2 + $0x18] sm:$0xff] %v1970
      %1973 = vrot.lane.b32.xlu0 %v1763, 17
      %v1974 = vpop.permute.xlu0 %1973
      %1975 = vrot.lane.b32.xlu0 %v1776, 17
      %v1976 = vpop.permute.xlu0 %1975
      %v1977 = vsel %vm309, %v1974, %v1976
      %v1978 = vsel %vm309, %v1976, %v1974
      %v1979 = vmul.f32 %v1978, %v312
      %v1980 = vmul.f32 %v1977, %v313
      %1981 = vst [vmem:[#allocation2 + $0x20] sm:$0xff] %v1979
      %1982 = vst [vmem:[#allocation2 + $0x28] sm:$0xff] %v1980
      %1983 = vrot.lane.b32.xlu0 %v1936, 17
      %v1984 = vpop.permute.xlu0 %1983
      %1985 = vrot.lane.b32.xlu0 %v1949, 17
      %v1986 = vpop.permute.xlu0 %1985
      %v1987 = vsel %vm309, %v1984, %v1986
      %v1988 = vsel %vm309, %v1986, %v1984
      %v1989 = vmul.f32 %v1988, %v312
      %v1990 = vmul.f32 %v1987, %v313
      %1991 = vst [vmem:[#allocation2 + $0x30] sm:$0xff] %v1989
      %1992 = vst [vmem:[#allocation2 + $0x38] sm:$0xff] %v1990
      %v1993 = vmul.f32 %v1869, %v325
      %v1994 = vmul.f32 %v1868, %v326
      %1995 = vst [vmem:[#allocation2 + $0x40] sm:$0xff] %v1993
      %1996 = vst [vmem:[#allocation2 + $0x48] sm:$0xff] %v1994
      %1997 = vrot.lane.b32.xlu0 %v1602, 16
      %v1998 = vpop.permute.xlu0 %1997
      %1999 = vrot.lane.b32.xlu0 %v1615, 16
      %v2000 = vpop.permute.xlu0 %1999
      %v2001 = vsel %vm322, %v1998, %v2000
      %v2002 = vsel %vm322, %v2000, %v1998
      %v2003 = vmul.f32 %v2002, %v325
      %v2004 = vmul.f32 %v2001, %v326
      %2005 = vst [vmem:[#allocation2 + $0x50] sm:$0xff] %v2003
      %2006 = vst [vmem:[#allocation2 + $0x58] sm:$0xff] %v2004
      %2007 = vrot.lane.b32.xlu0 %v1763, 16
      %v2008 = vpop.permute.xlu0 %2007
      %2009 = vrot.lane.b32.xlu0 %v1776, 16
      %v2010 = vpop.permute.xlu0 %2009
      %v2011 = vsel %vm322, %v2008, %v2010
      %v2012 = vsel %vm322, %v2010, %v2008
      %v2013 = vmul.f32 %v2012, %v325
      %v2014 = vmul.f32 %v2011, %v326
      %2015 = vst [vmem:[#allocation2 + $0x60] sm:$0xff] %v2013
      %2016 = vst [vmem:[#allocation2 + $0x68] sm:$0xff] %v2014
      %2017 = vrot.lane.b32.xlu0 %v1936, 16
      %v2018 = vpop.permute.xlu0 %2017
      %2019 = vrot.lane.b32.xlu0 %v1949, 16
      %v2020 = vpop.permute.xlu0 %2019
      %v2021 = vsel %vm322, %v2018, %v2020
      %v2022 = vsel %vm322, %v2020, %v2018
      %v2023 = vmul.f32 %v2022, %v325
      %v2024 = vmul.f32 %v2021, %v326
      %2025 = vst [vmem:[#allocation2 + $0x70] sm:$0xff] %v2023
      %2026 = vst [vmem:[#allocation2 + $0x78] sm:$0xff] %v2024
      %2027 = vrot.lane.b32.xlu0 %v1427, 15
      %v2028 = vpop.permute.xlu0 %2027
      %2029 = vrot.lane.b32.xlu0 %v1440, 15
      %v2030 = vpop.permute.xlu0 %2029
      %v2031 = vsel %vm335, %v2028, %v2030
      %v2032 = vsel %vm335, %v2030, %v2028
      %v2033 = vmul.f32 %v2032, %v338
      %v2034 = vmul.f32 %v2031, %v339
      %2035 = vst [vmem:[#allocation2 + $0x80] sm:$0xff] %v2033
      %2036 = vst [vmem:[#allocation2 + $0x88] sm:$0xff] %v2034
      %2037 = vrot.lane.b32.xlu0 %v1602, 15
      %v2038 = vpop.permute.xlu0 %2037
      %2039 = vrot.lane.b32.xlu0 %v1615, 15
      %v2040 = vpop.permute.xlu0 %2039
      %v2041 = vsel %vm335, %v2038, %v2040
      %v2042 = vsel %vm335, %v2040, %v2038
      %v2043 = vmul.f32 %v2042, %v338
      %v2044 = vmul.f32 %v2041, %v339
      %2045 = vst [vmem:[#allocation2 + $0x90] sm:$0xff] %v2043
      %2046 = vst [vmem:[#allocation2 + $0x98] sm:$0xff] %v2044
      %2047 = vrot.lane.b32.xlu0 %v1763, 15
      %v2048 = vpop.permute.xlu0 %2047
      %2049 = vrot.lane.b32.xlu0 %v1776, 15
      %v2050 = vpop.permute.xlu0 %2049
      %v2051 = vsel %vm335, %v2048, %v2050
      %v2052 = vsel %vm335, %v2050, %v2048
      %v2053 = vmul.f32 %v2052, %v338
      %v2054 = vmul.f32 %v2051, %v339
      %2055 = vst [vmem:[#allocation2 + $0xa0] sm:$0xff] %v2053
      %2056 = vst [vmem:[#allocation2 + $0xa8] sm:$0xff] %v2054
      %2057 = vrot.lane.b32.xlu0 %v1936, 15
      %v2058 = vpop.permute.xlu0 %2057
      %2059 = vrot.lane.b32.xlu0 %v1949, 15
      %v2060 = vpop.permute.xlu0 %2059
      %v2061 = vsel %vm335, %v2058, %v2060
      %v2062 = vsel %vm335, %v2060, %v2058
      %v2063 = vmul.f32 %v2062, %v338
      %v2064 = vmul.f32 %v2061, %v339
      %2065 = vst [vmem:[#allocation2 + $0xb0] sm:$0xff] %v2063
      %2066 = vst [vmem:[#allocation2 + $0xb8] sm:$0xff] %v2064
      %2067 = vrot.lane.b32.xlu0 %v1427, 1
      %v2068 = vpop.permute.xlu0 %2067
      %2069 = vrot.lane.b32.xlu0 %v1440, 1
      %v2070 = vpop.permute.xlu0 %2069
      %v2071 = vsel %vm348, %v2068, %v2070
      %v2072 = vsel %vm348, %v2070, %v2068
      %v2073 = vmul.f32 %v2072, %v351
      %v2074 = vmul.f32 %v2071, %v352
      %2075 = vst [vmem:[#allocation2 + $0xc0] sm:$0xff] %v2073
      %2076 = vst [vmem:[#allocation2 + $0xc8] sm:$0xff] %v2074
      %2077 = vrot.lane.b32.xlu0 %v1602, 1
      %v2078 = vpop.permute.xlu0 %2077
      %2079 = vrot.lane.b32.xlu0 %v1615, 1
      %v2080 = vpop.permute.xlu0 %2079
      %v2081 = vsel %vm348, %v2078, %v2080
      %v2082 = vsel %vm348, %v2080, %v2078
      %v2083 = vmul.f32 %v2082, %v351
      %v2084 = vmul.f32 %v2081, %v352
      %2085 = vst [vmem:[#allocation2 + $0xd0] sm:$0xff] %v2083
      %2086 = vst [vmem:[#allocation2 + $0xd8] sm:$0xff] %v2084
      %2087 = vrot.lane.b32.xlu0 %v1763, 1
      %v2088 = vpop.permute.xlu0 %2087
      %2089 = vrot.lane.b32.xlu0 %v1776, 1
      %v2090 = vpop.permute.xlu0 %2089
      %v2091 = vsel %vm348, %v2088, %v2090
      %v2092 = vsel %vm348, %v2090, %v2088
      %v2093 = vmul.f32 %v2092, %v351
      %v2094 = vmul.f32 %v2091, %v352
      %2095 = vst [vmem:[#allocation2 + $0xe0] sm:$0xff] %v2093
      %2096 = vst [vmem:[#allocation2 + $0xe8] sm:$0xff] %v2094
      %2097 = vrot.lane.b32.xlu0 %v1936, 1
      %v2098 = vpop.permute.xlu0 %2097
      %2099 = vrot.lane.b32.xlu0 %v1949, 1
      %v2100 = vpop.permute.xlu0 %2099
      %v2101 = vsel %vm348, %v2098, %v2100
      %v2102 = vsel %vm348, %v2100, %v2098
      %v2103 = vmul.f32 %v2102, %v351
      %v2104 = vmul.f32 %v2101, %v352
      %2105 = vst [vmem:[#allocation2 + $0xf0] sm:$0xff] %v2103
      %2106 = vst [vmem:[#allocation2 + $0xf8] sm:$0xff] %v2104
      %v2107 = vmul.f32 %v1427, %v357
      %v2108 = vmul.f32 %v1440, %v358
      %2109 = vst [vmem:[#allocation2 + $0x100] sm:$0xff] %v2107
      %2110 = vst [vmem:[#allocation2 + $0x108] sm:$0xff] %v2108
      %v2111 = vmul.f32 %v1602, %v357
      %v2112 = vmul.f32 %v1615, %v358
      %2113 = vst [vmem:[#allocation2 + $0x110] sm:$0xff] %v2111
      %2114 = vst [vmem:[#allocation2 + $0x118] sm:$0xff] %v2112
      %v2115 = vmul.f32 %v1763, %v357
      %v2116 = vmul.f32 %v1776, %v358
      %2117 = vst [vmem:[#allocation2 + $0x120] sm:$0xff] %v2115
      %2118 = vst [vmem:[#allocation2 + $0x128] sm:$0xff] %v2116
      %v2119 = vmul.f32 %v1936, %v357
      %v2120 = vmul.f32 %v1949, %v358
      %2121 = vst [vmem:[#allocation2 + $0x130] sm:$0xff] %v2119
      %2122 = vst [vmem:[#allocation2 + $0x138] sm:$0xff] %v2120
      %2123 = vrot.lane.b32.xlu0 %v1427, 127
      %v2124 = vpop.permute.xlu0 %2123
      %2125 = vrot.lane.b32.xlu0 %v1440, 127
      %v2126 = vpop.permute.xlu0 %2125
      %v2127 = vsel %vm367, %v2124, %v2126
      %v2128 = vsel %vm367, %v2126, %v2124
      %v2129 = vmul.f32 %v2127, %v370
      %v2130 = vmul.f32 %v2128, %v371
      %2131 = vst [vmem:[#allocation2 + $0x140] sm:$0xff] %v2129
      %2132 = vst [vmem:[#allocation2 + $0x148] sm:$0xff] %v2130
      %2133 = vrot.lane.b32.xlu0 %v1602, 127
      %v2134 = vpop.permute.xlu0 %2133
      %2135 = vrot.lane.b32.xlu0 %v1615, 127
      %v2136 = vpop.permute.xlu0 %2135
      %v2137 = vsel %vm367, %v2134, %v2136
      %v2138 = vsel %vm367, %v2136, %v2134
      %v2139 = vmul.f32 %v2137, %v370
      %v2140 = vmul.f32 %v2138, %v371
      %2141 = vst [vmem:[#allocation2 + $0x150] sm:$0xff] %v2139
      %2142 = vst [vmem:[#allocation2 + $0x158] sm:$0xff] %v2140
      %2143 = vrot.lane.b32.xlu0 %v1763, 127
      %v2144 = vpop.permute.xlu0 %2143
      %2145 = vrot.lane.b32.xlu0 %v1776, 127
      %v2146 = vpop.permute.xlu0 %2145
      %v2147 = vsel %vm367, %v2144, %v2146
      %v2148 = vsel %vm367, %v2146, %v2144
      %v2149 = vmul.f32 %v2147, %v370
      %v2150 = vmul.f32 %v2148, %v371
      %2151 = vst [vmem:[#allocation2 + $0x160] sm:$0xff] %v2149
      %2152 = vst [vmem:[#allocation2 + $0x168] sm:$0xff] %v2150
      %2153 = vrot.lane.b32.xlu0 %v1936, 127
      %v2154 = vpop.permute.xlu0 %2153
      %2155 = vrot.lane.b32.xlu0 %v1949, 127
      %v2156 = vpop.permute.xlu0 %2155
      %v2157 = vsel %vm367, %v2154, %v2156
      %v2158 = vsel %vm367, %v2156, %v2154
      %v2159 = vmul.f32 %v2157, %v370
      %v2160 = vmul.f32 %v2158, %v371
      %2161 = vst [vmem:[#allocation2 + $0x170] sm:$0xff] %v2159
      %2162 = vst [vmem:[#allocation2 + $0x178] sm:$0xff] %v2160
      %2163 = vrot.lane.b32.xlu0 %v1427, 113
      %v2164 = vpop.permute.xlu0 %2163
      %2165 = vrot.lane.b32.xlu0 %v1440, 113
      %v2166 = vpop.permute.xlu0 %2165
      %v2167 = vsel %vm380, %v2164, %v2166
      %v2168 = vsel %vm380, %v2166, %v2164
      %v2169 = vmul.f32 %v2167, %v383
      %v2170 = vmul.f32 %v2168, %v384
      %2171 = vst [vmem:[#allocation2 + $0x180] sm:$0xff] %v2169
      %2172 = vst [vmem:[#allocation2 + $0x188] sm:$0xff] %v2170
      %2173 = vrot.lane.b32.xlu0 %v1602, 113
      %v2174 = vpop.permute.xlu0 %2173
      %2175 = vrot.lane.b32.xlu0 %v1615, 113
      %v2176 = vpop.permute.xlu0 %2175
      %v2177 = vsel %vm380, %v2174, %v2176
      %v2178 = vsel %vm380, %v2176, %v2174
      %v2179 = vmul.f32 %v2177, %v383
      %v2180 = vmul.f32 %v2178, %v384
      %2181 = vst [vmem:[#allocation2 + $0x190] sm:$0xff] %v2179
      %2182 = vst [vmem:[#allocation2 + $0x198] sm:$0xff] %v2180
      %2183 = vrot.lane.b32.xlu0 %v1763, 113
      %v2184 = vpop.permute.xlu0 %2183
      %2185 = vrot.lane.b32.xlu0 %v1776, 113
      %v2186 = vpop.permute.xlu0 %2185
      %v2187 = vsel %vm380, %v2184, %v2186
      %v2188 = vsel %vm380, %v2186, %v2184
      %v2189 = vmul.f32 %v2187, %v383
      %v2190 = vmul.f32 %v2188, %v384
      %2191 = vst [vmem:[#allocation2 + $0x1a0] sm:$0xff] %v2189
      %2192 = vst [vmem:[#allocation2 + $0x1a8] sm:$0xff] %v2190
      %2193 = vrot.lane.b32.xlu0 %v1936, 113
      %v2194 = vpop.permute.xlu0 %2193
      %2195 = vrot.lane.b32.xlu0 %v1949, 113
      %v2196 = vpop.permute.xlu0 %2195
      %v2197 = vsel %vm380, %v2194, %v2196
      %v2198 = vsel %vm380, %v2196, %v2194
      %v2199 = vmul.f32 %v2197, %v383
      %v2200 = vmul.f32 %v2198, %v384
      %2201 = vst [vmem:[#allocation2 + $0x1b0] sm:$0xff] %v2199
      %2202 = vst [vmem:[#allocation2 + $0x1b8] sm:$0xff] %v2200
      %v2203 = vmul.f32 %v1798, %v396
      %v2204 = vmul.f32 %v1799, %v397
      %2205 = vst [vmem:[#allocation2 + $0x1c0] sm:$0xff] %v2203
      %2206 = vst [vmem:[#allocation2 + $0x1c8] sm:$0xff] %v2204
      %2207 = vrot.lane.b32.xlu0 %v1602, 112
      %v2208 = vpop.permute.xlu0 %2207
      %2209 = vrot.lane.b32.xlu0 %v1615, 112
      %v2210 = vpop.permute.xlu0 %2209
      %v2211 = vsel %vm393, %v2208, %v2210
      %v2212 = vsel %vm393, %v2210, %v2208
      %v2213 = vmul.f32 %v2211, %v396
      %v2214 = vmul.f32 %v2212, %v397
      %2215 = vst [vmem:[#allocation2 + $0x1d0] sm:$0xff] %v2213
      %2216 = vst [vmem:[#allocation2 + $0x1d8] sm:$0xff] %v2214
      %2217 = vrot.lane.b32.xlu0 %v1763, 112
      %v2218 = vpop.permute.xlu0 %2217
      %2219 = vrot.lane.b32.xlu0 %v1776, 112
      %v2220 = vpop.permute.xlu0 %2219
      %v2221 = vsel %vm393, %v2218, %v2220
      %v2222 = vsel %vm393, %v2220, %v2218
      %v2223 = vmul.f32 %v2221, %v396
      %v2224 = vmul.f32 %v2222, %v397
      %2225 = vst [vmem:[#allocation2 + $0x1e0] sm:$0xff] %v2223
      %2226 = vst [vmem:[#allocation2 + $0x1e8] sm:$0xff] %v2224
      %2227 = vrot.lane.b32.xlu0 %v1936, 112
      %v2228 = vpop.permute.xlu0 %2227
      %2229 = vrot.lane.b32.xlu0 %v1949, 112
      %v2230 = vpop.permute.xlu0 %2229
      %v2231 = vsel %vm393, %v2228, %v2230
      %v2232 = vsel %vm393, %v2230, %v2228
      %v2233 = vmul.f32 %v2231, %v396
      %v2234 = vmul.f32 %v2232, %v397
      %2235 = vst [vmem:[#allocation2 + $0x1f0] sm:$0xff] %v2233
      %2236 = vst [vmem:[#allocation2 + $0x1f8] sm:$0xff] %v2234
      %2237 = vrot.lane.b32.xlu0 %v1427, 111
      %v2238 = vpop.permute.xlu0 %2237
      %2239 = vrot.lane.b32.xlu0 %v1440, 111
      %v2240 = vpop.permute.xlu0 %2239
      %v2241 = vsel %vm406, %v2238, %v2240
      %v2242 = vsel %vm406, %v2240, %v2238
      %v2243 = vmul.f32 %v2241, %v409
      %v2244 = vmul.f32 %v2242, %v410
      %2245 = vst [vmem:[#allocation2 + $0x200] sm:$0xff] %v2243
      %2246 = vst [vmem:[#allocation2 + $0x208] sm:$0xff] %v2244
      %2247 = vrot.lane.b32.xlu0 %v1602, 111
      %v2248 = vpop.permute.xlu0 %2247
      %2249 = vrot.lane.b32.xlu0 %v1615, 111
      %v2250 = vpop.permute.xlu0 %2249
      %v2251 = vsel %vm406, %v2248, %v2250
      %v2252 = vsel %vm406, %v2250, %v2248
      %v2253 = vmul.f32 %v2251, %v409
      %v2254 = vmul.f32 %v2252, %v410
      %2255 = vst [vmem:[#allocation2 + $0x210] sm:$0xff] %v2253
      %2256 = vst [vmem:[#allocation2 + $0x218] sm:$0xff] %v2254
      %2257 = vrot.lane.b32.xlu0 %v1763, 111
      %v2258 = vpop.permute.xlu0 %2257
      %2259 = vrot.lane.b32.xlu0 %v1776, 111
      %v2260 = vpop.permute.xlu0 %2259
      %v2261 = vsel %vm406, %v2258, %v2260
      %v2262 = vsel %vm406, %v2260, %v2258
      %v2263 = vmul.f32 %v2261, %v409
      %v2264 = vmul.f32 %v2262, %v410
      %2265 = vst [vmem:[#allocation2 + $0x220] sm:$0xff] %v2263
      %2266 = vst [vmem:[#allocation2 + $0x228] sm:$0xff] %v2264
      %2267 = vrot.lane.b32.xlu0 %v1936, 111
      %v2268 = vpop.permute.xlu0 %2267
      %2269 = vrot.lane.b32.xlu0 %v1949, 111
      %v2270 = vpop.permute.xlu0 %2269
      %v2271 = vsel %vm406, %v2268, %v2270
      %v2272 = vsel %vm406, %v2270, %v2268
      %v2273 = vmul.f32 %v2271, %v409
      %v2274 = vmul.f32 %v2272, %v410
      %2275 = vst [vmem:[#allocation2 + $0x230] sm:$0xff] %v2273
      %2276 = vst [vmem:[#allocation2 + $0x238] sm:$0xff] %v2274
      %v2277 = vld [vmem:[#allocation2] sm:$0xff]
      %v2278 = vld [vmem:[#allocation2 + $0x8] sm:$0xff]
      %v2279 = vld [vmem:[#allocation2 + $0x10] sm:$0xff]
      %v2280 = vld [vmem:[#allocation2 + $0x18] sm:$0xff]
      %v2281 = vld [vmem:[#allocation2 + $0x20] sm:$0xff]
      %v2282 = vld [vmem:[#allocation2 + $0x28] sm:$0xff]
      %v2283 = vld [vmem:[#allocation2 + $0x30] sm:$0xff]
      %v2284 = vld [vmem:[#allocation2 + $0x38] sm:$0xff]
      %v2285 = vld [vmem:[#allocation2 + $0x40] sm:$0xff]
      %v2286 = vld [vmem:[#allocation2 + $0x48] sm:$0xff]
      %v2287 = vld [vmem:[#allocation2 + $0x50] sm:$0xff]
      %v2288 = vld [vmem:[#allocation2 + $0x58] sm:$0xff]
      %v2289 = vld [vmem:[#allocation2 + $0x60] sm:$0xff]
      %v2290 = vld [vmem:[#allocation2 + $0x68] sm:$0xff]
      %v2291 = vld [vmem:[#allocation2 + $0x70] sm:$0xff]
      %v2292 = vld [vmem:[#allocation2 + $0x78] sm:$0xff]
      %v2293 = vld [vmem:[#allocation2 + $0x80] sm:$0xff]
      %v2294 = vld [vmem:[#allocation2 + $0x88] sm:$0xff]
      %v2295 = vld [vmem:[#allocation2 + $0x90] sm:$0xff]
      %v2296 = vld [vmem:[#allocation2 + $0x98] sm:$0xff]
      %v2297 = vld [vmem:[#allocation2 + $0xa0] sm:$0xff]
      %v2298 = vld [vmem:[#allocation2 + $0xa8] sm:$0xff]
      %v2299 = vld [vmem:[#allocation2 + $0xb0] sm:$0xff]
      %v2300 = vld [vmem:[#allocation2 + $0xb8] sm:$0xff]
      %v2301 = vld [vmem:[#allocation2 + $0xc0] sm:$0xff]
      %v2302 = vld [vmem:[#allocation2 + $0xc8] sm:$0xff]
      %v2303 = vld [vmem:[#allocation2 + $0xd0] sm:$0xff]
      %v2304 = vld [vmem:[#allocation2 + $0xd8] sm:$0xff]
      %v2305 = vld [vmem:[#allocation2 + $0xe0] sm:$0xff]
      %v2306 = vld [vmem:[#allocation2 + $0xe8] sm:$0xff]
      %v2307 = vld [vmem:[#allocation2 + $0xf0] sm:$0xff]
      %v2308 = vld [vmem:[#allocation2 + $0xf8] sm:$0xff]
      %v2309 = vld [vmem:[#allocation2 + $0x100] sm:$0xff]
      %v2310 = vld [vmem:[#allocation2 + $0x108] sm:$0xff]
      %v2311 = vld [vmem:[#allocation2 + $0x110] sm:$0xff]
      %v2312 = vld [vmem:[#allocation2 + $0x118] sm:$0xff]
      %v2313 = vld [vmem:[#allocation2 + $0x120] sm:$0xff]
      %v2314 = vld [vmem:[#allocation2 + $0x128] sm:$0xff]
      %v2315 = vld [vmem:[#allocation2 + $0x130] sm:$0xff]
      %v2316 = vld [vmem:[#allocation2 + $0x138] sm:$0xff]
      %v2317 = vld [vmem:[#allocation2 + $0x140] sm:$0xff]
      %v2318 = vld [vmem:[#allocation2 + $0x148] sm:$0xff]
      %v2319 = vld [vmem:[#allocation2 + $0x150] sm:$0xff]
      %v2320 = vld [vmem:[#allocation2 + $0x158] sm:$0xff]
      %v2321 = vld [vmem:[#allocation2 + $0x160] sm:$0xff]
      %v2322 = vld [vmem:[#allocation2 + $0x168] sm:$0xff]
      %v2323 = vld [vmem:[#allocation2 + $0x170] sm:$0xff]
      %v2324 = vld [vmem:[#allocation2 + $0x178] sm:$0xff]
      %v2325 = vld [vmem:[#allocation2 + $0x180] sm:$0xff]
      %v2326 = vld [vmem:[#allocation2 + $0x188] sm:$0xff]
      %v2327 = vld [vmem:[#allocation2 + $0x190] sm:$0xff]
      %v2328 = vld [vmem:[#allocation2 + $0x198] sm:$0xff]
      %v2329 = vld [vmem:[#allocation2 + $0x1a0] sm:$0xff]
      %v2330 = vld [vmem:[#allocation2 + $0x1a8] sm:$0xff]
      %v2331 = vld [vmem:[#allocation2 + $0x1b0] sm:$0xff]
      %v2332 = vld [vmem:[#allocation2 + $0x1b8] sm:$0xff]
      %v2333 = vld [vmem:[#allocation2 + $0x1c0] sm:$0xff]
      %v2334 = vld [vmem:[#allocation2 + $0x1c8] sm:$0xff]
      %v2335 = vld [vmem:[#allocation2 + $0x1d0] sm:$0xff]
      %v2336 = vld [vmem:[#allocation2 + $0x1d8] sm:$0xff]
      %v2337 = vld [vmem:[#allocation2 + $0x1e0] sm:$0xff]
      %v2338 = vld [vmem:[#allocation2 + $0x1e8] sm:$0xff]
      %v2339 = vld [vmem:[#allocation2 + $0x1f0] sm:$0xff]
      %v2340 = vld [vmem:[#allocation2 + $0x1f8] sm:$0xff]
      %v2341 = vld [vmem:[#allocation2 + $0x200] sm:$0xff]
      %v2342 = vld [vmem:[#allocation2 + $0x208] sm:$0xff]
      %v2343 = vld [vmem:[#allocation2 + $0x210] sm:$0xff]
      %v2344 = vld [vmem:[#allocation2 + $0x218] sm:$0xff]
      %v2345 = vld [vmem:[#allocation2 + $0x220] sm:$0xff]
      %v2346 = vld [vmem:[#allocation2 + $0x228] sm:$0xff]
      %v2347 = vld [vmem:[#allocation2 + $0x230] sm:$0xff]
      %v2348 = vld [vmem:[#allocation2 + $0x238] sm:$0xff]
      %v2349 = vpack.c.bf16 %v2279, %v2277
      %v2350 = vpack.c.bf16 %v2280, %v2278
      %v2351 = vpack.c.bf16 %v2283, %v2281
      %v2352 = vpack.c.bf16 %v2284, %v2282
      %v2353 = vpack.c.bf16 %v2287, %v2285
      %v2354 = vpack.c.bf16 %v2288, %v2286
      %v2355 = vpack.c.bf16 %v2291, %v2289
      %v2356 = vpack.c.bf16 %v2292, %v2290
      %v2357 = vpack.c.bf16 %v2295, %v2293
      %v2358 = vpack.c.bf16 %v2296, %v2294
      %v2359 = vpack.c.bf16 %v2299, %v2297
      %v2360 = vpack.c.bf16 %v2300, %v2298
      %v2361 = vpack.c.bf16 %v2303, %v2301
      %v2362 = vpack.c.bf16 %v2304, %v2302
      %v2363 = vpack.c.bf16 %v2307, %v2305
      %v2364 = vpack.c.bf16 %v2308, %v2306
      %v2365 = vpack.c.bf16 %v2311, %v2309
      %v2366 = vpack.c.bf16 %v2312, %v2310
      %v2367 = vpack.c.bf16 %v2315, %v2313
      %v2368 = vpack.c.bf16 %v2316, %v2314
      %v2369 = vpack.c.bf16 %v2319, %v2317
      %v2370 = vpack.c.bf16 %v2320, %v2318
      %v2371 = vpack.c.bf16 %v2323, %v2321
      %v2372 = vpack.c.bf16 %v2324, %v2322
      %v2373 = vpack.c.bf16 %v2327, %v2325
      %v2374 = vpack.c.bf16 %v2328, %v2326
      %v2375 = vpack.c.bf16 %v2331, %v2329
      %v2376 = vpack.c.bf16 %v2332, %v2330
      %v2377 = vpack.c.bf16 %v2335, %v2333
      %v2378 = vpack.c.bf16 %v2336, %v2334
      %v2379 = vpack.c.bf16 %v2339, %v2337
      %v2380 = vpack.c.bf16 %v2340, %v2338
      %v2381 = vpack.c.bf16 %v2343, %v2341
      %v2382 = vpack.c.bf16 %v2344, %v2342
      %v2383 = vpack.c.bf16 %v2347, %v2345
      %v2384 = vpack.c.bf16 %v2348, %v2346
      %2386 = vst [vmem:[#allocation1] ss:$9 sm:$0xff] %v1952
      %v2387 = vld [vmem:[#allocation1] sm:$0xff]
      %v2388 = vld [vmem:[#allocation1 + $0x9] sm:$0xff]
      %v2389 = vld [vmem:[#allocation1 + $0x12] sm:$0xff]
      %vm2392 = vcmask 261120
      %v2393 = vsel %vm2392, %v2389, 0
      %2395 = vmatpush.bf16.msra.mxu0 %v2363
      %2396 = vmatpush.bf16.msra.mxu0 %v2361
      %2397 = vmatpush.bf16.msra.mxu0 %v2359
      %2398 = vmatpush.bf16.msra.mxu0 %v2357
      %2399 = vmatpush.bf16.msra.mxu0 %v2355
      %2400 = vmatpush.bf16.msra.mxu0 %v2353
      %2401 = vmatpush.bf16.msra.mxu0 %v2351
      %2402 = vmatpush.bf16.msra.mxu0 %v2349
      %2403 = vmatmul.bf16.gmra.mxu0 %v2387
      %v2404 = vpop.f32.mrf.mxu0
      %v2405 = vadd.f32 0.0, %v2404
      %v2406 = vpop.f32.mrf.mxu0
      %2407 = vdwg.mxu0
      %2408 = vmatpush.bf16.msra.mxu0 %v2379
      %2409 = vmatpush.bf16.msra.mxu0 %v2377
      %2410 = vmatpush.bf16.msra.mxu0 %v2375
      %2411 = vmatpush.bf16.msra.mxu0 %v2373
      %2412 = vmatpush.bf16.msra.mxu0 %v2371
      %2413 = vmatpush.bf16.msra.mxu0 %v2369
      %2414 = vmatpush.bf16.msra.mxu0 %v2367
      %2415 = vmatpush.bf16.msra.mxu0 %v2365
      %2416 = vmatmul.bf16.gmra.mxu0 %v2388
      %v2417 = vpop.f32.mrf.mxu0
      %v2418 = vadd.f32 %v2405, %v2417
      %v2419 = vpop.f32.mrf.mxu0
      %2420 = vdwg.mxu0
      %2421 = vmatpush.bf16.msra.mxu0 0
      %2422 = vmatpush.bf16.msra.mxu0 0
      %2423 = vmatpush.bf16.msra.mxu0 0
      %2424 = vmatpush.bf16.msra.mxu0 0
      %2425 = vmatpush.bf16.msra.mxu0 0
      %2426 = vmatpush.bf16.msra.mxu0 0
      %2427 = vmatpush.bf16.msra.mxu0 %v2383
      %2428 = vmatpush.bf16.msra.mxu0 %v2381
      %2429 = vmatmul.bf16.gmra.mxu0 %v2393
      %v2430 = vpop.f32.mrf.mxu0
      %v2431 = vadd.f32 %v2418, %v2430
      %v2432 = vpop.f32.mrf.mxu0
      %2433 = vdwg.mxu0
      %2434 = vmatpush.bf16.msra.mxu0 %v2364
      %2435 = vmatpush.bf16.msra.mxu0 %v2362
      %2436 = vmatpush.bf16.msra.mxu0 %v2360
      %2437 = vmatpush.bf16.msra.mxu0 %v2358
      %2438 = vmatpush.bf16.msra.mxu0 %v2356
      %2439 = vmatpush.bf16.msra.mxu0 %v2354
      %2440 = vmatpush.bf16.msra.mxu0 %v2352
      %2441 = vmatpush.bf16.msra.mxu0 %v2350
      %2442 = vmatmul.bf16.gmra.mxu0 %v2387
      %v2443 = vpop.f32.mrf.mxu0
      %v2444 = vadd.f32 0.0, %v2443
      %v2445 = vpop.f32.mrf.mxu0
      %2446 = vdwg.mxu0
      %2447 = vmatpush.bf16.msra.mxu0 %v2380
      %2448 = vmatpush.bf16.msra.mxu0 %v2378
      %2449 = vmatpush.bf16.msra.mxu0 %v2376
      %2450 = vmatpush.bf16.msra.mxu0 %v2374
      %2451 = vmatpush.bf16.msra.mxu0 %v2372
      %2452 = vmatpush.bf16.msra.mxu0 %v2370
      %2453 = vmatpush.bf16.msra.mxu0 %v2368
      %2454 = vmatpush.bf16.msra.mxu0 %v2366
      %2455 = vmatmul.bf16.gmra.mxu0 %v2388
      %v2456 = vpop.f32.mrf.mxu0
      %v2457 = vadd.f32 %v2444, %v2456
      %v2458 = vpop.f32.mrf.mxu0
      %2459 = vdwg.mxu0
      %2460 = vmatpush.bf16.msra.mxu0 0
      %2461 = vmatpush.bf16.msra.mxu0 0
      %2462 = vmatpush.bf16.msra.mxu0 0
      %2463 = vmatpush.bf16.msra.mxu0 0
      %2464 = vmatpush.bf16.msra.mxu0 0
      %2465 = vmatpush.bf16.msra.mxu0 0
      %2466 = vmatpush.bf16.msra.mxu0 %v2384
      %2467 = vmatpush.bf16.msra.mxu0 %v2382
      %2468 = vmatmul.bf16.gmra.mxu0 %v2393
      %v2469 = vpop.f32.mrf.mxu0
      %v2470 = vadd.f32 %v2457, %v2469
      %v2471 = vpop.f32.mrf.mxu0
      %2472 = vdwg.mxu0
      %v2473 = vmax.f32 %v2431, 0.0
      %v2474 = vmax.f32 %v2470, 0.0
      %s2475 = scalar_lea.vmem %s6, 72
      %v2476 = vld [vmem:[%s2475] sm:$0xff]
      %2478 = vset.pattern.permute.xlu0 0
      %2479 = vperm.xlu0 %2478, %v2476
      %v2480 = vpop.permute.xlu0 %2479
      %v2482 = vmul.f32 %v2473, %v2480
      %v2483 = vmul.f32 %v2474, %v2480
      %v2484 = vxor.u32 %v2482, 2147483648
      %v2485 = vxor.u32 %v2483, 2147483648
      %v2486 = vmul.f32 %v2484, 1.442695
      %v2487 = vpow.pop %v2486
      %v2488 = vmul.f32 %v2485, 1.442695
      %v2489 = vpow.pop %v2488
      %v2490 = vadd.f32 %v2487, 1.0
      %v2491 = vadd.f32 %v2489, 1.0
      %v2492 = vrcp.pop %v2490
      %v2493 = vmul.f32 %v2490, %v2492
      %v2494 = vsub.f32 1.0, %v2493
      %v2495 = vmul.f32 %v2492, %v2494
      %v2496 = vadd.f32 %v2492, %v2495
      %vm2497 = vweird.f32 %v2490
      %vm2498 = vweird.f32 %v2492
      %vm2499 = vmor %vm2497, %vm2498
      %v2500 = vsel %vm2499, %v2492, %v2496
      %v2501 = vand.u32 2147483647, %v2490
      %vm2502 = vcmp.eq.f32.partialorder %v2501, 8.507059e+37
      %v2503 = vand.u32 %v2490, 2147483648
      %v2504 = vor.u32 1.1754944e-38, %v2503
      %v2505 = vsel %vm2502, %v2504, %v2500
      %v2506 = vmul.f32 1.0, %v2505
      %v2507 = vrcp.pop %v2491
      %v2508 = vmul.f32 %v2491, %v2507
      %v2509 = vsub.f32 1.0, %v2508
      %v2510 = vmul.f32 %v2507, %v2509
      %v2511 = vadd.f32 %v2507, %v2510
      %vm2512 = vweird.f32 %v2491
      %vm2513 = vweird.f32 %v2507
      %vm2514 = vmor %vm2512, %vm2513
      %v2515 = vsel %vm2514, %v2507, %v2511
      %v2516 = vand.u32 2147483647, %v2491
      %vm2517 = vcmp.eq.f32.partialorder %v2516, 8.507059e+37
      %v2518 = vand.u32 %v2491, 2147483648
      %v2519 = vor.u32 1.1754944e-38, %v2518
      %v2520 = vsel %vm2517, %v2519, %v2515
      %v2521 = vmul.f32 1.0, %v2520
      %v2522 = vperm.slane %v2506, 0
      %v2523 = vperm.slane %v2521, 0
      %v2524 = vmul.f32 %v2522, %v1102
      %v2525 = vmul.f32 %v2523, %v1115
      %v2526 = vadd.f32 %v2524, %v281
      %v2527 = vadd.f32 %v2525, %v282
      %v2528 = vpack.c.bf16 %v2527, %v2526
      %2529 = vst [vmem:[%s278] sm:$0xff] %v2528
      %p2530 = scmp.lt.s32.totalorder %s18, 1
      %s2531 = scalar_select %p2530, %s18, 1
      %s2532 = smul.addr %s2531, 2
      %s2533 = smul.addr %s2532, 4
      %s2534 = scalar_lea.vmem %s7, %s2533
      // Predicated region
      $region49: #{group_forward.3} parent=47 // pred_check
        %p2535 = pneg %p188
      $region50: #{group_forward.3} parent=47 // pred_check_branch
        %2537 = sbr.rel (%p2535) target = $region52
      $region51: #{group_forward.3} parent=47 // pred_region
        _
      $region52: #{group_forward.3} parent=47 // pred_fallthru
        _
    $region48: #{group_forward.3} parent=5 // pred_fallthru
      _
    %p2538 = scmp.le.s32.totalorder 2, %s13
    // Predicated region
    $region53: #{group_forward.3} parent=5 // pred_check
      %p2539 = pneg %p2538
    $region54: #{group_forward.3} parent=5 // pred_check_branch
      %2541 = sbr.rel (%p2539) target = $region56
    $region55: #{group_forward.3} parent=5 // pred_region
      %s2542 = ssub.s32 %s13, 2
      // Predicated region
      $region57: #{group_forward.3} parent=55 // pred_check
        %p2543 = pneg %p194
      $region58: #{group_forward.3} parent=55 // pred_check_branch
        %2545 = sbr.rel (%p2543) target = $region60
      $region59: #{group_forward.3} parent=55 // pred_region
        %p2546 = scmp.lt.s32.totalorder %s19, 1
        %s2547 = scalar_select %p2546, %s19, 1
        %s2548 = smul.addr %s2547, 2
        %s2549 = smul.addr %s2548, 4
        %s2550 = scalar_lea.vmem %s7, %s2549
      $region60: #{group_forward.3} parent=55 // pred_fallthru
        _
    $region56: #{group_forward.3} parent=5 // pred_fallthru
      _
  $region6: #{group_forward.3} parent=0 // loop_footer
    %s17 = sadd.s32 1, %s13
  $region7: #{group_forward.3} parent=0 // loop_footer_branch
    %12 = sbr.rel target = $region3
  $region8: #{group_forward.3} parent=0 // loop_exit
    _

</llo_original>
